<compile_context>
chip_gen: v5e
topology: v5e:2x2
jax: 0.10.0
libtpu: 0.0.40
codegen_flags: <defaults>
</compile_context>

<pallas_src>
import functools

import jax
import jax.numpy as jnp
from jax.experimental import pallas as pl
from jax.experimental.pallas import tpu as pltpu

F32 = jnp.float32
BF16 = jnp.bfloat16


# ------------------------------------------------------------------ helpers --

def _stable_sigmoid(y):
    # overflow-safe sigmoid (never exponentiates a large positive number)
    e = jnp.exp(-jnp.abs(y))
    return jnp.where(y >= 0, 1.0 / (1.0 + e), e / (1.0 + e))


def _pick_tm(n, requested=None):
    # row-tile size: multiple of 8 sublanes that divides n, else whole array
    if requested is not None and requested <= n and n % requested == 0 and requested % 8 == 0:
        return requested
    for t in (512, 256, 128, 64, 32, 16, 8):
        if t <= n and n % t == 0:
            return t
    return n


# ------------------------------------------------------------------ kernels --

def _linear_ln_kernel(x_ref, w_ref, b_ref, g_ref, bb_ref, o_ref, *, relu):
    # fused: y = x @ w + b  ->  LayerNorm  ->  optional ReLU   (row block)
    y = jnp.dot(x_ref[...].astype(BF16), w_ref[...],
                preferred_element_type=F32) + b_ref[...]
    mu = jnp.mean(y, axis=-1, keepdims=True)
    yc = y - mu
    var = jnp.mean(yc * yc, axis=-1, keepdims=True)
    y = yc * jax.lax.rsqrt(var + 1e-5) * g_ref[...] + bb_ref[...]
    if relu:
        y = jnp.maximum(y, 0.0)
    o_ref[...] = y


def _linear_kernel(x_ref, w_ref, b_ref, o_ref):
    # plain y = x @ w + b (row block)
    o_ref[...] = jnp.dot(x_ref[...].astype(BF16), w_ref[...],
                         preferred_element_type=F32) + b_ref[...]


def _qkv_stats_kernel(h_ref, wqkv_ref, bqkv_ref, q_ref, v_ref, ktv_ref, mom_ref):
    # merged q|k|v projection for a row block, plus accumulation of the global
    # DIFFormer 'simple'-kernel statistics:
    #   ktv  = k^T v               [D, D]
    #   mom0 = sum_rows k          [1, D]
    #   mom1 = sum_rows v          [1, D]
    #   mom2 = colwise sum q*q     [1, D]   (lane-sum later gives ||q||_F^2)
    #   mom3 = colwise sum k*k     [1, D]   (lane-sum later gives ||k||_F^2)
    d = q_ref.shape[-1]
    qkv = jnp.dot(h_ref[...].astype(BF16), wqkv_ref[...],
                  preferred_element_type=F32) + bqkv_ref[...]
    q = qkv[:, :d]
    k = qkv[:, d:2 * d]
    v = qkv[:, 2 * d:]
    q_ref[...] = q
    v_ref[...] = v

    @pl.when(pl.program_id(0) == 0)
    def _():
        ktv_ref[...] = jnp.zeros_like(ktv_ref)
        mom_ref[...] = jnp.zeros_like(mom_ref)

    ktv_ref[...] += jax.lax.dot_general(
        k.astype(BF16), v.astype(BF16), (((0,), (0,)), ((), ())),
        preferred_element_type=F32)
    mom_ref[...] += jnp.concatenate(
        [jnp.sum(k, axis=0, keepdims=True),
         jnp.sum(v, axis=0, keepdims=True),
         jnp.sum(q * q, axis=0, keepdims=True),
         jnp.sum(k * k, axis=0, keepdims=True)], axis=0)


def _attn_gcn_ln_kernel(q_ref, v_ref, ktv_ref, mom_ref, adj_ref, prev_ref,
                        g_ref, b_ref, o_ref, *, alpha, n_nodes):
    # fused (per row block): simple-kernel attention + dense GCN propagation +
    # alpha residual mix + LayerNorm.
    q = q_ref[...]                                   # [TM, D] f32
    v = v_ref[...]                                   # [N,  D] f32 (resident)
    moms = mom_ref[...]                              # [4,  D]
    ksum = moms[0:1, :]
    vsum = moms[1:2, :]
    sq = jnp.sum(moms[2:3, :], axis=-1, keepdims=True)   # ||q||_F^2  (1,1)
    sk = jnp.sum(moms[3:4, :], axis=-1, keepdims=True)   # ||k||_F^2  (1,1)
    scale = jax.lax.rsqrt(sq * sk)                        # 1/(||q||_F ||k||_F)

    # numerator: (q @ (k^T v)) * scale + sum_l v_l
    num = jnp.dot(q.astype(BF16), ktv_ref[...].astype(BF16),
                  preferred_element_type=F32) * scale + vsum
    # denominator: (q . sum_l k_l) * scale + N
    denom = jnp.sum(q * ksum, axis=-1, keepdims=True) * scale + float(n_nodes)
    attn = num * pl.reciprocal(denom, approx=True)

    # graph propagation: A_norm[row block] @ v   (A_norm built on host, bf16)
    gcn = jnp.dot(adj_ref[...], v.astype(BF16), preferred_element_type=F32)

    z = alpha * (attn + gcn) + (1.0 - alpha) * prev_ref[...]

    # LayerNorm (eps = 1e-5, torch default)
    mu = jnp.mean(z, axis=-1, keepdims=True)
    zc = z - mu
    var = jnp.mean(zc * zc, axis=-1, keepdims=True)
    o_ref[...] = zc * jax.lax.rsqrt(var + 1e-5) * g_ref[...] + b_ref[...]


def _pool_mlp_kernel(onehot_ref, fea_ref, cnt_ref, w_ref, b_ref, fs_ref, out_ref):
    # fused tail: global mean pool + MLP1 + sigmoid
    pooled = jnp.dot(onehot_ref[...], fea_ref[...], preferred_element_type=F32)
    fs = pooled / cnt_ref[...]
    fs_ref[...] = fs
    y = jnp.dot(fs.astype(BF16), w_ref[...], preferred_element_type=F32) + b_ref[...]
    out_ref[...] = _stable_sigmoid(y)


# ----------------------------------------------------------------- wrappers --

def fused_input_layer(x, w, b, g, beta, *, block_rows=None):
    n, fin = x.shape
    hid = w.shape[1]
    tm = _pick_tm(n, block_rows)
    return pl.pallas_call(
        functools.partial(_linear_ln_kernel, relu=True),
        out_shape=jax.ShapeDtypeStruct((n, hid), F32),
        grid=(n // tm,),
        in_specs=[
            pl.BlockSpec((tm, fin), lambda i: (i, 0)),
            pl.BlockSpec((fin, hid), lambda i: (0, 0)),
            pl.BlockSpec((1, hid), lambda i: (0, 0)),
            pl.BlockSpec((1, hid), lambda i: (0, 0)),
            pl.BlockSpec((1, hid), lambda i: (0, 0)),
        ],
        out_specs=pl.BlockSpec((tm, hid), lambda i: (i, 0)),
        compiler_params=pltpu.CompilerParams(dimension_semantics=("parallel",)),
    )(x, w.astype(BF16), b, g, beta)


def linear_rows(x, w, b, *, block_rows=None):
    n, din = x.shape
    dout = w.shape[1]
    tm = _pick_tm(n, block_rows)
    return pl.pallas_call(
        _linear_kernel,
        out_shape=jax.ShapeDtypeStruct((n, dout), F32),
        grid=(n // tm,),
        in_specs=[
            pl.BlockSpec((tm, din), lambda i: (i, 0)),
            pl.BlockSpec((din, dout), lambda i: (0, 0)),
            pl.BlockSpec((1, dout), lambda i: (0, 0)),
        ],
        out_specs=pl.BlockSpec((tm, dout), lambda i: (i, 0)),
        compiler_params=pltpu.CompilerParams(dimension_semantics=("parallel",)),
    )(x, w.astype(BF16), b)


def qkv_stats(h, wqkv, bqkv, *, block_rows=None):
    n, d = h.shape
    tm = _pick_tm(n, block_rows)
    return pl.pallas_call(
        _qkv_stats_kernel,
        out_shape=(
            jax.ShapeDtypeStruct((n, d), F32),     # q
            jax.ShapeDtypeStruct((n, d), F32),     # v
            jax.ShapeDtypeStruct((d, d), F32),     # k^T v
            jax.ShapeDtypeStruct((4, d), F32),     # [ksum; vsum; sum q^2; sum k^2]
        ),
        grid=(n // tm,),
        in_specs=[
            pl.BlockSpec((tm, d), lambda i: (i, 0)),
            pl.BlockSpec((d, 3 * d), lambda i: (0, 0)),
            pl.BlockSpec((1, 3 * d), lambda i: (0, 0)),
        ],
        out_specs=[
            pl.BlockSpec((tm, d), lambda i: (i, 0)),
            pl.BlockSpec((tm, d), lambda i: (i, 0)),
            pl.BlockSpec((d, d), lambda i: (0, 0)),     # accumulator (revisited)
            pl.BlockSpec((4, d), lambda i: (0, 0)),     # accumulator (revisited)
        ],
        compiler_params=pltpu.CompilerParams(dimension_semantics=("arbitrary",)),
    )(h, wqkv.astype(BF16), bqkv)


def attn_gcn_ln(q, v, ktv, moms, adj_bf16, prev, g, b, alpha, *, block_rows=None):
    n, d = q.shape
    tm = _pick_tm(n, block_rows)
    return pl.pallas_call(
        functools.partial(_attn_gcn_ln_kernel, alpha=float(alpha), n_nodes=n),
        out_shape=jax.ShapeDtypeStruct((n, d), F32),
        grid=(n // tm,),
        in_specs=[
            pl.BlockSpec((tm, d), lambda i: (i, 0)),    # q rows
            pl.BlockSpec((n, d), lambda i: (0, 0)),     # v (full, resident)
            pl.BlockSpec((d, d), lambda i: (0, 0)),     # k^T v
            pl.BlockSpec((4, d), lambda i: (0, 0)),     # moments
            pl.BlockSpec((tm, n), lambda i: (i, 0)),    # adj row block (bf16)
            pl.BlockSpec((tm, d), lambda i: (i, 0)),    # residual input
            pl.BlockSpec((1, d), lambda i: (0, 0)),     # LN gamma
            pl.BlockSpec((1, d), lambda i: (0, 0)),     # LN beta
        ],
        out_specs=pl.BlockSpec((tm, d), lambda i: (i, 0)),
        compiler_params=pltpu.CompilerParams(dimension_semantics=("parallel",)),
    )(q, v, ktv, moms, adj_bf16, prev, g, b)


def pool_mlp_sigmoid(onehot, fea, cnt, w1, b1):
    g, _ = onehot.shape
    d = fea.shape[1]
    m1 = w1.shape[1]
    return pl.pallas_call(
        _pool_mlp_kernel,
        out_shape=(jax.ShapeDtypeStruct((g, d), F32),      # feature_s
                   jax.ShapeDtypeStruct((g, m1), F32)),    # sigmoid(MLP1)
        in_specs=[pl.BlockSpec(memory_space=pltpu.MemorySpace.VMEM)] * 5,
        out_specs=[pl.BlockSpec(memory_space=pltpu.MemorySpace.VMEM)] * 2,
    )(onehot, fea, cnt, w1.astype(BF16), b1)


# ------------------------------------------------------- parameter creation --

def _init_linear(key, din, dout):
    # matches torch.nn.Linear default init: U(-1/sqrt(fan_in), 1/sqrt(fan_in))
    k1, k2 = jax.random.split(key)
    lim = 1.0 / jnp.sqrt(jnp.float32(din))
    return {
        "w": jax.random.uniform(k1, (din, dout), F32, -lim, lim),
        "b": jax.random.uniform(k2, (1, dout), F32, -lim, lim),
    }


def init_difformer(key, in_ch, hid, out_ch, num_layers):
    keys = jax.random.split(key, 2 + 3 * num_layers)
    params = {
        "fc_in": _init_linear(keys[0], in_ch, hid),
        "fc_out": _init_linear(keys[1], hid, out_ch),
        "ln": [{"g": jnp.ones((1, hid), F32), "b": jnp.zeros((1, hid), F32)}
               for _ in range(num_layers + 1)],
        "convs": [],
    }
    for i in range(num_layers):
        kq, kk, kv = keys[2 + 3 * i: 5 + 3 * i]
        wq = _init_linear(kq, hid, hid)
        wk = _init_linear(kk, hid, hid)
        wv = _init_linear(kv, hid, hid)
        params["convs"].append({
            # merged q|k|v projection weight / bias
            "wqkv": jnp.concatenate([wq["w"], wk["w"], wv["w"]], axis=1),
            "bqkv": jnp.concatenate([wq["b"], wk["b"], wv["b"]], axis=1),
        })
    return params


# ---------------------------------------------------------------- forwards --

def difformer_forward(params, x, adj_bf16, alpha, *, block_rows=None):
    # fc_in -> LayerNorm -> ReLU  (dropout = identity in eval mode), fused
    h = fused_input_layer(x, params["fc_in"]["w"], params["fc_in"]["b"],
                          params["ln"][0]["g"], params["ln"][0]["b"],
                          block_rows=block_rows)
    prev = h
    for i, cp in enumerate(params["convs"]):
        # (1) merged QKV projection + global attention statistics
        q, v, ktv, moms = qkv_stats(h, cp["wqkv"], cp["bqkv"], block_rows=block_rows)
        # (2) attention + gcn + alpha residual + LayerNorm, row-tiled
        z = attn_gcn_ln(q, v, ktv, moms, adj_bf16, prev,
                        params["ln"][i + 1]["g"], params["ln"][i + 1]["b"],
                        alpha, block_rows=block_rows)
        prev = z
        h = z
    return linear_rows(h, params["fc_out"]["w"], params["fc_out"]["b"],
                       block_rows=block_rows)


def main_model_forward(params, x, adj, batch, num_graphs,
                       alpha_enc=0.5, alpha_dec=0.5, block_rows=None):
    adj_bf16 = adj.astype(BF16)          # halves HBM/DMA bytes of the A_norm @ v product
    # encoder
    fea = difformer_forward(params["encoder"], x, adj_bf16, alpha_enc,
                            block_rows=block_rows)
    # decoder consumes the encoder features (data_decoder.x = fea)
    decoder_output = difformer_forward(params["decoder"], fea, adj_bf16, alpha_dec,
                                       block_rows=block_rows)
    # global mean pool + MLP1 + Sigmoid (single fused tail kernel)
    onehot = (batch[None, :] == jnp.arange(num_graphs)[:, None]).astype(F32)
    cnt = jnp.sum(onehot, axis=1, keepdims=True)
    feature_s, output = pool_mlp_sigmoid(onehot, fea, cnt,
                                         params["mlp1"]["w"], params["mlp1"]["b"])
    return output, decoder_output, feature_s


# -------------------------------------------------------------------- main --

if __name__ == "__main__":
    # small synthetic graph, lane-dense hidden dims (128) per perf review
    N_NODES = 128
    N_GRAPHS = 2
    N_EDGES = 256
    F_IN = 16          # args.num_node_features
    HID_ENC = 128      # args.hidden_channels
    OUT_ENC = 128      # args.out_channels (== num_node_features1 == mlpin_dim)
    HID_DEC = 128      # args.hidden_channels1
    OUT_DEC = 16       # args.out_channels1
    MLP1_DIM = 8       # args.mlp1_dim
    N_LAYERS = 2       # args.num_layers / num_layers1
    ALPHA = 0.5
    BLOCK_ROWS = 64    # row-tile -> 2 grid blocks (exercises accumulator path)

    root = jax.random.PRNGKey(0)
    k_x, k_e, k_enc, k_dec, k_mlp = jax.random.split(root, 5)

    # node features and batch assignment
    x = jax.random.normal(k_x, (N_NODES, F_IN), F32)
    batch = jnp.concatenate([jnp.zeros(N_NODES // 2, jnp.int32),
                             jnp.ones(N_NODES - N_NODES // 2, jnp.int32)])

    # random edge_index [2, E] and the dense normalized adjacency used by the
    # DIFFormer gcn_conv:  A[col, row] += 1/sqrt(deg_in[col] * deg_in[row])
    edge_index = jax.random.randint(k_e, (2, N_EDGES), 0, N_NODES, jnp.int32)
    row, col = edge_index[0], edge_index[1]
    deg = jnp.zeros((N_NODES,), F32).at[col].add(1.0)
    d_in = 1.0 / jnp.sqrt(deg[col])
    d_out = 1.0 / jnp.sqrt(deg[row])
    val = jnp.nan_to_num(d_in * d_out, nan=0.0, posinf=0.0, neginf=0.0)
    adj = jnp.zeros((N_NODES, N_NODES), F32).at[col, row].add(val)

    params = {
        "encoder": init_difformer(k_enc, F_IN, HID_ENC, OUT_ENC, N_LAYERS),
        "decoder": init_difformer(k_dec, OUT_ENC, HID_DEC, OUT_DEC, N_LAYERS),
        "mlp1": _init_linear(k_mlp, OUT_ENC, MLP1_DIM),
    }

    fwd = jax.jit(main_model_forward,
                  static_argnames=("num_graphs", "alpha_enc", "alpha_dec", "block_rows"))
    output, decoder_output, feature_s = fwd(
        params, x, adj, batch,
        num_graphs=N_GRAPHS, alpha_enc=ALPHA, alpha_dec=ALPHA, block_rows=BLOCK_ROWS)

    jax.block_until_ready((output, decoder_output, feature_s))
    assert output.shape == (N_GRAPHS, MLP1_DIM)
    assert decoder_output.shape == (N_NODES, OUT_DEC)
    assert feature_s.shape == (N_GRAPHS, OUT_ENC)
    print("KERNEL_OK")
</pallas_src>

<mosaic_0001>
module attributes {stable_mosaic.version = 11 : i64} {
  func.func @_linear_ln_kernel(%arg0: i32, %arg1: memref<64x16xf32, #tpu.memory_space<vmem>>, %arg2: memref<16x128xbf16, #tpu.memory_space<vmem>>, %arg3: memref<1x128xf32, #tpu.memory_space<vmem>>, %arg4: memref<1x128xf32, #tpu.memory_space<vmem>>, %arg5: memref<1x128xf32, #tpu.memory_space<vmem>>, %arg6: memref<64x128xf32, #tpu.memory_space<vmem>>) attributes {dimension_semantics = [#tpu.dimension_semantics<parallel>], iteration_bounds = array<i64: 2>, scalar_prefetch = 0 : i64, scratch_operands = 0 : i64, tpu.core_type = #tpu.core_type<tc>, window_params = [{transform_indices = @transform_0, window_bounds = array<i64: 64, 16>}, {pipeline_mode = #tpu.pipeline_mode<synchronous>, transform_indices = @transform_1, window_bounds = array<i64: 16, 128>}, {pipeline_mode = #tpu.pipeline_mode<synchronous>, transform_indices = @transform_2, window_bounds = array<i64: 1, 128>}, {pipeline_mode = #tpu.pipeline_mode<synchronous>, transform_indices = @transform_3, window_bounds = array<i64: 1, 128>}, {pipeline_mode = #tpu.pipeline_mode<synchronous>, transform_indices = @transform_4, window_bounds = array<i64: 1, 128>}, {transform_indices = @transform_5, window_bounds = array<i64: 64, 128>}]} {
    %c0 = arith.constant 0 : index
    %c0_0 = arith.constant 0 : index
    %0 = vector.load %arg1[%c0, %c0_0] : memref<64x16xf32, #tpu.memory_space<vmem>>, vector<64x16xf32>
    %1 = arith.truncf %0 : vector<64x16xf32> to vector<64x16xbf16>
    %c0_1 = arith.constant 0 : index
    %c0_2 = arith.constant 0 : index
    %2 = vector.load %arg2[%c0_1, %c0_2] : memref<16x128xbf16, #tpu.memory_space<vmem>>, vector<16x128xbf16>
    %cst = arith.constant dense<0.000000e+00> : vector<64x128xf32>
    %3 = tpu.matmul %1, %2, %cst {dimension_numbers = #tpu.dot_dimension_numbers<[1], [0], [0], [1], [0, 0, 1, 1], [], []>} : vector<64x16xbf16>, vector<16x128xbf16>, vector<64x128xf32> -> vector<64x128xf32>
    %c0_3 = arith.constant 0 : index
    %c0_4 = arith.constant 0 : index
    %4 = vector.load %arg3[%c0_3, %c0_4] : memref<1x128xf32, #tpu.memory_space<vmem>>, vector<1x128xf32>
    %5 = vector.broadcast %4 : vector<1x128xf32> to vector<64x128xf32>
    %6 = arith.addf %3, %5 : vector<64x128xf32>
    %cst_5 = arith.constant dense<0.000000e+00> : vector<64xf32>
    %7 = vector.multi_reduction <add>, %6, %cst_5 [1] : vector<64x128xf32> to vector<64xf32>
    %8 = vector.shape_cast %7 : vector<64xf32> to vector<64x1xf32>
    %cst_6 = arith.constant 1.280000e+02 : f32
    %9 = vector.broadcast %cst_6 : f32 to vector<64x1xf32>
    %10 = arith.divf %8, %9 : vector<64x1xf32>
    %11 = vector.broadcast %10 : vector<64x1xf32> to vector<64x128xf32>
    %12 = arith.subf %6, %11 : vector<64x128xf32>
    %13 = arith.mulf %12, %12 : vector<64x128xf32>
    %cst_7 = arith.constant dense<0.000000e+00> : vector<64xf32>
    %14 = vector.multi_reduction <add>, %13, %cst_7 [1] : vector<64x128xf32> to vector<64xf32>
    %15 = vector.shape_cast %14 : vector<64xf32> to vector<64x1xf32>
    %cst_8 = arith.constant 1.280000e+02 : f32
    %16 = vector.broadcast %cst_8 : f32 to vector<64x1xf32>
    %17 = arith.divf %15, %16 : vector<64x1xf32>
    %cst_9 = arith.constant 9.99999974E-6 : f32
    %18 = vector.broadcast %cst_9 : f32 to vector<64x1xf32>
    %19 = arith.addf %17, %18 : vector<64x1xf32>
    %20 = math.rsqrt %19 : vector<64x1xf32>
    %21 = vector.broadcast %20 : vector<64x1xf32> to vector<64x128xf32>
    %22 = arith.mulf %12, %21 : vector<64x128xf32>
    %c0_10 = arith.constant 0 : index
    %c0_11 = arith.constant 0 : index
    %23 = vector.load %arg4[%c0_10, %c0_11] : memref<1x128xf32, #tpu.memory_space<vmem>>, vector<1x128xf32>
    %24 = vector.broadcast %23 : vector<1x128xf32> to vector<64x128xf32>
    %25 = arith.mulf %22, %24 : vector<64x128xf32>
    %c0_12 = arith.constant 0 : index
    %c0_13 = arith.constant 0 : index
    %26 = vector.load %arg5[%c0_12, %c0_13] : memref<1x128xf32, #tpu.memory_space<vmem>>, vector<1x128xf32>
    %27 = vector.broadcast %26 : vector<1x128xf32> to vector<64x128xf32>
    %28 = arith.addf %25, %27 : vector<64x128xf32>
    %cst_14 = arith.constant 0.000000e+00 : f32
    %29 = vector.broadcast %cst_14 : f32 to vector<64x128xf32>
    %30 = arith.maximumf %28, %29 : vector<64x128xf32>
    %c0_15 = arith.constant 0 : index
    %c0_16 = arith.constant 0 : index
    %31 = vector.load %arg6[%c0_15, %c0_16] : memref<64x128xf32, #tpu.memory_space<vmem>>, vector<64x128xf32>
    tpu.vector_store %arg6[%c0_15, %c0_16], %30 {strides = array<i32>} : memref<64x128xf32, #tpu.memory_space<vmem>>, vector<64x128xf32>,
    return
  }
  func.func @transform_0(%arg0: i32) -> (i32, i32) {
    %c0_i32 = arith.constant 0 : i32
    %c0_i32_0 = arith.constant 0 : i32
    return %arg0, %c0_i32 : i32, i32
  }
  func.func @transform_1(%arg0: i32) -> (i32, i32) {
    %c0_i32 = arith.constant 0 : i32
    %c0_i32_0 = arith.constant 0 : i32
    %c0_i32_1 = arith.constant 0 : i32
    return %c0_i32, %c0_i32_0 : i32, i32
  }
  func.func @transform_2(%arg0: i32) -> (i32, i32) {
    %c0_i32 = arith.constant 0 : i32
    %c0_i32_0 = arith.constant 0 : i32
    %c0_i32_1 = arith.constant 0 : i32
    return %c0_i32, %c0_i32_0 : i32, i32
  }
  func.func @transform_3(%arg0: i32) -> (i32, i32) {
    %c0_i32 = arith.constant 0 : i32
    %c0_i32_0 = arith.constant 0 : i32
    %c0_i32_1 = arith.constant 0 : i32
    return %c0_i32, %c0_i32_0 : i32, i32
  }
  func.func @transform_4(%arg0: i32) -> (i32, i32) {
    %c0_i32 = arith.constant 0 : i32
    %c0_i32_0 = arith.constant 0 : i32
    %c0_i32_1 = arith.constant 0 : i32
    return %c0_i32, %c0_i32_0 : i32, i32
  }
  func.func @transform_5(%arg0: i32) -> (i32, i32) {
    %c0_i32 = arith.constant 0 : i32
    %c0_i32_0 = arith.constant 0 : i32
    return %arg0, %c0_i32 : i32, i32
  }
}

module attributes {stable_mosaic.version = 11 : i64} {
  func.func @_qkv_stats_kernel(%arg0: i32, %arg1: memref<64x128xf32, #tpu.memory_space<vmem>>, %arg2: memref<128x384xbf16, #tpu.memory_space<vmem>>, %arg3: memref<1x384xf32, #tpu.memory_space<vmem>>, %arg4: memref<64x128xf32, #tpu.memory_space<vmem>>, %arg5: memref<64x128xf32, #tpu.memory_space<vmem>>, %arg6: memref<128x128xf32, #tpu.memory_space<vmem>>, %arg7: memref<4x128xf32, #tpu.memory_space<vmem>>) attributes {dimension_semantics = [#tpu.dimension_semantics<arbitrary>], iteration_bounds = array<i64: 2>, scalar_prefetch = 0 : i64, scratch_operands = 0 : i64, tpu.core_type = #tpu.core_type<tc>, window_params = [{transform_indices = @transform_0, window_bounds = array<i64: 64, 128>}, {pipeline_mode = #tpu.pipeline_mode<synchronous>, transform_indices = @transform_1, window_bounds = array<i64: 128, 384>}, {pipeline_mode = #tpu.pipeline_mode<synchronous>, transform_indices = @transform_2, window_bounds = array<i64: 1, 384>}, {transform_indices = @transform_3, window_bounds = array<i64: 64, 128>}, {transform_indices = @transform_4, window_bounds = array<i64: 64, 128>}, {pipeline_mode = #tpu.pipeline_mode<synchronous>, transform_indices = @transform_5, window_bounds = array<i64: 128, 128>}, {pipeline_mode = #tpu.pipeline_mode<synchronous>, transform_indices = @transform_6, window_bounds = array<i64: 4, 128>}]} {
    %c0 = arith.constant 0 : index
    %c0_0 = arith.constant 0 : index
    %0 = vector.load %arg1[%c0, %c0_0] : memref<64x128xf32, #tpu.memory_space<vmem>>, vector<64x128xf32>
    %1 = arith.truncf %0 : vector<64x128xf32> to vector<64x128xbf16>
    %c0_1 = arith.constant 0 : index
    %c0_2 = arith.constant 0 : index
    %2 = vector.load %arg2[%c0_1, %c0_2] : memref<128x384xbf16, #tpu.memory_space<vmem>>, vector<128x384xbf16>
    %cst = arith.constant dense<0.000000e+00> : vector<64x384xf32>
    %3 = tpu.matmul %1, %2, %cst {dimension_numbers = #tpu.dot_dimension_numbers<[1], [0], [0], [1], [0, 0, 1, 1], [], []>} : vector<64x128xbf16>, vector<128x384xbf16>, vector<64x384xf32> -> vector<64x384xf32>
    %c0_3 = arith.constant 0 : index
    %c0_4 = arith.constant 0 : index
    %4 = vector.load %arg3[%c0_3, %c0_4] : memref<1x384xf32, #tpu.memory_space<vmem>>, vector<1x384xf32>
    %5 = vector.broadcast %4 : vector<1x384xf32> to vector<64x384xf32>
    %6 = arith.addf %3, %5 : vector<64x384xf32>
    %7 = vector.extract_strided_slice %6 {offsets = [0, 0], sizes = [64, 128], strides = [1, 1]} : vector<64x384xf32> to vector<64x128xf32>
    %8 = vector.extract_strided_slice %6 {offsets = [0, 128], sizes = [64, 128], strides = [1, 1]} : vector<64x384xf32> to vector<64x128xf32>
    %9 = vector.extract_strided_slice %6 {offsets = [0, 256], sizes = [64, 128], strides = [1, 1]} : vector<64x384xf32> to vector<64x128xf32>
    %c0_5 = arith.constant 0 : index
    %c0_6 = arith.constant 0 : index
    %10 = vector.load %arg4[%c0_5, %c0_6] : memref<64x128xf32, #tpu.memory_space<vmem>>, vector<64x128xf32>
    tpu.vector_store %arg4[%c0_5, %c0_6], %7 {strides = array<i32>} : memref<64x128xf32, #tpu.memory_space<vmem>>, vector<64x128xf32>,
    %c0_7 = arith.constant 0 : index
    %c0_8 = arith.constant 0 : index
    %11 = vector.load %arg5[%c0_7, %c0_8] : memref<64x128xf32, #tpu.memory_space<vmem>>, vector<64x128xf32>
    tpu.vector_store %arg5[%c0_7, %c0_8], %9 {strides = array<i32>} : memref<64x128xf32, #tpu.memory_space<vmem>>, vector<64x128xf32>,
    %c0_i32 = arith.constant 0 : i32
    %12 = arith.cmpi eq, %arg0, %c0_i32 : i32
    %13 = arith.extui %12 : i1 to i32
    %c0_i32_9 = arith.constant 0 : i32
    %14 = arith.cmpi ne, %13, %c0_i32_9 : i32
    scf.if %14 {
      %cst_23 = arith.constant 0.000000e+00 : f32
      %35 = vector.broadcast %cst_23 : f32 to vector<128x128xf32>
      %c0_24 = arith.constant 0 : index
      %c0_25 = arith.constant 0 : index
      %36 = vector.load %arg6[%c0_24, %c0_25] : memref<128x128xf32, #tpu.memory_space<vmem>>, vector<128x128xf32>
      tpu.vector_store %arg6[%c0_24, %c0_25], %35 {strides = array<i32>} : memref<128x128xf32, #tpu.memory_space<vmem>>, vector<128x128xf32>,
      %cst_26 = arith.constant 0.000000e+00 : f32
      %37 = vector.broadcast %cst_26 : f32 to vector<4x128xf32>
      %c0_27 = arith.constant 0 : index
      %c0_28 = arith.constant 0 : index
      %38 = vector.load %arg7[%c0_27, %c0_28] : memref<4x128xf32, #tpu.memory_space<vmem>>, vector<4x128xf32>
      tpu.vector_store %arg7[%c0_27, %c0_28], %37 {strides = array<i32>} : memref<4x128xf32, #tpu.memory_space<vmem>>, vector<4x128xf32>,
    } else {
    }
    %c0_10 = arith.constant 0 : index
    %c0_11 = arith.constant 0 : index
    %15 = vector.load %arg6[%c0_10, %c0_11] : memref<128x128xf32, #tpu.memory_space<vmem>>, vector<128x128xf32>
    %16 = arith.truncf %8 : vector<64x128xf32> to vector<64x128xbf16>
    %17 = arith.truncf %9 : vector<64x128xf32> to vector<64x128xbf16>
    %cst_12 = arith.constant dense<0.000000e+00> : vector<128x128xf32>
    %18 = tpu.matmul %16, %17, %cst_12 {dimension_numbers = #tpu.dot_dimension_numbers<[0], [0], [1], [1], [0, 1, 1, 1], [], []>} : vector<64x128xbf16>, vector<64x128xbf16>, vector<128x128xf32> -> vector<128x128xf32>
    %19 = arith.addf %15, %18 : vector<128x128xf32>
    %c0_13 = arith.constant 0 : index
    %c0_14 = arith.constant 0 : index
    %20 = vector.load %arg6[%c0_13, %c0_14] : memref<128x128xf32, #tpu.memory_space<vmem>>, vector<128x128xf32>
    tpu.vector_store %arg6[%c0_13, %c0_14], %19 {strides = array<i32>} : memref<128x128xf32, #tpu.memory_space<vmem>>, vector<128x128xf32>,
    %c0_15 = arith.constant 0 : index
    %c0_16 = arith.constant 0 : index
    %21 = vector.load %arg7[%c0_15, %c0_16] : memref<4x128xf32, #tpu.memory_space<vmem>>, vector<4x128xf32>
    %cst_17 = arith.constant dense<0.000000e+00> : vector<128xf32>
    %22 = vector.multi_reduction <add>, %8, %cst_17 [0] : vector<64x128xf32> to vector<128xf32>
    %23 = vector.shape_cast %22 : vector<128xf32> to vector<1x128xf32>
    %cst_18 = arith.constant dense<0.000000e+00> : vector<128xf32>
    %24 = vector.multi_reduction <add>, %9, %cst_18 [0] : vector<64x128xf32> to vector<128xf32>
    %25 = vector.shape_cast %24 : vector<128xf32> to vector<1x128xf32>
    %26 = arith.mulf %7, %7 : vector<64x128xf32>
    %cst_19 = arith.constant dense<0.000000e+00> : vector<128xf32>
    %27 = vector.multi_reduction <add>, %26, %cst_19 [0] : vector<64x128xf32> to vector<128xf32>
    %28 = vector.shape_cast %27 : vector<128xf32> to vector<1x128xf32>
    %29 = arith.mulf %8, %8 : vector<64x128xf32>
    %cst_20 = arith.constant dense<0.000000e+00> : vector<128xf32>
    %30 = vector.multi_reduction <add>, %29, %cst_20 [0] : vector<64x128xf32> to vector<128xf32>
    %31 = vector.shape_cast %30 : vector<128xf32> to vector<1x128xf32>
    %32 = tpu.concatenate %23, %25, %28, %31 in 0 : vector<1x128xf32>, vector<1x128xf32>, vector<1x128xf32>, vector<1x128xf32> -> vector<4x128xf32>
    %33 = arith.addf %21, %32 : vector<4x128xf32>
    %c0_21 = arith.constant 0 : index
    %c0_22 = arith.constant 0 : index
    %34 = vector.load %arg7[%c0_21, %c0_22] : memref<4x128xf32, #tpu.memory_space<vmem>>, vector<4x128xf32>
    tpu.vector_store %arg7[%c0_21, %c0_22], %33 {strides = array<i32>} : memref<4x128xf32, #tpu.memory_space<vmem>>, vector<4x128xf32>,
    return
  }
  func.func @transform_0(%arg0: i32) -> (i32, i32) {
    %c0_i32 = arith.constant 0 : i32
    %c0_i32_0 = arith.constant 0 : i32
    return %arg0, %c0_i32 : i32, i32
  }
  func.func @transform_1(%arg0: i32) -> (i32, i32) {
    %c0_i32 = arith.constant 0 : i32
    %c0_i32_0 = arith.constant 0 : i32
    %c0_i32_1 = arith.constant 0 : i32
    return %c0_i32, %c0_i32_0 : i32, i32
  }
  func.func @transform_2(%arg0: i32) -> (i32, i32) {
    %c0_i32 = arith.constant 0 : i32
    %c0_i32_0 = arith.constant 0 : i32
    %c0_i32_1 = arith.constant 0 : i32
    return %c0_i32, %c0_i32_0 : i32, i32
  }
  func.func @transform_3(%arg0: i32) -> (i32, i32) {
    %c0_i32 = arith.constant 0 : i32
    %c0_i32_0 = arith.constant 0 : i32
    return %arg0, %c0_i32 : i32, i32
  }
  func.func @transform_4(%arg0: i32) -> (i32, i32) {
    %c0_i32 = arith.constant 0 : i32
    %c0_i32_0 = arith.constant 0 : i32
    return %arg0, %c0_i32 : i32, i32
  }
  func.func @transform_5(%arg0: i32) -> (i32, i32) {
    %c0_i32 = arith.constant 0 : i32
    %c0_i32_0 = arith.constant 0 : i32
    %c0_i32_1 = arith.constant 0 : i32
    return %c0_i32, %c0_i32_0 : i32, i32
  }
  func.func @transform_6(%arg0: i32) -> (i32, i32) {
    %c0_i32 = arith.constant 0 : i32
    %c0_i32_0 = arith.constant 0 : i32
    %c0_i32_1 = arith.constant 0 : i32
    return %c0_i32, %c0_i32_0 : i32, i32
  }
}

module attributes {stable_mosaic.version = 11 : i64} {
  func.func @_attn_gcn_ln_kernel(%arg0: i32, %arg1: memref<64x128xf32, #tpu.memory_space<vmem>>, %arg2: memref<128x128xf32, #tpu.memory_space<vmem>>, %arg3: memref<128x128xf32, #tpu.memory_space<vmem>>, %arg4: memref<4x128xf32, #tpu.memory_space<vmem>>, %arg5: memref<64x128xbf16, #tpu.memory_space<vmem>>, %arg6: memref<64x128xf32, #tpu.memory_space<vmem>>, %arg7: memref<1x128xf32, #tpu.memory_space<vmem>>, %arg8: memref<1x128xf32, #tpu.memory_space<vmem>>, %arg9: memref<64x128xf32, #tpu.memory_space<vmem>>) attributes {dimension_semantics = [#tpu.dimension_semantics<parallel>], iteration_bounds = array<i64: 2>, scalar_prefetch = 0 : i64, scratch_operands = 0 : i64, tpu.core_type = #tpu.core_type<tc>, window_params = [{transform_indices = @transform_0, window_bounds = array<i64: 64, 128>}, {pipeline_mode = #tpu.pipeline_mode<synchronous>, transform_indices = @transform_1, window_bounds = array<i64: 128, 128>}, {pipeline_mode = #tpu.pipeline_mode<synchronous>, transform_indices = @transform_2, window_bounds = array<i64: 128, 128>}, {pipeline_mode = #tpu.pipeline_mode<synchronous>, transform_indices = @transform_3, window_bounds = array<i64: 4, 128>}, {transform_indices = @transform_4, window_bounds = array<i64: 64, 128>}, {transform_indices = @transform_5, window_bounds = array<i64: 64, 128>}, {pipeline_mode = #tpu.pipeline_mode<synchronous>, transform_indices = @transform_6, window_bounds = array<i64: 1, 128>}, {pipeline_mode = #tpu.pipeline_mode<synchronous>, transform_indices = @transform_7, window_bounds = array<i64: 1, 128>}, {transform_indices = @transform_8, window_bounds = array<i64: 64, 128>}]} {
    %c0 = arith.constant 0 : index
    %c0_0 = arith.constant 0 : index
    %0 = vector.load %arg1[%c0, %c0_0] : memref<64x128xf32, #tpu.memory_space<vmem>>, vector<64x128xf32>
    %c0_1 = arith.constant 0 : index
    %c0_2 = arith.constant 0 : index
    %1 = vector.load %arg2[%c0_1, %c0_2] : memref<128x128xf32, #tpu.memory_space<vmem>>, vector<128x128xf32>
    %c0_3 = arith.constant 0 : index
    %c0_4 = arith.constant 0 : index
    %2 = vector.load %arg4[%c0_3, %c0_4] : memref<4x128xf32, #tpu.memory_space<vmem>>, vector<4x128xf32>
    %3 = vector.extract_strided_slice %2 {offsets = [0, 0], sizes = [1, 128], strides = [1, 1]} : vector<4x128xf32> to vector<1x128xf32>
    %4 = vector.extract_strided_slice %2 {offsets = [1, 0], sizes = [1, 128], strides = [1, 1]} : vector<4x128xf32> to vector<1x128xf32>
    %5 = vector.extract_strided_slice %2 {offsets = [2, 0], sizes = [1, 128], strides = [1, 1]} : vector<4x128xf32> to vector<1x128xf32>
    %cst = arith.constant dense<0.000000e+00> : vector<1xf32>
    %6 = vector.multi_reduction <add>, %5, %cst [1] : vector<1x128xf32> to vector<1xf32>
    %7 = vector.shape_cast %6 : vector<1xf32> to vector<1x1xf32>
    %8 = vector.extract_strided_slice %2 {offsets = [3, 0], sizes = [1, 128], strides = [1, 1]} : vector<4x128xf32> to vector<1x128xf32>
    %cst_5 = arith.constant dense<0.000000e+00> : vector<1xf32>
    %9 = vector.multi_reduction <add>, %8, %cst_5 [1] : vector<1x128xf32> to vector<1xf32>
    %10 = vector.shape_cast %9 : vector<1xf32> to vector<1x1xf32>
    %11 = arith.mulf %7, %10 : vector<1x1xf32>
    %12 = math.rsqrt %11 : vector<1x1xf32>
    %13 = arith.truncf %0 : vector<64x128xf32> to vector<64x128xbf16>
    %c0_6 = arith.constant 0 : index
    %c0_7 = arith.constant 0 : index
    %14 = vector.load %arg3[%c0_6, %c0_7] : memref<128x128xf32, #tpu.memory_space<vmem>>, vector<128x128xf32>
    %15 = arith.truncf %14 : vector<128x128xf32> to vector<128x128xbf16>
    %cst_8 = arith.constant dense<0.000000e+00> : vector<64x128xf32>
    %16 = tpu.matmul %13, %15, %cst_8 {dimension_numbers = #tpu.dot_dimension_numbers<[1], [0], [0], [1], [0, 0, 1, 1], [], []>} : vector<64x128xbf16>, vector<128x128xbf16>, vector<64x128xf32> -> vector<64x128xf32>
    %17 = vector.broadcast %12 : vector<1x1xf32> to vector<64x128xf32>
    %18 = arith.mulf %16, %17 : vector<64x128xf32>
    %19 = vector.broadcast %4 : vector<1x128xf32> to vector<64x128xf32>
    %20 = arith.addf %18, %19 : vector<64x128xf32>
    %21 = vector.broadcast %3 : vector<1x128xf32> to vector<64x128xf32>
    %22 = arith.mulf %0, %21 : vector<64x128xf32>
    %cst_9 = arith.constant dense<0.000000e+00> : vector<64xf32>
    %23 = vector.multi_reduction <add>, %22, %cst_9 [1] : vector<64x128xf32> to vector<64xf32>
    %24 = vector.shape_cast %23 : vector<64xf32> to vector<64x1xf32>
    %25 = vector.broadcast %12 : vector<1x1xf32> to vector<64x1xf32>
    %26 = arith.mulf %24, %25 : vector<64x1xf32>
    %cst_10 = arith.constant 1.280000e+02 : f32
    %27 = vector.broadcast %cst_10 : f32 to vector<64x1xf32>
    %28 = arith.addf %26, %27 : vector<64x1xf32>
    %29 = tpu.reciprocal %28 {approx = true} : vector<64x1xf32> -> vector<64x1xf32>
    %30 = vector.broadcast %29 : vector<64x1xf32> to vector<64x128xf32>
    %31 = arith.mulf %20, %30 : vector<64x128xf32>
    %c0_11 = arith.constant 0 : index
    %c0_12 = arith.constant 0 : index
    %32 = vector.load %arg5[%c0_11, %c0_12] : memref<64x128xbf16, #tpu.memory_space<vmem>>, vector<64x128xbf16>
    %33 = arith.truncf %1 : vector<128x128xf32> to vector<128x128xbf16>
    %cst_13 = arith.constant dense<0.000000e+00> : vector<64x128xf32>
    %34 = tpu.matmul %32, %33, %cst_13 {dimension_numbers = #tpu.dot_dimension_numbers<[1], [0], [0], [1], [0, 0, 1, 1], [], []>} : vector<64x128xbf16>, vector<128x128xbf16>, vector<64x128xf32> -> vector<64x128xf32>
    %35 = arith.addf %31, %34 : vector<64x128xf32>
    %cst_14 = arith.constant 5.000000e-01 : f32
    %36 = vector.broadcast %cst_14 : f32 to vector<64x128xf32>
    %37 = arith.mulf %36, %35 : vector<64x128xf32>
    %c0_15 = arith.constant 0 : index
    %c0_16 = arith.constant 0 : index
    %38 = vector.load %arg6[%c0_15, %c0_16] : memref<64x128xf32, #tpu.memory_space<vmem>>, vector<64x128xf32>
    %cst_17 = arith.constant 5.000000e-01 : f32
    %39 = vector.broadcast %cst_17 : f32 to vector<64x128xf32>
    %40 = arith.mulf %39, %38 : vector<64x128xf32>
    %41 = arith.addf %37, %40 : vector<64x128xf32>
    %cst_18 = arith.constant dense<0.000000e+00> : vector<64xf32>
    %42 = vector.multi_reduction <add>, %41, %cst_18 [1] : vector<64x128xf32> to vector<64xf32>
    %43 = vector.shape_cast %42 : vector<64xf32> to vector<64x1xf32>
    %cst_19 = arith.constant 1.280000e+02 : f32
    %44 = vector.broadcast %cst_19 : f32 to vector<64x1xf32>
    %45 = arith.divf %43, %44 : vector<64x1xf32>
    %46 = vector.broadcast %45 : vector<64x1xf32> to vector<64x128xf32>
    %47 = arith.subf %41, %46 : vector<64x128xf32>
    %48 = arith.mulf %47, %47 : vector<64x128xf32>
    %cst_20 = arith.constant dense<0.000000e+00> : vector<64xf32>
    %49 = vector.multi_reduction <add>, %48, %cst_20 [1] : vector<64x128xf32> to vector<64xf32>
    %50 = vector.shape_cast %49 : vector<64xf32> to vector<64x1xf32>
    %cst_21 = arith.constant 1.280000e+02 : f32
    %51 = vector.broadcast %cst_21 : f32 to vector<64x1xf32>
    %52 = arith.divf %50, %51 : vector<64x1xf32>
    %cst_22 = arith.constant 9.99999974E-6 : f32
    %53 = vector.broadcast %cst_22 : f32 to vector<64x1xf32>
    %54 = arith.addf %52, %53 : vector<64x1xf32>
    %55 = math.rsqrt %54 : vector<64x1xf32>
    %56 = vector.broadcast %55 : vector<64x1xf32> to vector<64x128xf32>
    %57 = arith.mulf %47, %56 : vector<64x128xf32>
    %c0_23 = arith.constant 0 : index
    %c0_24 = arith.constant 0 : index
    %58 = vector.load %arg7[%c0_23, %c0_24] : memref<1x128xf32, #tpu.memory_space<vmem>>, vector<1x128xf32>
    %59 = vector.broadcast %58 : vector<1x128xf32> to vector<64x128xf32>
    %60 = arith.mulf %57, %59 : vector<64x128xf32>
    %c0_25 = arith.constant 0 : index
    %c0_26 = arith.constant 0 : index
    %61 = vector.load %arg8[%c0_25, %c0_26] : memref<1x128xf32, #tpu.memory_space<vmem>>, vector<1x128xf32>
    %62 = vector.broadcast %61 : vector<1x128xf32> to vector<64x128xf32>
    %63 = arith.addf %60, %62 : vector<64x128xf32>
    %c0_27 = arith.constant 0 : index
    %c0_28 = arith.constant 0 : index
    %64 = vector.load %arg9[%c0_27, %c0_28] : memref<64x128xf32, #tpu.memory_space<vmem>>, vector<64x128xf32>
    tpu.vector_store %arg9[%c0_27, %c0_28], %63 {strides = array<i32>} : memref<64x128xf32, #tpu.memory_space<vmem>>, vector<64x128xf32>,
    return
  }
  func.func @transform_0(%arg0: i32) -> (i32, i32) {
    %c0_i32 = arith.constant 0 : i32
    %c0_i32_0 = arith.constant 0 : i32
    return %arg0, %c0_i32 : i32, i32
  }
  func.func @transform_1(%arg0: i32) -> (i32, i32) {
    %c0_i32 = arith.constant 0 : i32
    %c0_i32_0 = arith.constant 0 : i32
    %c0_i32_1 = arith.constant 0 : i32
    return %c0_i32, %c0_i32_0 : i32, i32
  }
  func.func @transform_2(%arg0: i32) -> (i32, i32) {
    %c0_i32 = arith.constant 0 : i32
    %c0_i32_0 = arith.constant 0 : i32
    %c0_i32_1 = arith.constant 0 : i32
    return %c0_i32, %c0_i32_0 : i32, i32
  }
  func.func @transform_3(%arg0: i32) -> (i32, i32) {
    %c0_i32 = arith.constant 0 : i32
    %c0_i32_0 = arith.constant 0 : i32
    %c0_i32_1 = arith.constant 0 : i32
    return %c0_i32, %c0_i32_0 : i32, i32
  }
  func.func @transform_4(%arg0: i32) -> (i32, i32) {
    %c0_i32 = arith.constant 0 : i32
    %c0_i32_0 = arith.constant 0 : i32
    return %arg0, %c0_i32 : i32, i32
  }
  func.func @transform_5(%arg0: i32) -> (i32, i32) {
    %c0_i32 = arith.constant 0 : i32
    %c0_i32_0 = arith.constant 0 : i32
    return %arg0, %c0_i32 : i32, i32
  }
  func.func @transform_6(%arg0: i32) -> (i32, i32) {
    %c0_i32 = arith.constant 0 : i32
    %c0_i32_0 = arith.constant 0 : i32
    %c0_i32_1 = arith.constant 0 : i32
    return %c0_i32, %c0_i32_0 : i32, i32
  }
  func.func @transform_7(%arg0: i32) -> (i32, i32) {
    %c0_i32 = arith.constant 0 : i32
    %c0_i32_0 = arith.constant 0 : i32
    %c0_i32_1 = arith.constant 0 : i32
    return %c0_i32, %c0_i32_0 : i32, i32
  }
  func.func @transform_8(%arg0: i32) -> (i32, i32) {
    %c0_i32 = arith.constant 0 : i32
    %c0_i32_0 = arith.constant 0 : i32
    return %arg0, %c0_i32 : i32, i32
  }
}

module attributes {stable_mosaic.version = 11 : i64} {
  func.func @_linear_kernel(%arg0: i32, %arg1: memref<64x128xf32, #tpu.memory_space<vmem>>, %arg2: memref<128x128xbf16, #tpu.memory_space<vmem>>, %arg3: memref<1x128xf32, #tpu.memory_space<vmem>>, %arg4: memref<64x128xf32, #tpu.memory_space<vmem>>) attributes {dimension_semantics = [#tpu.dimension_semantics<parallel>], iteration_bounds = array<i64: 2>, scalar_prefetch = 0 : i64, scratch_operands = 0 : i64, tpu.core_type = #tpu.core_type<tc>, window_params = [{transform_indices = @transform_0, window_bounds = array<i64: 64, 128>}, {pipeline_mode = #tpu.pipeline_mode<synchronous>, transform_indices = @transform_1, window_bounds = array<i64: 128, 128>}, {pipeline_mode = #tpu.pipeline_mode<synchronous>, transform_indices = @transform_2, window_bounds = array<i64: 1, 128>}, {transform_indices = @transform_3, window_bounds = array<i64: 64, 128>}]} {
    %c0 = arith.constant 0 : index
    %c0_0 = arith.constant 0 : index
    %0 = vector.load %arg1[%c0, %c0_0] : memref<64x128xf32, #tpu.memory_space<vmem>>, vector<64x128xf32>
    %1 = arith.truncf %0 : vector<64x128xf32> to vector<64x128xbf16>
    %c0_1 = arith.constant 0 : index
    %c0_2 = arith.constant 0 : index
    %2 = vector.load %arg2[%c0_1, %c0_2] : memref<128x128xbf16, #tpu.memory_space<vmem>>, vector<128x128xbf16>
    %cst = arith.constant dense<0.000000e+00> : vector<64x128xf32>
    %3 = tpu.matmul %1, %2, %cst {dimension_numbers = #tpu.dot_dimension_numbers<[1], [0], [0], [1], [0, 0, 1, 1], [], []>} : vector<64x128xbf16>, vector<128x128xbf16>, vector<64x128xf32> -> vector<64x128xf32>
    %c0_3 = arith.constant 0 : index
    %c0_4 = arith.constant 0 : index
    %4 = vector.load %arg3[%c0_3, %c0_4] : memref<1x128xf32, #tpu.memory_space<vmem>>, vector<1x128xf32>
    %5 = vector.broadcast %4 : vector<1x128xf32> to vector<64x128xf32>
    %6 = arith.addf %3, %5 : vector<64x128xf32>
    %c0_5 = arith.constant 0 : index
    %c0_6 = arith.constant 0 : index
    %7 = vector.load %arg4[%c0_5, %c0_6] : memref<64x128xf32, #tpu.memory_space<vmem>>, vector<64x128xf32>
    tpu.vector_store %arg4[%c0_5, %c0_6], %6 {strides = array<i32>} : memref<64x128xf32, #tpu.memory_space<vmem>>, vector<64x128xf32>,
    return
  }
  func.func @transform_0(%arg0: i32) -> (i32, i32) {
    %c0_i32 = arith.constant 0 : i32
    %c0_i32_0 = arith.constant 0 : i32
    return %arg0, %c0_i32 : i32, i32
  }
  func.func @transform_1(%arg0: i32) -> (i32, i32) {
    %c0_i32 = arith.constant 0 : i32
    %c0_i32_0 = arith.constant 0 : i32
    %c0_i32_1 = arith.constant 0 : i32
    return %c0_i32, %c0_i32_0 : i32, i32
  }
  func.func @transform_2(%arg0: i32) -> (i32, i32) {
    %c0_i32 = arith.constant 0 : i32
    %c0_i32_0 = arith.constant 0 : i32
    %c0_i32_1 = arith.constant 0 : i32
    return %c0_i32, %c0_i32_0 : i32, i32
  }
  func.func @transform_3(%arg0: i32) -> (i32, i32) {
    %c0_i32 = arith.constant 0 : i32
    %c0_i32_0 = arith.constant 0 : i32
    return %arg0, %c0_i32 : i32, i32
  }
}

module attributes {stable_mosaic.version = 11 : i64} {
  func.func @_pool_mlp_kernel(%arg0: memref<2x128xf32, #tpu.memory_space<vmem>>, %arg1: memref<128x128xf32, #tpu.memory_space<vmem>>, %arg2: memref<2x1xf32, #tpu.memory_space<vmem>>, %arg3: memref<128x8xbf16, #tpu.memory_space<vmem>>, %arg4: memref<1x8xf32, #tpu.memory_space<vmem>>, %arg5: memref<2x128xf32, #tpu.memory_space<vmem>>, %arg6: memref<2x8xf32, #tpu.memory_space<vmem>>) attributes {dimension_semantics = [], scalar_prefetch = 0 : i64, scratch_operands = 0 : i64, tpu.core_type = #tpu.core_type<tc>} {
    %c0 = arith.constant 0 : index
    %c0_0 = arith.constant 0 : index
    %0 = vector.load %arg0[%c0, %c0_0] : memref<2x128xf32, #tpu.memory_space<vmem>>, vector<2x128xf32>
    %c0_1 = arith.constant 0 : index
    %c0_2 = arith.constant 0 : index
    %1 = vector.load %arg1[%c0_1, %c0_2] : memref<128x128xf32, #tpu.memory_space<vmem>>, vector<128x128xf32>
    %cst = arith.constant dense<0.000000e+00> : vector<2x128xf32>
    %2 = tpu.matmul %0, %1, %cst {dimension_numbers = #tpu.dot_dimension_numbers<[1], [0], [0], [1], [0, 0, 1, 1], [], []>} : vector<2x128xf32>, vector<128x128xf32>, vector<2x128xf32> -> vector<2x128xf32>
    %c0_3 = arith.constant 0 : index
    %c0_4 = arith.constant 0 : index
    %3 = vector.load %arg2[%c0_3, %c0_4] : memref<2x1xf32, #tpu.memory_space<vmem>>, vector<2x1xf32>
    %4 = vector.broadcast %3 : vector<2x1xf32> to vector<2x128xf32>
    %5 = arith.divf %2, %4 : vector<2x128xf32>
    %c0_5 = arith.constant 0 : index
    %c0_6 = arith.constant 0 : index
    %6 = vector.load %arg5[%c0_5, %c0_6] : memref<2x128xf32, #tpu.memory_space<vmem>>, vector<2x128xf32>
    tpu.vector_store %arg5[%c0_5, %c0_6], %5 {strides = array<i32>} : memref<2x128xf32, #tpu.memory_space<vmem>>, vector<2x128xf32>,
    %7 = arith.truncf %5 : vector<2x128xf32> to vector<2x128xbf16>
    %c0_7 = arith.constant 0 : index
    %c0_8 = arith.constant 0 : index
    %8 = vector.load %arg3[%c0_7, %c0_8] : memref<128x8xbf16, #tpu.memory_space<vmem>>, vector<128x8xbf16>
    %cst_9 = arith.constant dense<0.000000e+00> : vector<2x8xf32>
    %9 = tpu.matmul %7, %8, %cst_9 {dimension_numbers = #tpu.dot_dimension_numbers<[1], [0], [0], [1], [0, 0, 1, 1], [], []>} : vector<2x128xbf16>, vector<128x8xbf16>, vector<2x8xf32> -> vector<2x8xf32>
    %c0_10 = arith.constant 0 : index
    %c0_11 = arith.constant 0 : index
    %10 = vector.load %arg4[%c0_10, %c0_11] : memref<1x8xf32, #tpu.memory_space<vmem>>, vector<1x8xf32>
    %11 = vector.broadcast %10 : vector<1x8xf32> to vector<2x8xf32>
    %12 = arith.addf %9, %11 : vector<2x8xf32>
    %13 = math.absf %12 : vector<2x8xf32>
    %cst_12 = arith.constant 0.000000e+00 : f32
    %14 = vector.broadcast %cst_12 : f32 to vector<2x8xf32>
    %15 = arith.subf %14, %13 : vector<2x8xf32>
    %16 = math.exp %15 : vector<2x8xf32>
    %cst_13 = arith.constant 0.000000e+00 : f32
    %17 = vector.broadcast %cst_13 : f32 to vector<2x8xf32>
    %18 = arith.cmpf oge, %12, %17 : vector<2x8xf32>
    %cst_14 = arith.constant 1.000000e+00 : f32
    %19 = vector.broadcast %cst_14 : f32 to vector<2x8xf32>
    %20 = arith.addf %19, %16 : vector<2x8xf32>
    %cst_15 = arith.constant 1.000000e+00 : f32
    %21 = vector.broadcast %cst_15 : f32 to vector<2x8xf32>
    %22 = arith.divf %21, %20 : vector<2x8xf32>
    %cst_16 = arith.constant 1.000000e+00 : f32
    %23 = vector.broadcast %cst_16 : f32 to vector<2x8xf32>
    %24 = arith.addf %23, %16 : vector<2x8xf32>
    %25 = arith.divf %16, %24 : vector<2x8xf32>
    %26 = arith.select %18, %22, %25 : vector<2x8xi1>, vector<2x8xf32>
    %c0_17 = arith.constant 0 : index
    %c0_18 = arith.constant 0 : index
    %27 = vector.load %arg6[%c0_17, %c0_18] : memref<2x8xf32, #tpu.memory_space<vmem>>, vector<2x8xf32>
    tpu.vector_store %arg6[%c0_17, %c0_18], %26 {strides = array<i32>} : memref<2x8xf32, #tpu.memory_space<vmem>>, vector<2x8xf32>,
    return
  }
}

module attributes {stable_mosaic.version = 11 : i64} {
  func.func @_linear_ln_kernel(%arg0: i32, %arg1: memref<64x128xf32, #tpu.memory_space<vmem>>, %arg2: memref<128x128xbf16, #tpu.memory_space<vmem>>, %arg3: memref<1x128xf32, #tpu.memory_space<vmem>>, %arg4: memref<1x128xf32, #tpu.memory_space<vmem>>, %arg5: memref<1x128xf32, #tpu.memory_space<vmem>>, %arg6: memref<64x128xf32, #tpu.memory_space<vmem>>) attributes {dimension_semantics = [#tpu.dimension_semantics<parallel>], iteration_bounds = array<i64: 2>, scalar_prefetch = 0 : i64, scratch_operands = 0 : i64, tpu.core_type = #tpu.core_type<tc>, window_params = [{transform_indices = @transform_0, window_bounds = array<i64: 64, 128>}, {pipeline_mode = #tpu.pipeline_mode<synchronous>, transform_indices = @transform_1, window_bounds = array<i64: 128, 128>}, {pipeline_mode = #tpu.pipeline_mode<synchronous>, transform_indices = @transform_2, window_bounds = array<i64: 1, 128>}, {pipeline_mode = #tpu.pipeline_mode<synchronous>, transform_indices = @transform_3, window_bounds = array<i64: 1, 128>}, {pipeline_mode = #tpu.pipeline_mode<synchronous>, transform_indices = @transform_4, window_bounds = array<i64: 1, 128>}, {transform_indices = @transform_5, window_bounds = array<i64: 64, 128>}]} {
    %c0 = arith.constant 0 : index
    %c0_0 = arith.constant 0 : index
    %0 = vector.load %arg1[%c0, %c0_0] : memref<64x128xf32, #tpu.memory_space<vmem>>, vector<64x128xf32>
    %1 = arith.truncf %0 : vector<64x128xf32> to vector<64x128xbf16>
    %c0_1 = arith.constant 0 : index
    %c0_2 = arith.constant 0 : index
    %2 = vector.load %arg2[%c0_1, %c0_2] : memref<128x128xbf16, #tpu.memory_space<vmem>>, vector<128x128xbf16>
    %cst = arith.constant dense<0.000000e+00> : vector<64x128xf32>
    %3 = tpu.matmul %1, %2, %cst {dimension_numbers = #tpu.dot_dimension_numbers<[1], [0], [0], [1], [0, 0, 1, 1], [], []>} : vector<64x128xbf16>, vector<128x128xbf16>, vector<64x128xf32> -> vector<64x128xf32>
    %c0_3 = arith.constant 0 : index
    %c0_4 = arith.constant 0 : index
    %4 = vector.load %arg3[%c0_3, %c0_4] : memref<1x128xf32, #tpu.memory_space<vmem>>, vector<1x128xf32>
    %5 = vector.broadcast %4 : vector<1x128xf32> to vector<64x128xf32>
    %6 = arith.addf %3, %5 : vector<64x128xf32>
    %cst_5 = arith.constant dense<0.000000e+00> : vector<64xf32>
    %7 = vector.multi_reduction <add>, %6, %cst_5 [1] : vector<64x128xf32> to vector<64xf32>
    %8 = vector.shape_cast %7 : vector<64xf32> to vector<64x1xf32>
    %cst_6 = arith.constant 1.280000e+02 : f32
    %9 = vector.broadcast %cst_6 : f32 to vector<64x1xf32>
    %10 = arith.divf %8, %9 : vector<64x1xf32>
    %11 = vector.broadcast %10 : vector<64x1xf32> to vector<64x128xf32>
    %12 = arith.subf %6, %11 : vector<64x128xf32>
    %13 = arith.mulf %12, %12 : vector<64x128xf32>
    %cst_7 = arith.constant dense<0.000000e+00> : vector<64xf32>
    %14 = vector.multi_reduction <add>, %13, %cst_7 [1] : vector<64x128xf32> to vector<64xf32>
    %15 = vector.shape_cast %14 : vector<64xf32> to vector<64x1xf32>
    %cst_8 = arith.constant 1.280000e+02 : f32
    %16 = vector.broadcast %cst_8 : f32 to vector<64x1xf32>
    %17 = arith.divf %15, %16 : vector<64x1xf32>
    %cst_9 = arith.constant 9.99999974E-6 : f32
    %18 = vector.broadcast %cst_9 : f32 to vector<64x1xf32>
    %19 = arith.addf %17, %18 : vector<64x1xf32>
    %20 = math.rsqrt %19 : vector<64x1xf32>
    %21 = vector.broadcast %20 : vector<64x1xf32> to vector<64x128xf32>
    %22 = arith.mulf %12, %21 : vector<64x128xf32>
    %c0_10 = arith.constant 0 : index
    %c0_11 = arith.constant 0 : index
    %23 = vector.load %arg4[%c0_10, %c0_11] : memref<1x128xf32, #tpu.memory_space<vmem>>, vector<1x128xf32>
    %24 = vector.broadcast %23 : vector<1x128xf32> to vector<64x128xf32>
    %25 = arith.mulf %22, %24 : vector<64x128xf32>
    %c0_12 = arith.constant 0 : index
    %c0_13 = arith.constant 0 : index
    %26 = vector.load %arg5[%c0_12, %c0_13] : memref<1x128xf32, #tpu.memory_space<vmem>>, vector<1x128xf32>
    %27 = vector.broadcast %26 : vector<1x128xf32> to vector<64x128xf32>
    %28 = arith.addf %25, %27 : vector<64x128xf32>
    %cst_14 = arith.constant 0.000000e+00 : f32
    %29 = vector.broadcast %cst_14 : f32 to vector<64x128xf32>
    %30 = arith.maximumf %28, %29 : vector<64x128xf32>
    %c0_15 = arith.constant 0 : index
    %c0_16 = arith.constant 0 : index
    %31 = vector.load %arg6[%c0_15, %c0_16] : memref<64x128xf32, #tpu.memory_space<vmem>>, vector<64x128xf32>
    tpu.vector_store %arg6[%c0_15, %c0_16], %30 {strides = array<i32>} : memref<64x128xf32, #tpu.memory_space<vmem>>, vector<64x128xf32>,
    return
  }
  func.func @transform_0(%arg0: i32) -> (i32, i32) {
    %c0_i32 = arith.constant 0 : i32
    %c0_i32_0 = arith.constant 0 : i32
    return %arg0, %c0_i32 : i32, i32
  }
  func.func @transform_1(%arg0: i32) -> (i32, i32) {
    %c0_i32 = arith.constant 0 : i32
    %c0_i32_0 = arith.constant 0 : i32
    %c0_i32_1 = arith.constant 0 : i32
    return %c0_i32, %c0_i32_0 : i32, i32
  }
  func.func @transform_2(%arg0: i32) -> (i32, i32) {
    %c0_i32 = arith.constant 0 : i32
    %c0_i32_0 = arith.constant 0 : i32
    %c0_i32_1 = arith.constant 0 : i32
    return %c0_i32, %c0_i32_0 : i32, i32
  }
  func.func @transform_3(%arg0: i32) -> (i32, i32) {
    %c0_i32 = arith.constant 0 : i32
    %c0_i32_0 = arith.constant 0 : i32
    %c0_i32_1 = arith.constant 0 : i32
    return %c0_i32, %c0_i32_0 : i32, i32
  }
  func.func @transform_4(%arg0: i32) -> (i32, i32) {
    %c0_i32 = arith.constant 0 : i32
    %c0_i32_0 = arith.constant 0 : i32
    %c0_i32_1 = arith.constant 0 : i32
    return %c0_i32, %c0_i32_0 : i32, i32
  }
  func.func @transform_5(%arg0: i32) -> (i32, i32) {
    %c0_i32 = arith.constant 0 : i32
    %c0_i32_0 = arith.constant 0 : i32
    return %arg0, %c0_i32 : i32, i32
  }
}

module attributes {stable_mosaic.version = 11 : i64} {
  func.func @_linear_kernel(%arg0: i32, %arg1: memref<64x128xf32, #tpu.memory_space<vmem>>, %arg2: memref<128x16xbf16, #tpu.memory_space<vmem>>, %arg3: memref<1x16xf32, #tpu.memory_space<vmem>>, %arg4: memref<64x16xf32, #tpu.memory_space<vmem>>) attributes {dimension_semantics = [#tpu.dimension_semantics<parallel>], iteration_bounds = array<i64: 2>, scalar_prefetch = 0 : i64, scratch_operands = 0 : i64, tpu.core_type = #tpu.core_type<tc>, window_params = [{transform_indices = @transform_0, window_bounds = array<i64: 64, 128>}, {pipeline_mode = #tpu.pipeline_mode<synchronous>, transform_indices = @transform_1, window_bounds = array<i64: 128, 16>}, {pipeline_mode = #tpu.pipeline_mode<synchronous>, transform_indices = @transform_2, window_bounds = array<i64: 1, 16>}, {transform_indices = @transform_3, window_bounds = array<i64: 64, 16>}]} {
    %c0 = arith.constant 0 : index
    %c0_0 = arith.constant 0 : index
    %0 = vector.load %arg1[%c0, %c0_0] : memref<64x128xf32, #tpu.memory_space<vmem>>, vector<64x128xf32>
    %1 = arith.truncf %0 : vector<64x128xf32> to vector<64x128xbf16>
    %c0_1 = arith.constant 0 : index
    %c0_2 = arith.constant 0 : index
    %2 = vector.load %arg2[%c0_1, %c0_2] : memref<128x16xbf16, #tpu.memory_space<vmem>>, vector<128x16xbf16>
    %cst = arith.constant dense<0.000000e+00> : vector<64x16xf32>
    %3 = tpu.matmul %1, %2, %cst {dimension_numbers = #tpu.dot_dimension_numbers<[1], [0], [0], [1], [0, 0, 1, 1], [], []>} : vector<64x128xbf16>, vector<128x16xbf16>, vector<64x16xf32> -> vector<64x16xf32>
    %c0_3 = arith.constant 0 : index
    %c0_4 = arith.constant 0 : index
    %4 = vector.load %arg3[%c0_3, %c0_4] : memref<1x16xf32, #tpu.memory_space<vmem>>, vector<1x16xf32>
    %5 = vector.broadcast %4 : vector<1x16xf32> to vector<64x16xf32>
    %6 = arith.addf %3, %5 : vector<64x16xf32>
    %c0_5 = arith.constant 0 : index
    %c0_6 = arith.constant 0 : index
    %7 = vector.load %arg4[%c0_5, %c0_6] : memref<64x16xf32, #tpu.memory_space<vmem>>, vector<64x16xf32>
    tpu.vector_store %arg4[%c0_5, %c0_6], %6 {strides = array<i32>} : memref<64x16xf32, #tpu.memory_space<vmem>>, vector<64x16xf32>,
    return
  }
  func.func @transform_0(%arg0: i32) -> (i32, i32) {
    %c0_i32 = arith.constant 0 : i32
    %c0_i32_0 = arith.constant 0 : i32
    return %arg0, %c0_i32 : i32, i32
  }
  func.func @transform_1(%arg0: i32) -> (i32, i32) {
    %c0_i32 = arith.constant 0 : i32
    %c0_i32_0 = arith.constant 0 : i32
    %c0_i32_1 = arith.constant 0 : i32
    return %c0_i32, %c0_i32_0 : i32, i32
  }
  func.func @transform_2(%arg0: i32) -> (i32, i32) {
    %c0_i32 = arith.constant 0 : i32
    %c0_i32_0 = arith.constant 0 : i32
    %c0_i32_1 = arith.constant 0 : i32
    return %c0_i32, %c0_i32_0 : i32, i32
  }
  func.func @transform_3(%arg0: i32) -> (i32, i32) {
    %c0_i32 = arith.constant 0 : i32
    %c0_i32_0 = arith.constant 0 : i32
    return %arg0, %c0_i32 : i32, i32
  }
}

</mosaic_0001>

<llo_original>
// kernel: main_model_forward.13
$region0: #{main_model_forward.13}
  #allocation0 [shape = 'u32[]', space=smem, size = 0x4, offset = 0x4, fixed_abs, tag = 'smem constant byte address 0x4 - core index']
  #allocation1 [shape = 'u32[72,128]{1,0:T(1,128)}', space=vmem, size = 0x9000, scoped, tag = 'internal scratch']
  %s0 = inlined_call_operand.vmem [shape: f32[128,16], index: 0, kind: input, shape index: {}]
  %s1 = inlined_call_operand.vmem [shape: bf16[16,128], index: 1, kind: input, shape index: {}]
  %s2 = inlined_call_operand.vmem [shape: f32[1,128], index: 2, kind: input, shape index: {}]
  %s3 = inlined_call_operand.vmem [shape: f32[1,128], index: 3, kind: input, shape index: {}]
  %s4 = inlined_call_operand.vmem [shape: f32[1,128], index: 4, kind: input, shape index: {}]
  %s5 = inlined_call_operand.vmem [shape: f32[128,128], index: 5, kind: output, shape index: {}]
  %s6 = sld [smem:[#allocation0]]
  $region53: #{main_model_forward.13} parent=0
    _
  %s8 = ssub.s32 1, %s6
  %s9 = scalar_select 0, %s8, %s6
  loop: start=0, step=1, limit=4
  $region2: #{main_model_forward.13} parent=0 // loop_pre_header
    _
  $region3: #{main_model_forward.13} parent=0 // loop_header
    %s11 = sphi 0, %s15
    %p12 = scmp.ge.s32.totalorder %s11, 4
    %s21 = sphi 0, %s23
    %s24 = sphi 0, %s21
    %s25 = sphi 0, %s24
    %s41 = sphi 0, %s25
    %s45 = sphi 0, %s45
    %s47 = sphi 0, %s45
    %s48 = sphi 0, %s47
    %s62 = sphi 0, %s48
    %s66 = sphi 0, %s66
    %s68 = sphi 0, %s66
    %s69 = sphi 0, %s68
    %s83 = sphi 0, %s69
    %s87 = sphi 0, %s87
    %s89 = sphi 0, %s87
    %s90 = sphi 0, %s89
    %s104 = sphi 0, %s90
    %s108 = sphi 0, %s108
    %s110 = sphi 0, %s108
    %s111 = sphi 0, %s110
    %s125 = sphi 0, %s111
    %s131 = sphi 0, %s133
    %s134 = sphi 0, %s131
    %s135 = sphi 0, %s134
    %s151 = sphi 0, %s135
  $region4: #{main_model_forward.13} parent=0 // loop_header_branch
    %14 = sbr.rel (%p12) target = $region8
  $region5: #{main_model_forward.13} parent=0 // loop_body
    %s16 = ssub.s32 %s11, 1
    %s17 = ssub.s32 %s11, 2
    %s18 = sadd.s32 %s11, 1
    %s19 = ssub.s32 %s11, %s18
    %p20 = scmp.eq.s32.totalorder %s19, 0
    %s22 = sadd.s32 %s21, 1
    %s23 = scalar_select %p20, %s21, %s22
    %p26 = pneg %p20
    %p27 = scmp.eq.s32.totalorder %s11, 1
    %p28 = por %p26, %p27
    %p29 = scmp.ne.s32.totalorder %s21, %s24
    %p30 = scmp.eq.s32.totalorder %s11, 0
    %p31 = por %p29, %p30
    %p32 = scmp.ne.s32.totalorder %s21, %s24
    %p33 = scmp.eq.s32.totalorder %s16, 1
    %p34 = por %p32, %p33
    %p35 = scmp.ne.s32.totalorder %s24, %s25
    %p36 = scmp.eq.s32.totalorder %s16, 0
    %p37 = por %p35, %p36
    %p38 = scmp.ne.s32.totalorder %s24, %s25
    %p39 = scmp.eq.s32.totalorder %s17, 1
    %p40 = por %p38, %p39
    %p42 = scmp.ne.s32.totalorder %s25, %s41
    %p43 = scmp.eq.s32.totalorder %s17, 0
    %p44 = por %p42, %p43
    %s46 = sadd.s32 %s45, 1
    %p49 = scmp.eq.s32.totalorder %s11, 1
    %p50 = scmp.ne.s32.totalorder %s45, %s47
    %p51 = scmp.eq.s32.totalorder %s11, 0
    %p52 = por %p50, %p51
    %p53 = scmp.ne.s32.totalorder %s45, %s47
    %p54 = scmp.eq.s32.totalorder %s16, 1
    %p55 = por %p53, %p54
    %p56 = scmp.ne.s32.totalorder %s47, %s48
    %p57 = scmp.eq.s32.totalorder %s16, 0
    %p58 = por %p56, %p57
    %p59 = scmp.ne.s32.totalorder %s47, %s48
    %p60 = scmp.eq.s32.totalorder %s17, 1
    %p61 = por %p59, %p60
    %p63 = scmp.ne.s32.totalorder %s48, %s62
    %p64 = scmp.eq.s32.totalorder %s17, 0
    %p65 = por %p63, %p64
    %s67 = sadd.s32 %s66, 1
    %p70 = scmp.eq.s32.totalorder %s11, 1
    %p71 = scmp.ne.s32.totalorder %s66, %s68
    %p72 = scmp.eq.s32.totalorder %s11, 0
    %p73 = por %p71, %p72
    %p74 = scmp.ne.s32.totalorder %s66, %s68
    %p75 = scmp.eq.s32.totalorder %s16, 1
    %p76 = por %p74, %p75
    %p77 = scmp.ne.s32.totalorder %s68, %s69
    %p78 = scmp.eq.s32.totalorder %s16, 0
    %p79 = por %p77, %p78
    %p80 = scmp.ne.s32.totalorder %s68, %s69
    %p81 = scmp.eq.s32.totalorder %s17, 1
    %p82 = por %p80, %p81
    %p84 = scmp.ne.s32.totalorder %s69, %s83
    %p85 = scmp.eq.s32.totalorder %s17, 0
    %p86 = por %p84, %p85
    %s88 = sadd.s32 %s87, 1
    %p91 = scmp.eq.s32.totalorder %s11, 1
    %p92 = scmp.ne.s32.totalorder %s87, %s89
    %p93 = scmp.eq.s32.totalorder %s11, 0
    %p94 = por %p92, %p93
    %p95 = scmp.ne.s32.totalorder %s87, %s89
    %p96 = scmp.eq.s32.totalorder %s16, 1
    %p97 = por %p95, %p96
    %p98 = scmp.ne.s32.totalorder %s89, %s90
    %p99 = scmp.eq.s32.totalorder %s16, 0
    %p100 = por %p98, %p99
    %p101 = scmp.ne.s32.totalorder %s89, %s90
    %p102 = scmp.eq.s32.totalorder %s17, 1
    %p103 = por %p101, %p102
    %p105 = scmp.ne.s32.totalorder %s90, %s104
    %p106 = scmp.eq.s32.totalorder %s17, 0
    %p107 = por %p105, %p106
    %s109 = sadd.s32 %s108, 1
    %p112 = scmp.eq.s32.totalorder %s11, 1
    %p113 = scmp.ne.s32.totalorder %s108, %s110
    %p114 = scmp.eq.s32.totalorder %s11, 0
    %p115 = por %p113, %p114
    %p116 = scmp.ne.s32.totalorder %s108, %s110
    %p117 = scmp.eq.s32.totalorder %s16, 1
    %p118 = por %p116, %p117
    %p119 = scmp.ne.s32.totalorder %s110, %s111
    %p120 = scmp.eq.s32.totalorder %s16, 0
    %p121 = por %p119, %p120
    %p122 = scmp.ne.s32.totalorder %s110, %s111
    %p123 = scmp.eq.s32.totalorder %s17, 1
    %p124 = por %p122, %p123
    %p126 = scmp.ne.s32.totalorder %s111, %s125
    %p127 = scmp.eq.s32.totalorder %s17, 0
    %p128 = por %p126, %p127
    %s129 = ssub.s32 %s11, %s18
    %p130 = scmp.eq.s32.totalorder %s129, 0
    %s132 = sadd.s32 %s131, 1
    %s133 = scalar_select %p130, %s131, %s132
    %p136 = pneg %p130
    %p137 = scmp.eq.s32.totalorder %s11, 1
    %p138 = por %p136, %p137
    %p139 = scmp.ne.s32.totalorder %s131, %s134
    %p140 = scmp.eq.s32.totalorder %s11, 0
    %p141 = por %p139, %p140
    %p142 = scmp.ne.s32.totalorder %s131, %s134
    %p143 = scmp.eq.s32.totalorder %s16, 1
    %p144 = por %p142, %p143
    %p145 = scmp.ne.s32.totalorder %s134, %s135
    %p146 = scmp.eq.s32.totalorder %s16, 0
    %p147 = por %p145, %p146
    %p148 = scmp.ne.s32.totalorder %s134, %s135
    %p149 = scmp.eq.s32.totalorder %s17, 1
    %p150 = por %p148, %p149
    %p152 = scmp.ne.s32.totalorder %s135, %s151
    %p153 = scmp.eq.s32.totalorder %s17, 0
    %p154 = por %p152, %p153
    %p155 = scmp.le.s32.totalorder 1, %s11
    %p156 = scmp.lt.s32.totalorder %s11, 3
    %p157 = pnand %p155, %p156
    %p158 = pneg %p157
    // Predicated region
    $region9: #{main_model_forward.13} parent=5 // pred_check
      _
    $region10: #{main_model_forward.13} parent=5 // pred_check_branch
      %160 = sbr.rel (%p157) target = $region12
    $region11: #{main_model_forward.13} parent=5 // pred_region
      %s161 = ssub.s32 %s11, 1
      // Predicated region
      $region13: #{main_model_forward.13} parent=11 // pred_check
        %p162 = pneg %p58
      $region14: #{main_model_forward.13} parent=11 // pred_check_branch
        %164 = sbr.rel (%p162) target = $region16
      $region15: #{main_model_forward.13} parent=11 // pred_region
        _
      $region16: #{main_model_forward.13} parent=11 // pred_fallthru
        _
      // Predicated region
      $region17: #{main_model_forward.13} parent=11 // pred_check
        %p165 = pneg %p79
      $region18: #{main_model_forward.13} parent=11 // pred_check_branch
        %167 = sbr.rel (%p165) target = $region20
      $region19: #{main_model_forward.13} parent=11 // pred_region
        _
      $region20: #{main_model_forward.13} parent=11 // pred_fallthru
        _
      // Predicated region
      $region21: #{main_model_forward.13} parent=11 // pred_check
        %p168 = pneg %p100
      $region22: #{main_model_forward.13} parent=11 // pred_check_branch
        %170 = sbr.rel (%p168) target = $region24
      $region23: #{main_model_forward.13} parent=11 // pred_region
        _
      $region24: #{main_model_forward.13} parent=11 // pred_fallthru
        _
      // Predicated region
      $region25: #{main_model_forward.13} parent=11 // pred_check
        %p171 = pneg %p121
      $region26: #{main_model_forward.13} parent=11 // pred_check_branch
        %173 = sbr.rel (%p171) target = $region28
      $region27: #{main_model_forward.13} parent=11 // pred_region
        _
      $region28: #{main_model_forward.13} parent=11 // pred_fallthru
        _
    $region12: #{main_model_forward.13} parent=5 // pred_fallthru
      _
    %p174 = scmp.lt.s32.totalorder %s11, 2
    // Predicated region
    $region29: #{main_model_forward.13} parent=5 // pred_check
      %p175 = pneg %p174
    $region30: #{main_model_forward.13} parent=5 // pred_check_branch
      %177 = sbr.rel (%p175) target = $region32
    $region31: #{main_model_forward.13} parent=5 // pred_region
      // Predicated region
      $region33: #{main_model_forward.13} parent=31 // pred_check
        %p178 = pneg %p31
      $region34: #{main_model_forward.13} parent=31 // pred_check_branch
        %180 = sbr.rel (%p178) target = $region36
      $region35: #{main_model_forward.13} parent=31 // pred_region
        %s181 = smul.u32 8, %s11
        %p182 = scmp.lt.s32.totalorder %s181, 15
        %s183 = scalar_select %p182, %s181, 15
        %s184 = smul.addr %s183, 8
        %s185 = scalar_lea.vmem %s0, %s184
        %s186 = smul.u32 8, %s11
      $region36: #{main_model_forward.13} parent=31 // pred_fallthru
        _
    $region32: #{main_model_forward.13} parent=5 // pred_fallthru
      _
    %p187 = scmp.le.s32.totalorder 1, %s11
    %p188 = scmp.lt.s32.totalorder %s11, 3
    %p189 = pnand %p187, %p188
    %p190 = pneg %p189
    // Predicated region
    $region37: #{main_model_forward.13} parent=5 // pred_check
      _
    $region38: #{main_model_forward.13} parent=5 // pred_check_branch
      %192 = sbr.rel (%p189) target = $region40
    $region39: #{main_model_forward.13} parent=5 // pred_region
      %s193 = ssub.s32 %s11, 1
      %s194 = smul.u32 8, %s16
      %p195 = scmp.lt.s32.totalorder %s194, 15
      %s196 = scalar_select %p195, %s194, 15
      %s197 = smul.addr %s196, 8
      %s198 = scalar_lea.vmem %s0, %s197
      %p199 = pneg %p37
      %p200 = pneg %p34
      %p201 = pneg %p58
      %p202 = pneg %p55
      %p203 = pneg %p79
      %p204 = pneg %p76
      %p205 = pneg %p100
      %p206 = pneg %p97
      %p207 = pneg %p121
      %p208 = pneg %p118
      %p209 = pneg %p147
      %p210 = pneg %p144
      %s211 = smul.u32 8, %s16
      %p212 = scmp.lt.s32.totalorder %s211, 15
      %s213 = scalar_select %p212, %s211, 15
      %s214 = smul.addr %s213, 8
      %s215 = scalar_lea.vmem %s5, %s214
      %s216 = smul.u32 8, %s16
      %p217 = scmp.lt.s32.totalorder %s216, 15
      %s218 = scalar_select %p217, %s216, 15
      %s219 = smul.addr %s218, 8
      %s220 = scalar_lea.vmem %s0, %s219
      %s221 = smul.u32 8, %s16
      %s222 = smul.u32 8, %s16
      %p223 = scmp.lt.s32.totalorder %s222, 15
      %s224 = scalar_select %p223, %s222, 15
      %s225 = smul.addr %s224, 8
      %s226 = scalar_lea.vmem %s5, %s225
      %s227 = smul.u32 8, %s16
      %v229 = vld [vmem:[%s220] sm:$0xff]
      %v230 = vld [vmem:[%s220 + $0x8] sm:$0xff]
      %v231 = vld [vmem:[%s220 + $0x10] sm:$0xff]
      %v232 = vld [vmem:[%s220 + $0x18] sm:$0xff]
      %v233 = vld [vmem:[%s220 + $0x20] sm:$0xff]
      %v234 = vld [vmem:[%s220 + $0x28] sm:$0xff]
      %v235 = vld [vmem:[%s220 + $0x30] sm:$0xff]
      %v236 = vld [vmem:[%s220 + $0x38] sm:$0xff]
      %v237 = vpack.c.bf16 %v230, %v229
      %v238 = vpack.c.bf16 %v232, %v231
      %v239 = vpack.c.bf16 %v234, %v233
      %v240 = vpack.c.bf16 %v236, %v235
      %v241 = vld [vmem:[%s1] sm:$0xf]
      %v242 = vld [vmem:[%s1 + $0x4] sm:$0xf]
      %v243 = vld [vmem:[%s2] sm:$0x1]
      %v245 = vperm.slane %v243, 0
      %v249 = vunpack.c.l.b16 %v241
      %v250 = vunpack.c.l.b16 %v242
      %v251 = vpack.c.b16 %v250, %v249
      %vm253 = vcmask 130048
      %v255 = vsel %vm253, %v237, 0
      %v258 = vsel %vm253, %v238, 0
      %v261 = vsel %vm253, %v239, 0
      %v264 = vsel %vm253, %v240, 0
      %266 = vmatpush.bf16.msra.mxu0 0
      %267 = vmatpush.bf16.msra.mxu0 0
      %268 = vmatpush.bf16.msra.mxu0 0
      %269 = vmatpush.bf16.msra.mxu0 0
      %270 = vmatpush.bf16.msra.mxu0 0
      %271 = vmatpush.bf16.msra.mxu0 0
      %272 = vmatpush.bf16.msra.mxu0 0
      %273 = vmatpush.bf16.msra.mxu0 %v251
      %274 = vmatmul.bf16.gmra.mxu0 %v255
      %v275 = vpop.f32.mrf.mxu0
      %v276 = vadd.f32 %v245, %v275
      %v277 = vpop.f32.mrf.mxu0
      %v278 = vadd.f32 %v245, %v277
      %279 = vmatmul.bf16.gmra.mxu0 %v258
      %v280 = vpop.f32.mrf.mxu0
      %v281 = vadd.f32 %v245, %v280
      %v282 = vpop.f32.mrf.mxu0
      %v283 = vadd.f32 %v245, %v282
      %284 = vmatmul.bf16.gmra.mxu0 %v261
      %v285 = vpop.f32.mrf.mxu0
      %v286 = vadd.f32 %v245, %v285
      %v287 = vpop.f32.mrf.mxu0
      %v288 = vadd.f32 %v245, %v287
      %289 = vmatmul.bf16.gmra.mxu0 %v264
      %v290 = vpop.f32.mrf.mxu0
      %v291 = vadd.f32 %v245, %v290
      %v292 = vpop.f32.mrf.mxu0
      %v293 = vadd.f32 %v245, %v292
      %294 = vdwg.mxu0
      %295 = vadd.xlane.f32.xlu0 %v276
      %v296 = vpop.xlane.xlu0 %295
      %297 = vadd.xlane.f32.xlu0 %v278
      %v298 = vpop.xlane.xlu0 %297
      %299 = vadd.xlane.f32.xlu0 %v281
      %v300 = vpop.xlane.xlu0 %299
      %301 = vadd.xlane.f32.xlu0 %v283
      %v302 = vpop.xlane.xlu0 %301
      %303 = vadd.xlane.f32.xlu0 %v286
      %v304 = vpop.xlane.xlu0 %303
      %305 = vadd.xlane.f32.xlu0 %v288
      %v306 = vpop.xlane.xlu0 %305
      %307 = vadd.xlane.f32.xlu0 %v291
      %v308 = vpop.xlane.xlu0 %307
      %309 = vadd.xlane.f32.xlu0 %v293
      %v310 = vpop.xlane.xlu0 %309
      %v311 = vrcp.pop 128.0
      %v312 = vmul.f32 128.0, %v311
      %v313 = vsub.f32 1.0, %v312
      %v314 = vmul.f32 %v311, %v313
      %v315 = vadd.f32 %v311, %v314
      %vm316 = vweird.f32 %v311
      %v317 = vsel %vm316, %v311, %v315
      %v318 = vmul.f32 %v296, %v317
      %v319 = vmul.f32 %v298, %v317
      %v320 = vmul.f32 %v300, %v317
      %v321 = vmul.f32 %v302, %v317
      %v322 = vmul.f32 %v304, %v317
      %v323 = vmul.f32 %v306, %v317
      %v324 = vmul.f32 %v308, %v317
      %v325 = vmul.f32 %v310, %v317
      %v326 = vsub.f32 %v276, %v318
      %v327 = vsub.f32 %v278, %v319
      %v328 = vsub.f32 %v281, %v320
      %v329 = vsub.f32 %v283, %v321
      %v330 = vsub.f32 %v286, %v322
      %v331 = vsub.f32 %v288, %v323
      %v332 = vsub.f32 %v291, %v324
      %v333 = vsub.f32 %v293, %v325
      %v334 = vmul.f32 %v326, %v326
      %v335 = vmul.f32 %v327, %v327
      %v336 = vmul.f32 %v328, %v328
      %v337 = vmul.f32 %v329, %v329
      %v338 = vmul.f32 %v330, %v330
      %v339 = vmul.f32 %v331, %v331
      %v340 = vmul.f32 %v332, %v332
      %v341 = vmul.f32 %v333, %v333
      %342 = vadd.xlane.f32.xlu0 %v334
      %v343 = vpop.xlane.xlu0 %342
      %344 = vadd.xlane.f32.xlu0 %v335
      %v345 = vpop.xlane.xlu0 %344
      %346 = vadd.xlane.f32.xlu0 %v336
      %v347 = vpop.xlane.xlu0 %346
      %348 = vadd.xlane.f32.xlu0 %v337
      %v349 = vpop.xlane.xlu0 %348
      %350 = vadd.xlane.f32.xlu0 %v338
      %v351 = vpop.xlane.xlu0 %350
      %352 = vadd.xlane.f32.xlu0 %v339
      %v353 = vpop.xlane.xlu0 %352
      %354 = vadd.xlane.f32.xlu0 %v340
      %v355 = vpop.xlane.xlu0 %354
      %356 = vadd.xlane.f32.xlu0 %v341
      %v357 = vpop.xlane.xlu0 %356
      %v358 = vmul.f32 %v343, %v317
      %v359 = vmul.f32 %v345, %v317
      %v360 = vmul.f32 %v347, %v317
      %v361 = vmul.f32 %v349, %v317
      %v362 = vmul.f32 %v351, %v317
      %v363 = vmul.f32 %v353, %v317
      %v364 = vmul.f32 %v355, %v317
      %v365 = vmul.f32 %v357, %v317
      %v366 = vadd.f32 %v358, 1e-05
      %v367 = vadd.f32 %v359, 1e-05
      %v368 = vadd.f32 %v360, 1e-05
      %v369 = vadd.f32 %v361, 1e-05
      %v370 = vadd.f32 %v362, 1e-05
      %v371 = vadd.f32 %v363, 1e-05
      %v372 = vadd.f32 %v364, 1e-05
      %v373 = vadd.f32 %v365, 1e-05
      %v374 = vrsqrt.pop %v366
      %v375 = vmul.f32 %v374, %v366
      %v376 = vmul.f32 %v375, %v374
      %v377 = vmul.f32 0.5, %v376
      %v378 = vsub.f32 1.5, %v377
      %v379 = vmul.f32 %v374, %v378
      %vm380 = vweird.f32 %v366
      %vm381 = vweird.f32 %v374
      %vm382 = vmor %vm380, %vm381
      %v383 = vsel %vm382, %v374, %v379
      %v384 = vrsqrt.pop %v367
      %v385 = vmul.f32 %v384, %v367
      %v386 = vmul.f32 %v385, %v384
      %v387 = vmul.f32 0.5, %v386
      %v388 = vsub.f32 1.5, %v387
      %v389 = vmul.f32 %v384, %v388
      %vm390 = vweird.f32 %v367
      %vm391 = vweird.f32 %v384
      %vm392 = vmor %vm390, %vm391
      %v393 = vsel %vm392, %v384, %v389
      %v394 = vrsqrt.pop %v368
      %v395 = vmul.f32 %v394, %v368
      %v396 = vmul.f32 %v395, %v394
      %v397 = vmul.f32 0.5, %v396
      %v398 = vsub.f32 1.5, %v397
      %v399 = vmul.f32 %v394, %v398
      %vm400 = vweird.f32 %v368
      %vm401 = vweird.f32 %v394
      %vm402 = vmor %vm400, %vm401
      %v403 = vsel %vm402, %v394, %v399
      %v404 = vrsqrt.pop %v369
      %v405 = vmul.f32 %v404, %v369
      %v406 = vmul.f32 %v405, %v404
      %v407 = vmul.f32 0.5, %v406
      %v408 = vsub.f32 1.5, %v407
      %v409 = vmul.f32 %v404, %v408
      %vm410 = vweird.f32 %v369
      %vm411 = vweird.f32 %v404
      %vm412 = vmor %vm410, %vm411
      %v413 = vsel %vm412, %v404, %v409
      %v414 = vrsqrt.pop %v370
      %v415 = vmul.f32 %v414, %v370
      %v416 = vmul.f32 %v415, %v414
      %v417 = vmul.f32 0.5, %v416
      %v418 = vsub.f32 1.5, %v417
      %v419 = vmul.f32 %v414, %v418
      %vm420 = vweird.f32 %v370
      %vm421 = vweird.f32 %v414
      %vm422 = vmor %vm420, %vm421
      %v423 = vsel %vm422, %v414, %v419
      %v424 = vrsqrt.pop %v371
      %v425 = vmul.f32 %v424, %v371
      %v426 = vmul.f32 %v425, %v424
      %v427 = vmul.f32 0.5, %v426
      %v428 = vsub.f32 1.5, %v427
      %v429 = vmul.f32 %v424, %v428
      %vm430 = vweird.f32 %v371
      %vm431 = vweird.f32 %v424
      %vm432 = vmor %vm430, %vm431
      %v433 = vsel %vm432, %v424, %v429
      %v434 = vrsqrt.pop %v372
      %v435 = vmul.f32 %v434, %v372
      %v436 = vmul.f32 %v435, %v434
      %v437 = vmul.f32 0.5, %v436
      %v438 = vsub.f32 1.5, %v437
      %v439 = vmul.f32 %v434, %v438
      %vm440 = vweird.f32 %v372
      %vm441 = vweird.f32 %v434
      %vm442 = vmor %vm440, %vm441
      %v443 = vsel %vm442, %v434, %v439
      %v444 = vrsqrt.pop %v373
      %v445 = vmul.f32 %v444, %v373
      %v446 = vmul.f32 %v445, %v444
      %v447 = vmul.f32 0.5, %v446
      %v448 = vsub.f32 1.5, %v447
      %v449 = vmul.f32 %v444, %v448
      %vm450 = vweird.f32 %v373
      %vm451 = vweird.f32 %v444
      %vm452 = vmor %vm450, %vm451
      %v453 = vsel %vm452, %v444, %v449
      %v454 = vmul.f32 %v326, %v383
      %v455 = vmul.f32 %v327, %v393
      %v456 = vmul.f32 %v328, %v403
      %v457 = vmul.f32 %v329, %v413
      %v458 = vmul.f32 %v330, %v423
      %v459 = vmul.f32 %v331, %v433
      %v460 = vmul.f32 %v332, %v443
      %v461 = vmul.f32 %v333, %v453
      %v462 = vld [vmem:[%s3] sm:$0x1]
      %v464 = vperm.slane %v462, 0
      %v466 = vmul.f32 %v454, %v464
      %v467 = vmul.f32 %v455, %v464
      %v468 = vmul.f32 %v456, %v464
      %v469 = vmul.f32 %v457, %v464
      %v470 = vmul.f32 %v458, %v464
      %v471 = vmul.f32 %v459, %v464
      %v472 = vmul.f32 %v460, %v464
      %v473 = vmul.f32 %v461, %v464
      %v474 = vld [vmem:[%s4] sm:$0x1]
      %v476 = vperm.slane %v474, 0
      %v478 = vadd.f32 %v466, %v476
      %v479 = vadd.f32 %v467, %v476
      %v480 = vadd.f32 %v468, %v476
      %v481 = vadd.f32 %v469, %v476
      %v482 = vadd.f32 %v470, %v476
      %v483 = vadd.f32 %v471, %v476
      %v484 = vadd.f32 %v472, %v476
      %v485 = vadd.f32 %v473, %v476
      %v486 = vmax.f32 %v478, 0.0
      %v487 = vmax.f32 %v479, 0.0
      %v488 = vmax.f32 %v480, 0.0
      %v489 = vmax.f32 %v481, 0.0
      %v490 = vmax.f32 %v482, 0.0
      %v491 = vmax.f32 %v483, 0.0
      %v492 = vmax.f32 %v484, 0.0
      %v493 = vmax.f32 %v485, 0.0
      %494 = vst [vmem:[%s226] sm:$0xff] %v486
      %495 = vst [vmem:[%s226 + $0x8] sm:$0xff] %v487
      %496 = vst [vmem:[%s226 + $0x10] sm:$0xff] %v488
      %497 = vst [vmem:[%s226 + $0x18] sm:$0xff] %v489
      %498 = vst [vmem:[%s226 + $0x20] sm:$0xff] %v490
      %499 = vst [vmem:[%s226 + $0x28] sm:$0xff] %v491
      %500 = vst [vmem:[%s226 + $0x30] sm:$0xff] %v492
      %501 = vst [vmem:[%s226 + $0x38] sm:$0xff] %v493
      %s502 = smul.u32 8, %s16
      %p503 = scmp.lt.s32.totalorder %s502, 15
      %s504 = scalar_select %p503, %s502, 15
      %s505 = smul.addr %s504, 8
      %s506 = scalar_lea.vmem %s5, %s505
      // Predicated region
      $region41: #{main_model_forward.13} parent=39 // pred_check
        %p507 = pneg %p144
      $region42: #{main_model_forward.13} parent=39 // pred_check_branch
        %509 = sbr.rel (%p507) target = $region44
      $region43: #{main_model_forward.13} parent=39 // pred_region
        %s510 = smul.u32 8, %s16
      $region44: #{main_model_forward.13} parent=39 // pred_fallthru
        _
    $region40: #{main_model_forward.13} parent=5 // pred_fallthru
      _
    %p511 = scmp.le.s32.totalorder 2, %s11
    // Predicated region
    $region45: #{main_model_forward.13} parent=5 // pred_check
      %p512 = pneg %p511
    $region46: #{main_model_forward.13} parent=5 // pred_check_branch
      %514 = sbr.rel (%p512) target = $region48
    $region47: #{main_model_forward.13} parent=5 // pred_region
      %s515 = ssub.s32 %s11, 2
      // Predicated region
      $region49: #{main_model_forward.13} parent=47 // pred_check
        %p516 = pneg %p150
      $region50: #{main_model_forward.13} parent=47 // pred_check_branch
        %518 = sbr.rel (%p516) target = $region52
      $region51: #{main_model_forward.13} parent=47 // pred_region
        %s519 = smul.u32 8, %s17
        %p520 = scmp.lt.s32.totalorder %s519, 15
        %s521 = scalar_select %p520, %s519, 15
        %s522 = smul.addr %s521, 8
        %s523 = scalar_lea.vmem %s5, %s522
      $region52: #{main_model_forward.13} parent=47 // pred_fallthru
        _
    $region48: #{main_model_forward.13} parent=5 // pred_fallthru
      _
  $region6: #{main_model_forward.13} parent=0 // loop_footer
    %s15 = sadd.s32 1, %s11
  $region7: #{main_model_forward.13} parent=0 // loop_footer_branch
    %10 = sbr.rel target = $region3
  $region8: #{main_model_forward.13} parent=0 // loop_exit
    _

// kernel: main_model_forward.18
$region0: #{main_model_forward.18}
  #allocation0 [shape = 'u32[]', space=smem, size = 0x4, offset = 0x4, fixed_abs, tag = 'smem constant byte address 0x4 - core index']
  #allocation1 [shape = 'u32[72,128]{1,0:T(1,128)}', space=vmem, size = 0x9000, scoped, tag = 'internal scratch']
  %s0 = inlined_call_operand.vmem [shape: f32[128,128], index: 0, kind: input, shape index: {}]
  %s1 = inlined_call_operand.vmem [shape: bf16[128,128], index: 1, kind: input, shape index: {}]
  %s2 = inlined_call_operand.vmem [shape: f32[1,128], index: 2, kind: input, shape index: {}]
  %s3 = inlined_call_operand.vmem [shape: f32[128,128], index: 3, kind: output, shape index: {}]
  %s4 = sld [smem:[#allocation0]]
  $region45: #{main_model_forward.18} parent=0
    _
  %s6 = ssub.s32 1, %s4
  %s7 = scalar_select 0, %s6, %s4
  loop: start=0, step=1, limit=4
  $region2: #{main_model_forward.18} parent=0 // loop_pre_header
    _
  $region3: #{main_model_forward.18} parent=0 // loop_header
    %s9 = sphi 0, %s13
    %p10 = scmp.ge.s32.totalorder %s9, 4
    %s19 = sphi 0, %s21
    %s22 = sphi 0, %s19
    %s23 = sphi 0, %s22
    %s39 = sphi 0, %s23
    %s43 = sphi 0, %s43
    %s45 = sphi 0, %s43
    %s46 = sphi 0, %s45
    %s60 = sphi 0, %s46
    %s64 = sphi 0, %s64
    %s66 = sphi 0, %s64
    %s67 = sphi 0, %s66
    %s81 = sphi 0, %s67
    %s87 = sphi 0, %s89
    %s90 = sphi 0, %s87
    %s91 = sphi 0, %s90
    %s107 = sphi 0, %s91
  $region4: #{main_model_forward.18} parent=0 // loop_header_branch
    %12 = sbr.rel (%p10) target = $region8
  $region5: #{main_model_forward.18} parent=0 // loop_body
    %s14 = ssub.s32 %s9, 1
    %s15 = ssub.s32 %s9, 2
    %s16 = sadd.s32 %s9, 1
    %s17 = ssub.s32 %s9, %s16
    %p18 = scmp.eq.s32.totalorder %s17, 0
    %s20 = sadd.s32 %s19, 1
    %s21 = scalar_select %p18, %s19, %s20
    %p24 = pneg %p18
    %p25 = scmp.eq.s32.totalorder %s9, 1
    %p26 = por %p24, %p25
    %p27 = scmp.ne.s32.totalorder %s19, %s22
    %p28 = scmp.eq.s32.totalorder %s9, 0
    %p29 = por %p27, %p28
    %p30 = scmp.ne.s32.totalorder %s19, %s22
    %p31 = scmp.eq.s32.totalorder %s14, 1
    %p32 = por %p30, %p31
    %p33 = scmp.ne.s32.totalorder %s22, %s23
    %p34 = scmp.eq.s32.totalorder %s14, 0
    %p35 = por %p33, %p34
    %p36 = scmp.ne.s32.totalorder %s22, %s23
    %p37 = scmp.eq.s32.totalorder %s15, 1
    %p38 = por %p36, %p37
    %p40 = scmp.ne.s32.totalorder %s23, %s39
    %p41 = scmp.eq.s32.totalorder %s15, 0
    %p42 = por %p40, %p41
    %s44 = sadd.s32 %s43, 1
    %p47 = scmp.eq.s32.totalorder %s9, 1
    %p48 = scmp.ne.s32.totalorder %s43, %s45
    %p49 = scmp.eq.s32.totalorder %s9, 0
    %p50 = por %p48, %p49
    %p51 = scmp.ne.s32.totalorder %s43, %s45
    %p52 = scmp.eq.s32.totalorder %s14, 1
    %p53 = por %p51, %p52
    %p54 = scmp.ne.s32.totalorder %s45, %s46
    %p55 = scmp.eq.s32.totalorder %s14, 0
    %p56 = por %p54, %p55
    %p57 = scmp.ne.s32.totalorder %s45, %s46
    %p58 = scmp.eq.s32.totalorder %s15, 1
    %p59 = por %p57, %p58
    %p61 = scmp.ne.s32.totalorder %s46, %s60
    %p62 = scmp.eq.s32.totalorder %s15, 0
    %p63 = por %p61, %p62
    %s65 = sadd.s32 %s64, 1
    %p68 = scmp.eq.s32.totalorder %s9, 1
    %p69 = scmp.ne.s32.totalorder %s64, %s66
    %p70 = scmp.eq.s32.totalorder %s9, 0
    %p71 = por %p69, %p70
    %p72 = scmp.ne.s32.totalorder %s64, %s66
    %p73 = scmp.eq.s32.totalorder %s14, 1
    %p74 = por %p72, %p73
    %p75 = scmp.ne.s32.totalorder %s66, %s67
    %p76 = scmp.eq.s32.totalorder %s14, 0
    %p77 = por %p75, %p76
    %p78 = scmp.ne.s32.totalorder %s66, %s67
    %p79 = scmp.eq.s32.totalorder %s15, 1
    %p80 = por %p78, %p79
    %p82 = scmp.ne.s32.totalorder %s67, %s81
    %p83 = scmp.eq.s32.totalorder %s15, 0
    %p84 = por %p82, %p83
    %s85 = ssub.s32 %s9, %s16
    %p86 = scmp.eq.s32.totalorder %s85, 0
    %s88 = sadd.s32 %s87, 1
    %s89 = scalar_select %p86, %s87, %s88
    %p92 = pneg %p86
    %p93 = scmp.eq.s32.totalorder %s9, 1
    %p94 = por %p92, %p93
    %p95 = scmp.ne.s32.totalorder %s87, %s90
    %p96 = scmp.eq.s32.totalorder %s9, 0
    %p97 = por %p95, %p96
    %p98 = scmp.ne.s32.totalorder %s87, %s90
    %p99 = scmp.eq.s32.totalorder %s14, 1
    %p100 = por %p98, %p99
    %p101 = scmp.ne.s32.totalorder %s90, %s91
    %p102 = scmp.eq.s32.totalorder %s14, 0
    %p103 = por %p101, %p102
    %p104 = scmp.ne.s32.totalorder %s90, %s91
    %p105 = scmp.eq.s32.totalorder %s15, 1
    %p106 = por %p104, %p105
    %p108 = scmp.ne.s32.totalorder %s91, %s107
    %p109 = scmp.eq.s32.totalorder %s15, 0
    %p110 = por %p108, %p109
    %p111 = scmp.le.s32.totalorder 1, %s9
    %p112 = scmp.lt.s32.totalorder %s9, 3
    %p113 = pnand %p111, %p112
    %p114 = pneg %p113
    // Predicated region
    $region9: #{main_model_forward.18} parent=5 // pred_check
      _
    $region10: #{main_model_forward.18} parent=5 // pred_check_branch
      %116 = sbr.rel (%p113) target = $region12
    $region11: #{main_model_forward.18} parent=5 // pred_region
      %s117 = ssub.s32 %s9, 1
      // Predicated region
      $region13: #{main_model_forward.18} parent=11 // pred_check
        %p118 = pneg %p56
      $region14: #{main_model_forward.18} parent=11 // pred_check_branch
        %120 = sbr.rel (%p118) target = $region16
      $region15: #{main_model_forward.18} parent=11 // pred_region
        _
      $region16: #{main_model_forward.18} parent=11 // pred_fallthru
        _
      // Predicated region
      $region17: #{main_model_forward.18} parent=11 // pred_check
        %p121 = pneg %p77
      $region18: #{main_model_forward.18} parent=11 // pred_check_branch
        %123 = sbr.rel (%p121) target = $region20
      $region19: #{main_model_forward.18} parent=11 // pred_region
        _
      $region20: #{main_model_forward.18} parent=11 // pred_fallthru
        _
    $region12: #{main_model_forward.18} parent=5 // pred_fallthru
      _
    %p124 = scmp.lt.s32.totalorder %s9, 2
    // Predicated region
    $region21: #{main_model_forward.18} parent=5 // pred_check
      %p125 = pneg %p124
    $region22: #{main_model_forward.18} parent=5 // pred_check_branch
      %127 = sbr.rel (%p125) target = $region24
    $region23: #{main_model_forward.18} parent=5 // pred_region
      // Predicated region
      $region25: #{main_model_forward.18} parent=23 // pred_check
        %p128 = pneg %p29
      $region26: #{main_model_forward.18} parent=23 // pred_check_branch
        %130 = sbr.rel (%p128) target = $region28
      $region27: #{main_model_forward.18} parent=23 // pred_region
        %s131 = smul.u32 8, %s9
        %p132 = scmp.lt.s32.totalorder %s131, 15
        %s133 = scalar_select %p132, %s131, 15
        %s134 = smul.addr %s133, 8
        %s135 = scalar_lea.vmem %s0, %s134
        %s136 = smul.u32 8, %s9
      $region28: #{main_model_forward.18} parent=23 // pred_fallthru
        _
    $region24: #{main_model_forward.18} parent=5 // pred_fallthru
      _
    %p137 = scmp.le.s32.totalorder 1, %s9
    %p138 = scmp.lt.s32.totalorder %s9, 3
    %p139 = pnand %p137, %p138
    %p140 = pneg %p139
    // Predicated region
    $region29: #{main_model_forward.18} parent=5 // pred_check
      _
    $region30: #{main_model_forward.18} parent=5 // pred_check_branch
      %142 = sbr.rel (%p139) target = $region32
    $region31: #{main_model_forward.18} parent=5 // pred_region
      %s143 = ssub.s32 %s9, 1
      %s144 = smul.u32 8, %s14
      %p145 = scmp.lt.s32.totalorder %s144, 15
      %s146 = scalar_select %p145, %s144, 15
      %s147 = smul.addr %s146, 8
      %s148 = scalar_lea.vmem %s0, %s147
      %p149 = pneg %p35
      %p150 = pneg %p32
      %p151 = pneg %p56
      %p152 = pneg %p53
      %p153 = pneg %p77
      %p154 = pneg %p74
      %p155 = pneg %p103
      %p156 = pneg %p100
      %s157 = smul.u32 8, %s14
      %p158 = scmp.lt.s32.totalorder %s157, 15
      %s159 = scalar_select %p158, %s157, 15
      %s160 = smul.addr %s159, 8
      %s161 = scalar_lea.vmem %s3, %s160
      %s162 = smul.u32 8, %s14
      %p163 = scmp.lt.s32.totalorder %s162, 15
      %s164 = scalar_select %p163, %s162, 15
      %s165 = smul.addr %s164, 8
      %s166 = scalar_lea.vmem %s0, %s165
      %s167 = smul.u32 8, %s14
      %s168 = smul.u32 8, %s14
      %p169 = scmp.lt.s32.totalorder %s168, 15
      %s170 = scalar_select %p169, %s168, 15
      %s171 = smul.addr %s170, 8
      %s172 = scalar_lea.vmem %s3, %s171
      %s173 = smul.u32 8, %s14
      %v174 = vld [vmem:[%s166] sm:$0xff]
      %v175 = vld [vmem:[%s166 + $0x8] sm:$0xff]
      %v176 = vld [vmem:[%s166 + $0x10] sm:$0xff]
      %v177 = vld [vmem:[%s166 + $0x18] sm:$0xff]
      %v178 = vld [vmem:[%s166 + $0x20] sm:$0xff]
      %v179 = vld [vmem:[%s166 + $0x28] sm:$0xff]
      %v180 = vld [vmem:[%s166 + $0x30] sm:$0xff]
      %v181 = vld [vmem:[%s166 + $0x38] sm:$0xff]
      %v182 = vpack.c.bf16 %v175, %v174
      %v183 = vpack.c.bf16 %v177, %v176
      %v184 = vpack.c.bf16 %v179, %v178
      %v185 = vpack.c.bf16 %v181, %v180
      %v186 = vld [vmem:[%s1] sm:$0xf]
      %v187 = vld [vmem:[%s1 + $0x4] sm:$0xf]
      %v188 = vld [vmem:[%s1 + $0x8] sm:$0xf]
      %v189 = vld [vmem:[%s1 + $0xc] sm:$0xf]
      %v190 = vld [vmem:[%s1 + $0x10] sm:$0xf]
      %v191 = vld [vmem:[%s1 + $0x14] sm:$0xf]
      %v192 = vld [vmem:[%s1 + $0x18] sm:$0xf]
      %v193 = vld [vmem:[%s1 + $0x1c] sm:$0xf]
      %v194 = vld [vmem:[%s1 + $0x20] sm:$0xf]
      %v195 = vld [vmem:[%s1 + $0x24] sm:$0xf]
      %v196 = vld [vmem:[%s1 + $0x28] sm:$0xf]
      %v197 = vld [vmem:[%s1 + $0x2c] sm:$0xf]
      %v198 = vld [vmem:[%s1 + $0x30] sm:$0xf]
      %v199 = vld [vmem:[%s1 + $0x34] sm:$0xf]
      %v200 = vld [vmem:[%s1 + $0x38] sm:$0xf]
      %v201 = vld [vmem:[%s1 + $0x3c] sm:$0xf]
      %v202 = vld [vmem:[%s2] sm:$0x1]
      %v204 = vperm.slane %v202, 0
      %v222 = vunpack.c.l.b16 %v186
      %v223 = vunpack.c.l.b16 %v187
      %v224 = vunpack.c.l.b16 %v188
      %v225 = vunpack.c.l.b16 %v189
      %v226 = vunpack.c.l.b16 %v190
      %v227 = vunpack.c.l.b16 %v191
      %v228 = vunpack.c.l.b16 %v192
      %v229 = vunpack.c.l.b16 %v193
      %v230 = vunpack.c.l.b16 %v194
      %v231 = vunpack.c.l.b16 %v195
      %v232 = vunpack.c.l.b16 %v196
      %v233 = vunpack.c.l.b16 %v197
      %v234 = vunpack.c.l.b16 %v198
      %v235 = vunpack.c.l.b16 %v199
      %v236 = vunpack.c.l.b16 %v200
      %v237 = vunpack.c.l.b16 %v201
      %v238 = vpack.c.b16 %v223, %v222
      %v239 = vpack.c.b16 %v225, %v224
      %v240 = vpack.c.b16 %v227, %v226
      %v241 = vpack.c.b16 %v229, %v228
      %v242 = vpack.c.b16 %v231, %v230
      %v243 = vpack.c.b16 %v233, %v232
      %v244 = vpack.c.b16 %v235, %v234
      %v245 = vpack.c.b16 %v237, %v236
      %254 = vmatpush.bf16.msra.mxu0 %v245
      %255 = vmatpush.bf16.msra.mxu0 %v244
      %256 = vmatpush.bf16.msra.mxu0 %v243
      %257 = vmatpush.bf16.msra.mxu0 %v242
      %258 = vmatpush.bf16.msra.mxu0 %v241
      %259 = vmatpush.bf16.msra.mxu0 %v240
      %260 = vmatpush.bf16.msra.mxu0 %v239
      %261 = vmatpush.bf16.msra.mxu0 %v238
      %262 = vmatmul.bf16.gmra.mxu0 %v182
      %v263 = vpop.f32.mrf.mxu0
      %v264 = vadd.f32 %v204, %v263
      %v265 = vpop.f32.mrf.mxu0
      %v266 = vadd.f32 %v204, %v265
      %267 = vmatmul.bf16.gmra.mxu0 %v183
      %v268 = vpop.f32.mrf.mxu0
      %v269 = vadd.f32 %v204, %v268
      %v270 = vpop.f32.mrf.mxu0
      %v271 = vadd.f32 %v204, %v270
      %272 = vmatmul.bf16.gmra.mxu0 %v184
      %v273 = vpop.f32.mrf.mxu0
      %v274 = vadd.f32 %v204, %v273
      %v275 = vpop.f32.mrf.mxu0
      %v276 = vadd.f32 %v204, %v275
      %277 = vmatmul.bf16.gmra.mxu0 %v185
      %v278 = vpop.f32.mrf.mxu0
      %v279 = vadd.f32 %v204, %v278
      %v280 = vpop.f32.mrf.mxu0
      %v281 = vadd.f32 %v204, %v280
      %282 = vdwg.mxu0
      %283 = vst [vmem:[%s172] sm:$0xff] %v264
      %284 = vst [vmem:[%s172 + $0x8] sm:$0xff] %v266
      %285 = vst [vmem:[%s172 + $0x10] sm:$0xff] %v269
      %286 = vst [vmem:[%s172 + $0x18] sm:$0xff] %v271
      %287 = vst [vmem:[%s172 + $0x20] sm:$0xff] %v274
      %288 = vst [vmem:[%s172 + $0x28] sm:$0xff] %v276
      %289 = vst [vmem:[%s172 + $0x30] sm:$0xff] %v279
      %290 = vst [vmem:[%s172 + $0x38] sm:$0xff] %v281
      %s291 = smul.u32 8, %s14
      %p292 = scmp.lt.s32.totalorder %s291, 15
      %s293 = scalar_select %p292, %s291, 15
      %s294 = smul.addr %s293, 8
      %s295 = scalar_lea.vmem %s3, %s294
      // Predicated region
      $region33: #{main_model_forward.18} parent=31 // pred_check
        %p296 = pneg %p100
      $region34: #{main_model_forward.18} parent=31 // pred_check_branch
        %298 = sbr.rel (%p296) target = $region36
      $region35: #{main_model_forward.18} parent=31 // pred_region
        %s299 = smul.u32 8, %s14
      $region36: #{main_model_forward.18} parent=31 // pred_fallthru
        _
    $region32: #{main_model_forward.18} parent=5 // pred_fallthru
      _
    %p300 = scmp.le.s32.totalorder 2, %s9
    // Predicated region
    $region37: #{main_model_forward.18} parent=5 // pred_check
      %p301 = pneg %p300
    $region38: #{main_model_forward.18} parent=5 // pred_check_branch
      %303 = sbr.rel (%p301) target = $region40
    $region39: #{main_model_forward.18} parent=5 // pred_region
      %s304 = ssub.s32 %s9, 2
      // Predicated region
      $region41: #{main_model_forward.18} parent=39 // pred_check
        %p305 = pneg %p106
      $region42: #{main_model_forward.18} parent=39 // pred_check_branch
        %307 = sbr.rel (%p305) target = $region44
      $region43: #{main_model_forward.18} parent=39 // pred_region
        %s308 = smul.u32 8, %s15
        %p309 = scmp.lt.s32.totalorder %s308, 15
        %s310 = scalar_select %p309, %s308, 15
        %s311 = smul.addr %s310, 8
        %s312 = scalar_lea.vmem %s3, %s311
      $region44: #{main_model_forward.18} parent=39 // pred_fallthru
        _
    $region40: #{main_model_forward.18} parent=5 // pred_fallthru
      _
  $region6: #{main_model_forward.18} parent=0 // loop_footer
    %s13 = sadd.s32 1, %s9
  $region7: #{main_model_forward.18} parent=0 // loop_footer_branch
    %8 = sbr.rel target = $region3
  $region8: #{main_model_forward.18} parent=0 // loop_exit
    _

// kernel: main_model_forward.14
$region0: #{main_model_forward.14}
  #allocation0 [shape = 'u32[]', space=smem, size = 0x4, offset = 0x4, fixed_abs, tag = 'smem constant byte address 0x4 - core index']
  #allocation1 [shape = 'u32[72,128]{1,0:T(1,128)}', space=vmem, size = 0x9000, scoped, tag = 'internal scratch']
  %s0 = inlined_call_operand.vmem [shape: f32[128,128], index: 0, kind: input, shape index: {}]
  %s1 = inlined_call_operand.vmem [shape: bf16[128,384], index: 1, kind: input, shape index: {}]
  %s2 = inlined_call_operand.vmem [shape: f32[1,384], index: 2, kind: input, shape index: {}]
  %s3 = inlined_call_operand.vmem [shape: f32[128,128], index: 3, kind: output, shape index: {0}]
  %s4 = inlined_call_operand.vmem [shape: f32[128,128], index: 4, kind: output, shape index: {1}]
  %s5 = inlined_call_operand.vmem [shape: f32[128,128], index: 5, kind: output, shape index: {2}]
  %s6 = inlined_call_operand.vmem [shape: f32[4,128], index: 6, kind: output, shape index: {3}]
  %7 = xla_tuple %s3, %s4, %s5, %s6
  %s8 = sld [smem:[#allocation0]]
  $region73: #{main_model_forward.14} parent=0
    _
  %s10 = ssub.s32 1, %s8
  %s11 = scalar_select 0, %s10, %s8
  loop: start=0, step=1, limit=4
  $region2: #{main_model_forward.14} parent=0 // loop_pre_header
    _
  $region3: #{main_model_forward.14} parent=0 // loop_header
    %s13 = sphi 0, %s17
    %p14 = scmp.ge.s32.totalorder %s13, 4
    %s23 = sphi 0, %s25
    %s26 = sphi 0, %s23
    %s27 = sphi 0, %s26
    %s43 = sphi 0, %s27
    %s47 = sphi 0, %s47
    %s49 = sphi 0, %s47
    %s50 = sphi 0, %s49
    %s64 = sphi 0, %s50
    %s68 = sphi 0, %s68
    %s70 = sphi 0, %s68
    %s71 = sphi 0, %s70
    %s85 = sphi 0, %s71
    %s91 = sphi 0, %s93
    %s94 = sphi 0, %s91
    %s95 = sphi 0, %s94
    %s111 = sphi 0, %s95
    %s117 = sphi 0, %s119
    %s120 = sphi 0, %s117
    %s121 = sphi 0, %s120
    %s137 = sphi 0, %s121
    %s141 = sphi 0, %s141
    %s143 = sphi 0, %s141
    %s144 = sphi 0, %s143
    %s158 = sphi 0, %s144
    %s162 = sphi 0, %s162
    %s164 = sphi 0, %s162
    %s165 = sphi 0, %s164
    %s179 = sphi 0, %s165
  $region4: #{main_model_forward.14} parent=0 // loop_header_branch
    %16 = sbr.rel (%p14) target = $region8
  $region5: #{main_model_forward.14} parent=0 // loop_body
    %s18 = ssub.s32 %s13, 1
    %s19 = ssub.s32 %s13, 2
    %s20 = sadd.s32 %s13, 1
    %s21 = ssub.s32 %s13, %s20
    %p22 = scmp.eq.s32.totalorder %s21, 0
    %s24 = sadd.s32 %s23, 1
    %s25 = scalar_select %p22, %s23, %s24
    %p28 = pneg %p22
    %p29 = scmp.eq.s32.totalorder %s13, 1
    %p30 = por %p28, %p29
    %p31 = scmp.ne.s32.totalorder %s23, %s26
    %p32 = scmp.eq.s32.totalorder %s13, 0
    %p33 = por %p31, %p32
    %p34 = scmp.ne.s32.totalorder %s23, %s26
    %p35 = scmp.eq.s32.totalorder %s18, 1
    %p36 = por %p34, %p35
    %p37 = scmp.ne.s32.totalorder %s26, %s27
    %p38 = scmp.eq.s32.totalorder %s18, 0
    %p39 = por %p37, %p38
    %p40 = scmp.ne.s32.totalorder %s26, %s27
    %p41 = scmp.eq.s32.totalorder %s19, 1
    %p42 = por %p40, %p41
    %p44 = scmp.ne.s32.totalorder %s27, %s43
    %p45 = scmp.eq.s32.totalorder %s19, 0
    %p46 = por %p44, %p45
    %s48 = sadd.s32 %s47, 1
    %p51 = scmp.eq.s32.totalorder %s13, 1
    %p52 = scmp.ne.s32.totalorder %s47, %s49
    %p53 = scmp.eq.s32.totalorder %s13, 0
    %p54 = por %p52, %p53
    %p55 = scmp.ne.s32.totalorder %s47, %s49
    %p56 = scmp.eq.s32.totalorder %s18, 1
    %p57 = por %p55, %p56
    %p58 = scmp.ne.s32.totalorder %s49, %s50
    %p59 = scmp.eq.s32.totalorder %s18, 0
    %p60 = por %p58, %p59
    %p61 = scmp.ne.s32.totalorder %s49, %s50
    %p62 = scmp.eq.s32.totalorder %s19, 1
    %p63 = por %p61, %p62
    %p65 = scmp.ne.s32.totalorder %s50, %s64
    %p66 = scmp.eq.s32.totalorder %s19, 0
    %p67 = por %p65, %p66
    %s69 = sadd.s32 %s68, 1
    %p72 = scmp.eq.s32.totalorder %s13, 1
    %p73 = scmp.ne.s32.totalorder %s68, %s70
    %p74 = scmp.eq.s32.totalorder %s13, 0
    %p75 = por %p73, %p74
    %p76 = scmp.ne.s32.totalorder %s68, %s70
    %p77 = scmp.eq.s32.totalorder %s18, 1
    %p78 = por %p76, %p77
    %p79 = scmp.ne.s32.totalorder %s70, %s71
    %p80 = scmp.eq.s32.totalorder %s18, 0
    %p81 = por %p79, %p80
    %p82 = scmp.ne.s32.totalorder %s70, %s71
    %p83 = scmp.eq.s32.totalorder %s19, 1
    %p84 = por %p82, %p83
    %p86 = scmp.ne.s32.totalorder %s71, %s85
    %p87 = scmp.eq.s32.totalorder %s19, 0
    %p88 = por %p86, %p87
    %s89 = ssub.s32 %s13, %s20
    %p90 = scmp.eq.s32.totalorder %s89, 0
    %s92 = sadd.s32 %s91, 1
    %s93 = scalar_select %p90, %s91, %s92
    %p96 = pneg %p90
    %p97 = scmp.eq.s32.totalorder %s13, 1
    %p98 = por %p96, %p97
    %p99 = scmp.ne.s32.totalorder %s91, %s94
    %p100 = scmp.eq.s32.totalorder %s13, 0
    %p101 = por %p99, %p100
    %p102 = scmp.ne.s32.totalorder %s91, %s94
    %p103 = scmp.eq.s32.totalorder %s18, 1
    %p104 = por %p102, %p103
    %p105 = scmp.ne.s32.totalorder %s94, %s95
    %p106 = scmp.eq.s32.totalorder %s18, 0
    %p107 = por %p105, %p106
    %p108 = scmp.ne.s32.totalorder %s94, %s95
    %p109 = scmp.eq.s32.totalorder %s19, 1
    %p110 = por %p108, %p109
    %p112 = scmp.ne.s32.totalorder %s95, %s111
    %p113 = scmp.eq.s32.totalorder %s19, 0
    %p114 = por %p112, %p113
    %s115 = ssub.s32 %s13, %s20
    %p116 = scmp.eq.s32.totalorder %s115, 0
    %s118 = sadd.s32 %s117, 1
    %s119 = scalar_select %p116, %s117, %s118
    %p122 = pneg %p116
    %p123 = scmp.eq.s32.totalorder %s13, 1
    %p124 = por %p122, %p123
    %p125 = scmp.ne.s32.totalorder %s117, %s120
    %p126 = scmp.eq.s32.totalorder %s13, 0
    %p127 = por %p125, %p126
    %p128 = scmp.ne.s32.totalorder %s117, %s120
    %p129 = scmp.eq.s32.totalorder %s18, 1
    %p130 = por %p128, %p129
    %p131 = scmp.ne.s32.totalorder %s120, %s121
    %p132 = scmp.eq.s32.totalorder %s18, 0
    %p133 = por %p131, %p132
    %p134 = scmp.ne.s32.totalorder %s120, %s121
    %p135 = scmp.eq.s32.totalorder %s19, 1
    %p136 = por %p134, %p135
    %p138 = scmp.ne.s32.totalorder %s121, %s137
    %p139 = scmp.eq.s32.totalorder %s19, 0
    %p140 = por %p138, %p139
    %s142 = sadd.s32 %s141, 1
    %p145 = scmp.eq.s32.totalorder %s13, 1
    %p146 = scmp.ne.s32.totalorder %s141, %s143
    %p147 = scmp.eq.s32.totalorder %s13, 0
    %p148 = por %p146, %p147
    %p149 = scmp.ne.s32.totalorder %s141, %s143
    %p150 = scmp.eq.s32.totalorder %s18, 1
    %p151 = por %p149, %p150
    %p152 = scmp.ne.s32.totalorder %s143, %s144
    %p153 = scmp.eq.s32.totalorder %s18, 0
    %p154 = por %p152, %p153
    %p155 = scmp.ne.s32.totalorder %s143, %s144
    %p156 = scmp.eq.s32.totalorder %s19, 1
    %p157 = por %p155, %p156
    %p159 = scmp.ne.s32.totalorder %s144, %s158
    %p160 = scmp.eq.s32.totalorder %s19, 0
    %p161 = por %p159, %p160
    %s163 = sadd.s32 %s162, 1
    %p166 = scmp.eq.s32.totalorder %s13, 1
    %p167 = scmp.ne.s32.totalorder %s162, %s164
    %p168 = scmp.eq.s32.totalorder %s13, 0
    %p169 = por %p167, %p168
    %p170 = scmp.ne.s32.totalorder %s162, %s164
    %p171 = scmp.eq.s32.totalorder %s18, 1
    %p172 = por %p170, %p171
    %p173 = scmp.ne.s32.totalorder %s164, %s165
    %p174 = scmp.eq.s32.totalorder %s18, 0
    %p175 = por %p173, %p174
    %p176 = scmp.ne.s32.totalorder %s164, %s165
    %p177 = scmp.eq.s32.totalorder %s19, 1
    %p178 = por %p176, %p177
    %p180 = scmp.ne.s32.totalorder %s165, %s179
    %p181 = scmp.eq.s32.totalorder %s19, 0
    %p182 = por %p180, %p181
    %p183 = scmp.le.s32.totalorder 1, %s13
    %p184 = scmp.lt.s32.totalorder %s13, 3
    %p185 = pnand %p183, %p184
    %p186 = pneg %p185
    // Predicated region
    $region9: #{main_model_forward.14} parent=5 // pred_check
      _
    $region10: #{main_model_forward.14} parent=5 // pred_check_branch
      %188 = sbr.rel (%p185) target = $region12
    $region11: #{main_model_forward.14} parent=5 // pred_region
      %s189 = ssub.s32 %s13, 1
      // Predicated region
      $region13: #{main_model_forward.14} parent=11 // pred_check
        %p190 = pneg %p60
      $region14: #{main_model_forward.14} parent=11 // pred_check_branch
        %192 = sbr.rel (%p190) target = $region16
      $region15: #{main_model_forward.14} parent=11 // pred_region
        _
      $region16: #{main_model_forward.14} parent=11 // pred_fallthru
        _
      // Predicated region
      $region17: #{main_model_forward.14} parent=11 // pred_check
        %p193 = pneg %p81
      $region18: #{main_model_forward.14} parent=11 // pred_check_branch
        %195 = sbr.rel (%p193) target = $region20
      $region19: #{main_model_forward.14} parent=11 // pred_region
        _
      $region20: #{main_model_forward.14} parent=11 // pred_fallthru
        _
    $region12: #{main_model_forward.14} parent=5 // pred_fallthru
      _
    %p196 = scmp.lt.s32.totalorder %s13, 2
    // Predicated region
    $region21: #{main_model_forward.14} parent=5 // pred_check
      %p197 = pneg %p196
    $region22: #{main_model_forward.14} parent=5 // pred_check_branch
      %199 = sbr.rel (%p197) target = $region24
    $region23: #{main_model_forward.14} parent=5 // pred_region
      // Predicated region
      $region25: #{main_model_forward.14} parent=23 // pred_check
        %p200 = pneg %p33
      $region26: #{main_model_forward.14} parent=23 // pred_check_branch
        %202 = sbr.rel (%p200) target = $region28
      $region27: #{main_model_forward.14} parent=23 // pred_region
        %s203 = smul.u32 8, %s13
        %p204 = scmp.lt.s32.totalorder %s203, 15
        %s205 = scalar_select %p204, %s203, 15
        %s206 = smul.addr %s205, 8
        %s207 = scalar_lea.vmem %s0, %s206
        %s208 = smul.u32 8, %s13
      $region28: #{main_model_forward.14} parent=23 // pred_fallthru
        _
    $region24: #{main_model_forward.14} parent=5 // pred_fallthru
      _
    %p209 = scmp.le.s32.totalorder 1, %s13
    %p210 = scmp.lt.s32.totalorder %s13, 3
    %p211 = pnand %p209, %p210
    %p212 = pneg %p211
    // Predicated region
    $region29: #{main_model_forward.14} parent=5 // pred_check
      _
    $region30: #{main_model_forward.14} parent=5 // pred_check_branch
      %214 = sbr.rel (%p211) target = $region32
    $region31: #{main_model_forward.14} parent=5 // pred_region
      %s215 = ssub.s32 %s13, 1
      %s216 = smul.u32 8, %s18
      %p217 = scmp.lt.s32.totalorder %s216, 15
      %s218 = scalar_select %p217, %s216, 15
      %s219 = smul.addr %s218, 8
      %s220 = scalar_lea.vmem %s0, %s219
      %p221 = pneg %p39
      %p222 = pneg %p36
      %p223 = pneg %p60
      %p224 = pneg %p57
      %p225 = pneg %p81
      %p226 = pneg %p78
      %p227 = pneg %p107
      %p228 = pneg %p104
      %s229 = smul.u32 8, %s18
      %p230 = scmp.lt.s32.totalorder %s229, 15
      %s231 = scalar_select %p230, %s229, 15
      %s232 = smul.addr %s231, 8
      %s233 = scalar_lea.vmem %s3, %s232
      %p234 = pneg %p133
      %p235 = pneg %p130
      %s236 = smul.u32 8, %s18
      %p237 = scmp.lt.s32.totalorder %s236, 15
      %s238 = scalar_select %p237, %s236, 15
      %s239 = smul.addr %s238, 8
      %s240 = scalar_lea.vmem %s4, %s239
      %p241 = pneg %p154
      %p242 = pneg %p151
      %p243 = pneg %p175
      %p244 = pneg %p172
      %s245 = smul.u32 8, %s18
      %p246 = scmp.lt.s32.totalorder %s245, 15
      %s247 = scalar_select %p246, %s245, 15
      %s248 = smul.addr %s247, 8
      %s249 = scalar_lea.vmem %s0, %s248
      %s250 = smul.u32 8, %s18
      %s251 = smul.u32 8, %s18
      %p252 = scmp.lt.s32.totalorder %s251, 15
      %s253 = scalar_select %p252, %s251, 15
      %s254 = smul.addr %s253, 8
      %s255 = scalar_lea.vmem %s3, %s254
      %s256 = smul.u32 8, %s18
      %s257 = smul.u32 8, %s18
      %p258 = scmp.lt.s32.totalorder %s257, 15
      %s259 = scalar_select %p258, %s257, 15
      %s260 = smul.addr %s259, 8
      %s261 = scalar_lea.vmem %s4, %s260
      %s262 = smul.u32 8, %s18
      %v264 = vld [vmem:[%s249] sm:$0xff]
      %v265 = vld [vmem:[%s249 + $0x8] sm:$0xff]
      %v266 = vld [vmem:[%s249 + $0x10] sm:$0xff]
      %v267 = vld [vmem:[%s249 + $0x18] sm:$0xff]
      %v268 = vld [vmem:[%s249 + $0x20] sm:$0xff]
      %v269 = vld [vmem:[%s249 + $0x28] sm:$0xff]
      %v270 = vld [vmem:[%s249 + $0x30] sm:$0xff]
      %v271 = vld [vmem:[%s249 + $0x38] sm:$0xff]
      %v272 = vpack.c.bf16 %v265, %v264
      %v273 = vpack.c.bf16 %v267, %v266
      %v274 = vpack.c.bf16 %v269, %v268
      %v275 = vpack.c.bf16 %v271, %v270
      %v276 = vld [vmem:[%s1] sm:$0xff]
      %v277 = vld [vmem:[%s1 + $0x8] sm:$0xf]
      %v278 = vld [vmem:[%s1 + $0xc] sm:$0xff]
      %v279 = vld [vmem:[%s1 + $0x14] sm:$0xf]
      %v280 = vld [vmem:[%s1 + $0x18] sm:$0xff]
      %v281 = vld [vmem:[%s1 + $0x20] sm:$0xf]
      %v282 = vld [vmem:[%s1 + $0x24] sm:$0xff]
      %v283 = vld [vmem:[%s1 + $0x2c] sm:$0xf]
      %v284 = vld [vmem:[%s1 + $0x30] sm:$0xff]
      %v285 = vld [vmem:[%s1 + $0x38] sm:$0xf]
      %v286 = vld [vmem:[%s1 + $0x3c] sm:$0xff]
      %v287 = vld [vmem:[%s1 + $0x44] sm:$0xf]
      %v288 = vld [vmem:[%s1 + $0x48] sm:$0xff]
      %v289 = vld [vmem:[%s1 + $0x50] sm:$0xf]
      %v290 = vld [vmem:[%s1 + $0x54] sm:$0xff]
      %v291 = vld [vmem:[%s1 + $0x5c] sm:$0xf]
      %v292 = vld [vmem:[%s1 + $0x60] sm:$0xff]
      %v293 = vld [vmem:[%s1 + $0x68] sm:$0xf]
      %v294 = vld [vmem:[%s1 + $0x6c] sm:$0xff]
      %v295 = vld [vmem:[%s1 + $0x74] sm:$0xf]
      %v296 = vld [vmem:[%s1 + $0x78] sm:$0xff]
      %v297 = vld [vmem:[%s1 + $0x80] sm:$0xf]
      %v298 = vld [vmem:[%s1 + $0x84] sm:$0xff]
      %v299 = vld [vmem:[%s1 + $0x8c] sm:$0xf]
      %v300 = vld [vmem:[%s1 + $0x90] sm:$0xff]
      %v301 = vld [vmem:[%s1 + $0x98] sm:$0xf]
      %v302 = vld [vmem:[%s1 + $0x9c] sm:$0xff]
      %v303 = vld [vmem:[%s1 + $0xa4] sm:$0xf]
      %v304 = vld [vmem:[%s1 + $0xa8] sm:$0xff]
      %v305 = vld [vmem:[%s1 + $0xb0] sm:$0xf]
      %v306 = vld [vmem:[%s1 + $0xb4] sm:$0xff]
      %v307 = vld [vmem:[%s1 + $0xbc] sm:$0xf]
      %v308 = vld [vmem:[%s2] sm:$0x7]
      %v310 = vperm.slane %v308, 0
      %v311 = vperm.slane %v308, 1
      %v312 = vperm.slane %v308, 2
      %v348 = vunpack.c.l.b16 %v276
      %v349 = vunpack.c.h.b16 %v276
      %v350 = vunpack.c.l.b16 %v277
      %v351 = vunpack.c.l.b16 %v278
      %v352 = vunpack.c.h.b16 %v278
      %v353 = vunpack.c.l.b16 %v279
      %v354 = vunpack.c.l.b16 %v280
      %v355 = vunpack.c.h.b16 %v280
      %v356 = vunpack.c.l.b16 %v281
      %v357 = vunpack.c.l.b16 %v282
      %v358 = vunpack.c.h.b16 %v282
      %v359 = vunpack.c.l.b16 %v283
      %v360 = vunpack.c.l.b16 %v284
      %v361 = vunpack.c.h.b16 %v284
      %v362 = vunpack.c.l.b16 %v285
      %v363 = vunpack.c.l.b16 %v286
      %v364 = vunpack.c.h.b16 %v286
      %v365 = vunpack.c.l.b16 %v287
      %v366 = vunpack.c.l.b16 %v288
      %v367 = vunpack.c.h.b16 %v288
      %v368 = vunpack.c.l.b16 %v289
      %v369 = vunpack.c.l.b16 %v290
      %v370 = vunpack.c.h.b16 %v290
      %v371 = vunpack.c.l.b16 %v291
      %v372 = vunpack.c.l.b16 %v292
      %v373 = vunpack.c.h.b16 %v292
      %v374 = vunpack.c.l.b16 %v293
      %v375 = vunpack.c.l.b16 %v294
      %v376 = vunpack.c.h.b16 %v294
      %v377 = vunpack.c.l.b16 %v295
      %v378 = vunpack.c.l.b16 %v296
      %v379 = vunpack.c.h.b16 %v296
      %v380 = vunpack.c.l.b16 %v297
      %v381 = vunpack.c.l.b16 %v298
      %v382 = vunpack.c.h.b16 %v298
      %v383 = vunpack.c.l.b16 %v299
      %v384 = vunpack.c.l.b16 %v300
      %v385 = vunpack.c.h.b16 %v300
      %v386 = vunpack.c.l.b16 %v301
      %v387 = vunpack.c.l.b16 %v302
      %v388 = vunpack.c.h.b16 %v302
      %v389 = vunpack.c.l.b16 %v303
      %v390 = vunpack.c.l.b16 %v304
      %v391 = vunpack.c.h.b16 %v304
      %v392 = vunpack.c.l.b16 %v305
      %v393 = vunpack.c.l.b16 %v306
      %v394 = vunpack.c.h.b16 %v306
      %v395 = vunpack.c.l.b16 %v307
      %v396 = vpack.c.b16 %v351, %v348
      %v397 = vpack.c.b16 %v352, %v349
      %v398 = vpack.c.b16 %v353, %v350
      %v399 = vpack.c.b16 %v357, %v354
      %v400 = vpack.c.b16 %v358, %v355
      %v401 = vpack.c.b16 %v359, %v356
      %v402 = vpack.c.b16 %v363, %v360
      %v403 = vpack.c.b16 %v364, %v361
      %v404 = vpack.c.b16 %v365, %v362
      %v405 = vpack.c.b16 %v369, %v366
      %v406 = vpack.c.b16 %v370, %v367
      %v407 = vpack.c.b16 %v371, %v368
      %v408 = vpack.c.b16 %v375, %v372
      %v409 = vpack.c.b16 %v376, %v373
      %v410 = vpack.c.b16 %v377, %v374
      %v411 = vpack.c.b16 %v381, %v378
      %v412 = vpack.c.b16 %v382, %v379
      %v413 = vpack.c.b16 %v383, %v380
      %v414 = vpack.c.b16 %v387, %v384
      %v415 = vpack.c.b16 %v388, %v385
      %v416 = vpack.c.b16 %v389, %v386
      %v417 = vpack.c.b16 %v393, %v390
      %v418 = vpack.c.b16 %v394, %v391
      %v419 = vpack.c.b16 %v395, %v392
      %444 = vmatpush.bf16.msra.mxu0 %v417
      %445 = vmatpush.bf16.msra.mxu0 %v414
      %446 = vmatpush.bf16.msra.mxu0 %v411
      %447 = vmatpush.bf16.msra.mxu0 %v408
      %448 = vmatpush.bf16.msra.mxu0 %v405
      %449 = vmatpush.bf16.msra.mxu0 %v402
      %450 = vmatpush.bf16.msra.mxu0 %v399
      %451 = vmatpush.bf16.msra.mxu0 %v396
      %452 = vmatmul.bf16.gmra.mxu0 %v272
      %v453 = vpop.f32.mrf.mxu0
      %v454 = vadd.f32 %v310, %v453
      %v455 = vpop.f32.mrf.mxu0
      %v456 = vadd.f32 %v310, %v455
      %457 = vmatmul.bf16.gmra.mxu0 %v273
      %v458 = vpop.f32.mrf.mxu0
      %v459 = vadd.f32 %v310, %v458
      %v460 = vpop.f32.mrf.mxu0
      %v461 = vadd.f32 %v310, %v460
      %462 = vmatmul.bf16.gmra.mxu0 %v274
      %v463 = vpop.f32.mrf.mxu0
      %v464 = vadd.f32 %v310, %v463
      %v465 = vpop.f32.mrf.mxu0
      %v466 = vadd.f32 %v310, %v465
      %467 = vmatmul.bf16.gmra.mxu0 %v275
      %v468 = vpop.f32.mrf.mxu0
      %v469 = vadd.f32 %v310, %v468
      %v470 = vpop.f32.mrf.mxu0
      %v471 = vadd.f32 %v310, %v470
      %472 = vdwg.mxu0
      %473 = vmatpush.bf16.msra.mxu0 %v418
      %474 = vmatpush.bf16.msra.mxu0 %v415
      %475 = vmatpush.bf16.msra.mxu0 %v412
      %476 = vmatpush.bf16.msra.mxu0 %v409
      %477 = vmatpush.bf16.msra.mxu0 %v406
      %478 = vmatpush.bf16.msra.mxu0 %v403
      %479 = vmatpush.bf16.msra.mxu0 %v400
      %480 = vmatpush.bf16.msra.mxu0 %v397
      %481 = vmatmul.bf16.gmra.mxu0 %v272
      %v482 = vpop.f32.mrf.mxu0
      %v483 = vadd.f32 %v311, %v482
      %v484 = vpop.f32.mrf.mxu0
      %v485 = vadd.f32 %v311, %v484
      %486 = vmatmul.bf16.gmra.mxu0 %v273
      %v487 = vpop.f32.mrf.mxu0
      %v488 = vadd.f32 %v311, %v487
      %v489 = vpop.f32.mrf.mxu0
      %v490 = vadd.f32 %v311, %v489
      %491 = vmatmul.bf16.gmra.mxu0 %v274
      %v492 = vpop.f32.mrf.mxu0
      %v493 = vadd.f32 %v311, %v492
      %v494 = vpop.f32.mrf.mxu0
      %v495 = vadd.f32 %v311, %v494
      %496 = vmatmul.bf16.gmra.mxu0 %v275
      %v497 = vpop.f32.mrf.mxu0
      %v498 = vadd.f32 %v311, %v497
      %v499 = vpop.f32.mrf.mxu0
      %v500 = vadd.f32 %v311, %v499
      %501 = vdwg.mxu0
      %502 = vmatpush.bf16.msra.mxu0 %v419
      %503 = vmatpush.bf16.msra.mxu0 %v416
      %504 = vmatpush.bf16.msra.mxu0 %v413
      %505 = vmatpush.bf16.msra.mxu0 %v410
      %506 = vmatpush.bf16.msra.mxu0 %v407
      %507 = vmatpush.bf16.msra.mxu0 %v404
      %508 = vmatpush.bf16.msra.mxu0 %v401
      %509 = vmatpush.bf16.msra.mxu0 %v398
      %510 = vmatmul.bf16.gmra.mxu0 %v272
      %v511 = vpop.f32.mrf.mxu0
      %v512 = vadd.f32 %v312, %v511
      %v513 = vpop.f32.mrf.mxu0
      %v514 = vadd.f32 %v312, %v513
      %515 = vmatmul.bf16.gmra.mxu0 %v273
      %v516 = vpop.f32.mrf.mxu0
      %v517 = vadd.f32 %v312, %v516
      %v518 = vpop.f32.mrf.mxu0
      %v519 = vadd.f32 %v312, %v518
      %520 = vmatmul.bf16.gmra.mxu0 %v274
      %v521 = vpop.f32.mrf.mxu0
      %v522 = vadd.f32 %v312, %v521
      %v523 = vpop.f32.mrf.mxu0
      %v524 = vadd.f32 %v312, %v523
      %525 = vmatmul.bf16.gmra.mxu0 %v275
      %v526 = vpop.f32.mrf.mxu0
      %v527 = vadd.f32 %v312, %v526
      %v528 = vpop.f32.mrf.mxu0
      %v529 = vadd.f32 %v312, %v528
      %530 = vdwg.mxu0
      %531 = vst [vmem:[%s255] sm:$0xff] %v454
      %532 = vst [vmem:[%s255 + $0x8] sm:$0xff] %v456
      %533 = vst [vmem:[%s255 + $0x10] sm:$0xff] %v459
      %534 = vst [vmem:[%s255 + $0x18] sm:$0xff] %v461
      %535 = vst [vmem:[%s255 + $0x20] sm:$0xff] %v464
      %536 = vst [vmem:[%s255 + $0x28] sm:$0xff] %v466
      %537 = vst [vmem:[%s255 + $0x30] sm:$0xff] %v469
      %538 = vst [vmem:[%s255 + $0x38] sm:$0xff] %v471
      %539 = vst [vmem:[%s261] sm:$0xff] %v512
      %540 = vst [vmem:[%s261 + $0x8] sm:$0xff] %v514
      %541 = vst [vmem:[%s261 + $0x10] sm:$0xff] %v517
      %542 = vst [vmem:[%s261 + $0x18] sm:$0xff] %v519
      %543 = vst [vmem:[%s261 + $0x20] sm:$0xff] %v522
      %544 = vst [vmem:[%s261 + $0x28] sm:$0xff] %v524
      %545 = vst [vmem:[%s261 + $0x30] sm:$0xff] %v527
      %546 = vst [vmem:[%s261 + $0x38] sm:$0xff] %v529
      %p547 = scmp.eq.s32.totalorder %s18, 0
      // Predicated region
      $region33: #{main_model_forward.14} parent=31 // pred_check
        %p548 = pneg %p547
      $region34: #{main_model_forward.14} parent=31 // pred_check_branch
        %550 = sbr.rel (%p548) target = $region36
      $region35: #{main_model_forward.14} parent=31 // pred_region
        %551 = vst [vmem:[%s5] sm:$0xff] 0.0
        %552 = vst [vmem:[%s5 + $0x8] sm:$0xff] 0.0
        %553 = vst [vmem:[%s5 + $0x10] sm:$0xff] 0.0
        %554 = vst [vmem:[%s5 + $0x18] sm:$0xff] 0.0
        %555 = vst [vmem:[%s5 + $0x20] sm:$0xff] 0.0
        %556 = vst [vmem:[%s5 + $0x28] sm:$0xff] 0.0
        %557 = vst [vmem:[%s5 + $0x30] sm:$0xff] 0.0
        %558 = vst [vmem:[%s5 + $0x38] sm:$0xff] 0.0
        %559 = vst [vmem:[%s5 + $0x40] sm:$0xff] 0.0
        %560 = vst [vmem:[%s5 + $0x48] sm:$0xff] 0.0
        %561 = vst [vmem:[%s5 + $0x50] sm:$0xff] 0.0
        %562 = vst [vmem:[%s5 + $0x58] sm:$0xff] 0.0
        %563 = vst [vmem:[%s5 + $0x60] sm:$0xff] 0.0
        %564 = vst [vmem:[%s5 + $0x68] sm:$0xff] 0.0
        %565 = vst [vmem:[%s5 + $0x70] sm:$0xff] 0.0
        %566 = vst [vmem:[%s5 + $0x78] sm:$0xff] 0.0
        %567 = vst [vmem:[%s6] sm:$0xf] 0.0
      $region36: #{main_model_forward.14} parent=31 // pred_fallthru
        _
      %v568 = vld [vmem:[%s5] sm:$0xff]
      %v569 = vld [vmem:[%s5 + $0x8] sm:$0xff]
      %v570 = vld [vmem:[%s5 + $0x10] sm:$0xff]
      %v571 = vld [vmem:[%s5 + $0x18] sm:$0xff]
      %v572 = vld [vmem:[%s5 + $0x20] sm:$0xff]
      %v573 = vld [vmem:[%s5 + $0x28] sm:$0xff]
      %v574 = vld [vmem:[%s5 + $0x30] sm:$0xff]
      %v575 = vld [vmem:[%s5 + $0x38] sm:$0xff]
      %v576 = vld [vmem:[%s5 + $0x40] sm:$0xff]
      %v577 = vld [vmem:[%s5 + $0x48] sm:$0xff]
      %v578 = vld [vmem:[%s5 + $0x50] sm:$0xff]
      %v579 = vld [vmem:[%s5 + $0x58] sm:$0xff]
      %v580 = vld [vmem:[%s5 + $0x60] sm:$0xff]
      %v581 = vld [vmem:[%s5 + $0x68] sm:$0xff]
      %v582 = vld [vmem:[%s5 + $0x70] sm:$0xff]
      %v583 = vld [vmem:[%s5 + $0x78] sm:$0xff]
      %v584 = vpack.c.bf16 %v485, %v483
      %v585 = vpack.c.bf16 %v490, %v488
      %v586 = vpack.c.bf16 %v495, %v493
      %v587 = vpack.c.bf16 %v500, %v498
      %v588 = vpack.c.bf16 %v514, %v512
      %v589 = vpack.c.bf16 %v519, %v517
      %v590 = vpack.c.bf16 %v524, %v522
      %v591 = vpack.c.bf16 %v529, %v527
      %592 = vxpose.xlu0.c.b16.start [1/8] %v584, 128
      %593 = vxpose.xlu0.c.b16.cont [2/8] %v585, 128
      %594 = vxpose.xlu0.c.b16.cont [3/8] %v586, 128
      %595 = vxpose.xlu0.c.b16.cont [4/8] %v587, 128
      %596 = vxpose.xlu0.c.b16.cont [5/8] 0, 128
      %597 = vxpose.xlu0.c.b16.cont [6/8] 0, 128
      %598 = vxpose.xlu0.c.b16.cont [7/8] 0, 128
      %599 = vxpose.xlu0.c.b16.end [8/8] 0, 128
      %v600 = vpop.trf.xlu0
      %v601 = vpop.trf.xlu0
      %v602 = vpop.trf.xlu0
      %v603 = vpop.trf.xlu0
      %v604 = vpop.trf.xlu0
      %v605 = vpop.trf.xlu0
      %v606 = vpop.trf.xlu0
      %v607 = vpop.trf.xlu0
      %vm608 = vcmask 523264
      %v610 = vsel %vm608, %v600, 0
      %v613 = vsel %vm608, %v601, 0
      %v616 = vsel %vm608, %v602, 0
      %v619 = vsel %vm608, %v603, 0
      %v622 = vsel %vm608, %v604, 0
      %v625 = vsel %vm608, %v605, 0
      %v628 = vsel %vm608, %v606, 0
      %v631 = vsel %vm608, %v607, 0
      %633 = vmatpush.bf16.msra.mxu0 0
      %634 = vmatpush.bf16.msra.mxu0 0
      %635 = vmatpush.bf16.msra.mxu0 0
      %636 = vmatpush.bf16.msra.mxu0 0
      %637 = vmatpush.bf16.msra.mxu0 %v591
      %638 = vmatpush.bf16.msra.mxu0 %v590
      %639 = vmatpush.bf16.msra.mxu0 %v589
      %640 = vmatpush.bf16.msra.mxu0 %v588
      %641 = vmatmul.bf16.gmra.mxu0 %v610
      %v642 = vpop.f32.mrf.mxu0
      %v643 = vadd.f32 0.0, %v642
      %v644 = vpop.f32.mrf.mxu0
      %v645 = vadd.f32 0.0, %v644
      %646 = vmatmul.bf16.gmra.mxu0 %v613
      %v647 = vpop.f32.mrf.mxu0
      %v648 = vadd.f32 0.0, %v647
      %v649 = vpop.f32.mrf.mxu0
      %v650 = vadd.f32 0.0, %v649
      %651 = vmatmul.bf16.gmra.mxu0 %v616
      %v652 = vpop.f32.mrf.mxu0
      %v653 = vadd.f32 0.0, %v652
      %v654 = vpop.f32.mrf.mxu0
      %v655 = vadd.f32 0.0, %v654
      %656 = vmatmul.bf16.gmra.mxu0 %v619
      %v657 = vpop.f32.mrf.mxu0
      %v658 = vadd.f32 0.0, %v657
      %v659 = vpop.f32.mrf.mxu0
      %v660 = vadd.f32 0.0, %v659
      %661 = vmatmul.bf16.gmra.mxu0 %v622
      %v662 = vpop.f32.mrf.mxu0
      %v663 = vadd.f32 0.0, %v662
      %v664 = vpop.f32.mrf.mxu0
      %v665 = vadd.f32 0.0, %v664
      %666 = vmatmul.bf16.gmra.mxu0 %v625
      %v667 = vpop.f32.mrf.mxu0
      %v668 = vadd.f32 0.0, %v667
      %v669 = vpop.f32.mrf.mxu0
      %v670 = vadd.f32 0.0, %v669
      %671 = vmatmul.bf16.gmra.mxu0 %v628
      %v672 = vpop.f32.mrf.mxu0
      %v673 = vadd.f32 0.0, %v672
      %v674 = vpop.f32.mrf.mxu0
      %v675 = vadd.f32 0.0, %v674
      %676 = vmatmul.bf16.gmra.mxu0 %v631
      %v677 = vpop.f32.mrf.mxu0
      %v678 = vadd.f32 0.0, %v677
      %v679 = vpop.f32.mrf.mxu0
      %v680 = vadd.f32 0.0, %v679
      %681 = vdwg.mxu0
      %v682 = vadd.f32 %v568, %v643
      %v683 = vadd.f32 %v569, %v645
      %v684 = vadd.f32 %v570, %v648
      %v685 = vadd.f32 %v571, %v650
      %v686 = vadd.f32 %v572, %v653
      %v687 = vadd.f32 %v573, %v655
      %v688 = vadd.f32 %v574, %v658
      %v689 = vadd.f32 %v575, %v660
      %v690 = vadd.f32 %v576, %v663
      %v691 = vadd.f32 %v577, %v665
      %v692 = vadd.f32 %v578, %v668
      %v693 = vadd.f32 %v579, %v670
      %v694 = vadd.f32 %v580, %v673
      %v695 = vadd.f32 %v581, %v675
      %v696 = vadd.f32 %v582, %v678
      %v697 = vadd.f32 %v583, %v680
      %698 = vst [vmem:[%s5] sm:$0xff] %v682
      %699 = vst [vmem:[%s5 + $0x8] sm:$0xff] %v683
      %700 = vst [vmem:[%s5 + $0x10] sm:$0xff] %v684
      %701 = vst [vmem:[%s5 + $0x18] sm:$0xff] %v685
      %702 = vst [vmem:[%s5 + $0x20] sm:$0xff] %v686
      %703 = vst [vmem:[%s5 + $0x28] sm:$0xff] %v687
      %704 = vst [vmem:[%s5 + $0x30] sm:$0xff] %v688
      %705 = vst [vmem:[%s5 + $0x38] sm:$0xff] %v689
      %706 = vst [vmem:[%s5 + $0x40] sm:$0xff] %v690
      %707 = vst [vmem:[%s5 + $0x48] sm:$0xff] %v691
      %708 = vst [vmem:[%s5 + $0x50] sm:$0xff] %v692
      %709 = vst [vmem:[%s5 + $0x58] sm:$0xff] %v693
      %710 = vst [vmem:[%s5 + $0x60] sm:$0xff] %v694
      %711 = vst [vmem:[%s5 + $0x68] sm:$0xff] %v695
      %712 = vst [vmem:[%s5 + $0x70] sm:$0xff] %v696
      %713 = vst [vmem:[%s5 + $0x78] sm:$0xff] %v697
      %v714 = vld [vmem:[%s6] sm:$0xf]
      %v715 = vadd.f32 %v483, %v485
      %v716 = vadd.f32 %v715, %v488
      %v717 = vadd.f32 %v716, %v490
      %v718 = vadd.f32 %v717, %v493
      %v719 = vadd.f32 %v718, %v495
      %v720 = vadd.f32 %v719, %v498
      %v721 = vadd.f32 %v720, %v500
      %v722 = vrot.slane %v721, 4
      %v723 = vadd.f32 %v721, %v722
      %v724 = vrot.slane %v723, 2
      %v725 = vadd.f32 %v723, %v724
      %v726 = vrot.slane %v725, 1
      %v727 = vadd.f32 %v725, %v726
      %v728 = vadd.f32 %v512, %v514
      %v729 = vadd.f32 %v728, %v517
      %v730 = vadd.f32 %v729, %v519
      %v731 = vadd.f32 %v730, %v522
      %v732 = vadd.f32 %v731, %v524
      %v733 = vadd.f32 %v732, %v527
      %v734 = vadd.f32 %v733, %v529
      %v735 = vrot.slane %v734, 4
      %v736 = vadd.f32 %v734, %v735
      %v737 = vrot.slane %v736, 2
      %v738 = vadd.f32 %v736, %v737
      %v739 = vrot.slane %v738, 1
      %v740 = vadd.f32 %v738, %v739
      %v741 = vmul.f32 %v454, %v454
      %v742 = vmul.f32 %v456, %v456
      %v743 = vmul.f32 %v459, %v459
      %v744 = vmul.f32 %v461, %v461
      %v745 = vmul.f32 %v464, %v464
      %v746 = vmul.f32 %v466, %v466
      %v747 = vmul.f32 %v469, %v469
      %v748 = vmul.f32 %v471, %v471
      %v749 = vadd.f32 %v741, %v742
      %v750 = vadd.f32 %v749, %v743
      %v751 = vadd.f32 %v750, %v744
      %v752 = vadd.f32 %v751, %v745
      %v753 = vadd.f32 %v752, %v746
      %v754 = vadd.f32 %v753, %v747
      %v755 = vadd.f32 %v754, %v748
      %v756 = vrot.slane %v755, 4
      %v757 = vadd.f32 %v755, %v756
      %v758 = vrot.slane %v757, 2
      %v759 = vadd.f32 %v757, %v758
      %v760 = vrot.slane %v759, 1
      %v761 = vadd.f32 %v759, %v760
      %v762 = vmul.f32 %v483, %v483
      %v763 = vmul.f32 %v485, %v485
      %v764 = vmul.f32 %v488, %v488
      %v765 = vmul.f32 %v490, %v490
      %v766 = vmul.f32 %v493, %v493
      %v767 = vmul.f32 %v495, %v495
      %v768 = vmul.f32 %v498, %v498
      %v769 = vmul.f32 %v500, %v500
      %v770 = vadd.f32 %v762, %v763
      %v771 = vadd.f32 %v770, %v764
      %v772 = vadd.f32 %v771, %v765
      %v773 = vadd.f32 %v772, %v766
      %v774 = vadd.f32 %v773, %v767
      %v775 = vadd.f32 %v774, %v768
      %v776 = vadd.f32 %v775, %v769
      %v777 = vrot.slane %v776, 4
      %v778 = vadd.f32 %v776, %v777
      %v779 = vrot.slane %v778, 2
      %v780 = vadd.f32 %v778, %v779
      %v781 = vrot.slane %v780, 1
      %v782 = vadd.f32 %v780, %v781
      %vm783 = vcmask 1040384
      %v784 = vsel %vm783, %v727, %v740
      %vm785 = vcmask 1041408
      %v786 = vsel %vm785, %v784, %v761
      %vm787 = vcmask 1042432
      %v788 = vsel %vm787, %v786, %v782
      %v789 = vadd.f32 %v714, %v788
      %790 = vst [vmem:[%s6] sm:$0xf] %v789
      %s791 = smul.u32 8, %s18
      %p792 = scmp.lt.s32.totalorder %s791, 15
      %s793 = scalar_select %p792, %s791, 15
      %s794 = smul.addr %s793, 8
      %s795 = scalar_lea.vmem %s3, %s794
      %s796 = smul.u32 8, %s18
      %p797 = scmp.lt.s32.totalorder %s796, 15
      %s798 = scalar_select %p797, %s796, 15
      %s799 = smul.addr %s798, 8
      %s800 = scalar_lea.vmem %s4, %s799
      // Predicated region
      $region37: #{main_model_forward.14} parent=31 // pred_check
        %p801 = pneg %p104
      $region38: #{main_model_forward.14} parent=31 // pred_check_branch
        %803 = sbr.rel (%p801) target = $region40
      $region39: #{main_model_forward.14} parent=31 // pred_region
        %s804 = smul.u32 8, %s18
      $region40: #{main_model_forward.14} parent=31 // pred_fallthru
        _
      // Predicated region
      $region41: #{main_model_forward.14} parent=31 // pred_check
        %p805 = pneg %p130
      $region42: #{main_model_forward.14} parent=31 // pred_check_branch
        %807 = sbr.rel (%p805) target = $region44
      $region43: #{main_model_forward.14} parent=31 // pred_region
        %s808 = smul.u32 8, %s18
      $region44: #{main_model_forward.14} parent=31 // pred_fallthru
        _
      // Predicated region
      $region45: #{main_model_forward.14} parent=31 // pred_check
        %p809 = pneg %p151
      $region46: #{main_model_forward.14} parent=31 // pred_check_branch
        %811 = sbr.rel (%p809) target = $region48
      $region47: #{main_model_forward.14} parent=31 // pred_region
        _
      $region48: #{main_model_forward.14} parent=31 // pred_fallthru
        _
      // Predicated region
      $region49: #{main_model_forward.14} parent=31 // pred_check
        %p812 = pneg %p172
      $region50: #{main_model_forward.14} parent=31 // pred_check_branch
        %814 = sbr.rel (%p812) target = $region52
      $region51: #{main_model_forward.14} parent=31 // pred_region
        _
      $region52: #{main_model_forward.14} parent=31 // pred_fallthru
        _
      // Predicated region
      $region53: #{main_model_forward.14} parent=31 // pred_check
        %p815 = pneg %p151
      $region54: #{main_model_forward.14} parent=31 // pred_check_branch
        %817 = sbr.rel (%p815) target = $region56
      $region55: #{main_model_forward.14} parent=31 // pred_region
        _
      $region56: #{main_model_forward.14} parent=31 // pred_fallthru
        _
      // Predicated region
      $region57: #{main_model_forward.14} parent=31 // pred_check
        %p818 = pneg %p172
      $region58: #{main_model_forward.14} parent=31 // pred_check_branch
        %820 = sbr.rel (%p818) target = $region60
      $region59: #{main_model_forward.14} parent=31 // pred_region
        _
      $region60: #{main_model_forward.14} parent=31 // pred_fallthru
        _
    $region32: #{main_model_forward.14} parent=5 // pred_fallthru
      _
    %p821 = scmp.le.s32.totalorder 2, %s13
    // Predicated region
    $region61: #{main_model_forward.14} parent=5 // pred_check
      %p822 = pneg %p821
    $region62: #{main_model_forward.14} parent=5 // pred_check_branch
      %824 = sbr.rel (%p822) target = $region64
    $region63: #{main_model_forward.14} parent=5 // pred_region
      %s825 = ssub.s32 %s13, 2
      // Predicated region
      $region65: #{main_model_forward.14} parent=63 // pred_check
        %p826 = pneg %p110
      $region66: #{main_model_forward.14} parent=63 // pred_check_branch
        %828 = sbr.rel (%p826) target = $region68
      $region67: #{main_model_forward.14} parent=63 // pred_region
        %s829 = smul.u32 8, %s19
        %p830 = scmp.lt.s32.totalorder %s829, 15
        %s831 = scalar_select %p830, %s829, 15
        %s832 = smul.addr %s831, 8
        %s833 = scalar_lea.vmem %s3, %s832
      $region68: #{main_model_forward.14} parent=63 // pred_fallthru
        _
      // Predicated region
      $region69: #{main_model_forward.14} parent=63 // pred_check
        %p834 = pneg %p136
      $region70: #{main_model_forward.14} parent=63 // pred_check_branch
        %836 = sbr.rel (%p834) target = $region72
      $region71: #{main_model_forward.14} parent=63 // pred_region
        %s837 = smul.u32 8, %s19
        %p838 = scmp.lt.s32.totalorder %s837, 15
        %s839 = scalar_select %p838, %s837, 15
        %s840 = smul.addr %s839, 8
        %s841 = scalar_lea.vmem %s4, %s840
      $region72: #{main_model_forward.14} parent=63 // pred_fallthru
        _
    $region64: #{main_model_forward.14} parent=5 // pred_fallthru
      _
  $region6: #{main_model_forward.14} parent=0 // loop_footer
    %s17 = sadd.s32 1, %s13
  $region7: #{main_model_forward.14} parent=0 // loop_footer_branch
    %12 = sbr.rel target = $region3
  $region8: #{main_model_forward.14} parent=0 // loop_exit
    _

// kernel: main_model_forward.15
$region0: #{main_model_forward.15}
  #allocation0 [shape = 'u32[]', space=smem, size = 0x4, offset = 0x4, fixed_abs, tag = 'smem constant byte address 0x4 - core index']
  #allocation1 [shape = 'u32[72,128]{1,0:T(1,128)}', space=vmem, size = 0x9000, scoped, tag = 'internal scratch']
  %s0 = inlined_call_operand.vmem [shape: f32[128,128], index: 0, kind: input, shape index: {}]
  %s1 = inlined_call_operand.vmem [shape: f32[128,128], index: 1, kind: input, shape index: {}]
  %s2 = inlined_call_operand.vmem [shape: f32[128,128], index: 2, kind: input, shape index: {}]
  %s3 = inlined_call_operand.vmem [shape: f32[4,128], index: 3, kind: input, shape index: {}]
  %s4 = inlined_call_operand.vmem [shape: bf16[128,128], index: 4, kind: input, shape index: {}]
  %s5 = inlined_call_operand.vmem [shape: f32[128,128], index: 5, kind: input, shape index: {}]
  %s6 = inlined_call_operand.vmem [shape: f32[1,128], index: 6, kind: input, shape index: {}]
  %s7 = inlined_call_operand.vmem [shape: f32[1,128], index: 7, kind: input, shape index: {}]
  %s8 = inlined_call_operand.vmem [shape: f32[128,128], index: 8, kind: output, shape index: {}]
  %s9 = sld [smem:[#allocation0]]
  $region65: #{main_model_forward.15} parent=0
    _
  %s11 = ssub.s32 1, %s9
  %s12 = scalar_select 0, %s11, %s9
  loop: start=0, step=1, limit=4
  $region2: #{main_model_forward.15} parent=0 // loop_pre_header
    _
  $region3: #{main_model_forward.15} parent=0 // loop_header
    %s14 = sphi 0, %s18
    %p15 = scmp.ge.s32.totalorder %s14, 4
    %s24 = sphi 0, %s26
    %s27 = sphi 0, %s24
    %s28 = sphi 0, %s27
    %s44 = sphi 0, %s28
    %s48 = sphi 0, %s48
    %s50 = sphi 0, %s48
    %s51 = sphi 0, %s50
    %s65 = sphi 0, %s51
    %s69 = sphi 0, %s69
    %s71 = sphi 0, %s69
    %s72 = sphi 0, %s71
    %s86 = sphi 0, %s72
    %s90 = sphi 0, %s90
    %s92 = sphi 0, %s90
    %s93 = sphi 0, %s92
    %s107 = sphi 0, %s93
    %s113 = sphi 0, %s115
    %s116 = sphi 0, %s113
    %s117 = sphi 0, %s116
    %s133 = sphi 0, %s117
    %s139 = sphi 0, %s141
    %s142 = sphi 0, %s139
    %s143 = sphi 0, %s142
    %s159 = sphi 0, %s143
    %s163 = sphi 0, %s163
    %s165 = sphi 0, %s163
    %s166 = sphi 0, %s165
    %s180 = sphi 0, %s166
    %s184 = sphi 0, %s184
    %s186 = sphi 0, %s184
    %s187 = sphi 0, %s186
    %s201 = sphi 0, %s187
    %s207 = sphi 0, %s209
    %s210 = sphi 0, %s207
    %s211 = sphi 0, %s210
    %s227 = sphi 0, %s211
  $region4: #{main_model_forward.15} parent=0 // loop_header_branch
    %17 = sbr.rel (%p15) target = $region8
  $region5: #{main_model_forward.15} parent=0 // loop_body
    %s19 = ssub.s32 %s14, 1
    %s20 = ssub.s32 %s14, 2
    %s21 = sadd.s32 %s14, 1
    %s22 = ssub.s32 %s14, %s21
    %p23 = scmp.eq.s32.totalorder %s22, 0
    %s25 = sadd.s32 %s24, 1
    %s26 = scalar_select %p23, %s24, %s25
    %p29 = pneg %p23
    %p30 = scmp.eq.s32.totalorder %s14, 1
    %p31 = por %p29, %p30
    %p32 = scmp.ne.s32.totalorder %s24, %s27
    %p33 = scmp.eq.s32.totalorder %s14, 0
    %p34 = por %p32, %p33
    %p35 = scmp.ne.s32.totalorder %s24, %s27
    %p36 = scmp.eq.s32.totalorder %s19, 1
    %p37 = por %p35, %p36
    %p38 = scmp.ne.s32.totalorder %s27, %s28
    %p39 = scmp.eq.s32.totalorder %s19, 0
    %p40 = por %p38, %p39
    %p41 = scmp.ne.s32.totalorder %s27, %s28
    %p42 = scmp.eq.s32.totalorder %s20, 1
    %p43 = por %p41, %p42
    %p45 = scmp.ne.s32.totalorder %s28, %s44
    %p46 = scmp.eq.s32.totalorder %s20, 0
    %p47 = por %p45, %p46
    %s49 = sadd.s32 %s48, 1
    %p52 = scmp.eq.s32.totalorder %s14, 1
    %p53 = scmp.ne.s32.totalorder %s48, %s50
    %p54 = scmp.eq.s32.totalorder %s14, 0
    %p55 = por %p53, %p54
    %p56 = scmp.ne.s32.totalorder %s48, %s50
    %p57 = scmp.eq.s32.totalorder %s19, 1
    %p58 = por %p56, %p57
    %p59 = scmp.ne.s32.totalorder %s50, %s51
    %p60 = scmp.eq.s32.totalorder %s19, 0
    %p61 = por %p59, %p60
    %p62 = scmp.ne.s32.totalorder %s50, %s51
    %p63 = scmp.eq.s32.totalorder %s20, 1
    %p64 = por %p62, %p63
    %p66 = scmp.ne.s32.totalorder %s51, %s65
    %p67 = scmp.eq.s32.totalorder %s20, 0
    %p68 = por %p66, %p67
    %s70 = sadd.s32 %s69, 1
    %p73 = scmp.eq.s32.totalorder %s14, 1
    %p74 = scmp.ne.s32.totalorder %s69, %s71
    %p75 = scmp.eq.s32.totalorder %s14, 0
    %p76 = por %p74, %p75
    %p77 = scmp.ne.s32.totalorder %s69, %s71
    %p78 = scmp.eq.s32.totalorder %s19, 1
    %p79 = por %p77, %p78
    %p80 = scmp.ne.s32.totalorder %s71, %s72
    %p81 = scmp.eq.s32.totalorder %s19, 0
    %p82 = por %p80, %p81
    %p83 = scmp.ne.s32.totalorder %s71, %s72
    %p84 = scmp.eq.s32.totalorder %s20, 1
    %p85 = por %p83, %p84
    %p87 = scmp.ne.s32.totalorder %s72, %s86
    %p88 = scmp.eq.s32.totalorder %s20, 0
    %p89 = por %p87, %p88
    %s91 = sadd.s32 %s90, 1
    %p94 = scmp.eq.s32.totalorder %s14, 1
    %p95 = scmp.ne.s32.totalorder %s90, %s92
    %p96 = scmp.eq.s32.totalorder %s14, 0
    %p97 = por %p95, %p96
    %p98 = scmp.ne.s32.totalorder %s90, %s92
    %p99 = scmp.eq.s32.totalorder %s19, 1
    %p100 = por %p98, %p99
    %p101 = scmp.ne.s32.totalorder %s92, %s93
    %p102 = scmp.eq.s32.totalorder %s19, 0
    %p103 = por %p101, %p102
    %p104 = scmp.ne.s32.totalorder %s92, %s93
    %p105 = scmp.eq.s32.totalorder %s20, 1
    %p106 = por %p104, %p105
    %p108 = scmp.ne.s32.totalorder %s93, %s107
    %p109 = scmp.eq.s32.totalorder %s20, 0
    %p110 = por %p108, %p109
    %s111 = ssub.s32 %s14, %s21
    %p112 = scmp.eq.s32.totalorder %s111, 0
    %s114 = sadd.s32 %s113, 1
    %s115 = scalar_select %p112, %s113, %s114
    %p118 = pneg %p112
    %p119 = scmp.eq.s32.totalorder %s14, 1
    %p120 = por %p118, %p119
    %p121 = scmp.ne.s32.totalorder %s113, %s116
    %p122 = scmp.eq.s32.totalorder %s14, 0
    %p123 = por %p121, %p122
    %p124 = scmp.ne.s32.totalorder %s113, %s116
    %p125 = scmp.eq.s32.totalorder %s19, 1
    %p126 = por %p124, %p125
    %p127 = scmp.ne.s32.totalorder %s116, %s117
    %p128 = scmp.eq.s32.totalorder %s19, 0
    %p129 = por %p127, %p128
    %p130 = scmp.ne.s32.totalorder %s116, %s117
    %p131 = scmp.eq.s32.totalorder %s20, 1
    %p132 = por %p130, %p131
    %p134 = scmp.ne.s32.totalorder %s117, %s133
    %p135 = scmp.eq.s32.totalorder %s20, 0
    %p136 = por %p134, %p135
    %s137 = ssub.s32 %s14, %s21
    %p138 = scmp.eq.s32.totalorder %s137, 0
    %s140 = sadd.s32 %s139, 1
    %s141 = scalar_select %p138, %s139, %s140
    %p144 = pneg %p138
    %p145 = scmp.eq.s32.totalorder %s14, 1
    %p146 = por %p144, %p145
    %p147 = scmp.ne.s32.totalorder %s139, %s142
    %p148 = scmp.eq.s32.totalorder %s14, 0
    %p149 = por %p147, %p148
    %p150 = scmp.ne.s32.totalorder %s139, %s142
    %p151 = scmp.eq.s32.totalorder %s19, 1
    %p152 = por %p150, %p151
    %p153 = scmp.ne.s32.totalorder %s142, %s143
    %p154 = scmp.eq.s32.totalorder %s19, 0
    %p155 = por %p153, %p154
    %p156 = scmp.ne.s32.totalorder %s142, %s143
    %p157 = scmp.eq.s32.totalorder %s20, 1
    %p158 = por %p156, %p157
    %p160 = scmp.ne.s32.totalorder %s143, %s159
    %p161 = scmp.eq.s32.totalorder %s20, 0
    %p162 = por %p160, %p161
    %s164 = sadd.s32 %s163, 1
    %p167 = scmp.eq.s32.totalorder %s14, 1
    %p168 = scmp.ne.s32.totalorder %s163, %s165
    %p169 = scmp.eq.s32.totalorder %s14, 0
    %p170 = por %p168, %p169
    %p171 = scmp.ne.s32.totalorder %s163, %s165
    %p172 = scmp.eq.s32.totalorder %s19, 1
    %p173 = por %p171, %p172
    %p174 = scmp.ne.s32.totalorder %s165, %s166
    %p175 = scmp.eq.s32.totalorder %s19, 0
    %p176 = por %p174, %p175
    %p177 = scmp.ne.s32.totalorder %s165, %s166
    %p178 = scmp.eq.s32.totalorder %s20, 1
    %p179 = por %p177, %p178
    %p181 = scmp.ne.s32.totalorder %s166, %s180
    %p182 = scmp.eq.s32.totalorder %s20, 0
    %p183 = por %p181, %p182
    %s185 = sadd.s32 %s184, 1
    %p188 = scmp.eq.s32.totalorder %s14, 1
    %p189 = scmp.ne.s32.totalorder %s184, %s186
    %p190 = scmp.eq.s32.totalorder %s14, 0
    %p191 = por %p189, %p190
    %p192 = scmp.ne.s32.totalorder %s184, %s186
    %p193 = scmp.eq.s32.totalorder %s19, 1
    %p194 = por %p192, %p193
    %p195 = scmp.ne.s32.totalorder %s186, %s187
    %p196 = scmp.eq.s32.totalorder %s19, 0
    %p197 = por %p195, %p196
    %p198 = scmp.ne.s32.totalorder %s186, %s187
    %p199 = scmp.eq.s32.totalorder %s20, 1
    %p200 = por %p198, %p199
    %p202 = scmp.ne.s32.totalorder %s187, %s201
    %p203 = scmp.eq.s32.totalorder %s20, 0
    %p204 = por %p202, %p203
    %s205 = ssub.s32 %s14, %s21
    %p206 = scmp.eq.s32.totalorder %s205, 0
    %s208 = sadd.s32 %s207, 1
    %s209 = scalar_select %p206, %s207, %s208
    %p212 = pneg %p206
    %p213 = scmp.eq.s32.totalorder %s14, 1
    %p214 = por %p212, %p213
    %p215 = scmp.ne.s32.totalorder %s207, %s210
    %p216 = scmp.eq.s32.totalorder %s14, 0
    %p217 = por %p215, %p216
    %p218 = scmp.ne.s32.totalorder %s207, %s210
    %p219 = scmp.eq.s32.totalorder %s19, 1
    %p220 = por %p218, %p219
    %p221 = scmp.ne.s32.totalorder %s210, %s211
    %p222 = scmp.eq.s32.totalorder %s19, 0
    %p223 = por %p221, %p222
    %p224 = scmp.ne.s32.totalorder %s210, %s211
    %p225 = scmp.eq.s32.totalorder %s20, 1
    %p226 = por %p224, %p225
    %p228 = scmp.ne.s32.totalorder %s211, %s227
    %p229 = scmp.eq.s32.totalorder %s20, 0
    %p230 = por %p228, %p229
    %p231 = scmp.le.s32.totalorder 1, %s14
    %p232 = scmp.lt.s32.totalorder %s14, 3
    %p233 = pnand %p231, %p232
    %p234 = pneg %p233
    // Predicated region
    $region9: #{main_model_forward.15} parent=5 // pred_check
      _
    $region10: #{main_model_forward.15} parent=5 // pred_check_branch
      %236 = sbr.rel (%p233) target = $region12
    $region11: #{main_model_forward.15} parent=5 // pred_region
      %s237 = ssub.s32 %s14, 1
      // Predicated region
      $region13: #{main_model_forward.15} parent=11 // pred_check
        %p238 = pneg %p61
      $region14: #{main_model_forward.15} parent=11 // pred_check_branch
        %240 = sbr.rel (%p238) target = $region16
      $region15: #{main_model_forward.15} parent=11 // pred_region
        _
      $region16: #{main_model_forward.15} parent=11 // pred_fallthru
        _
      // Predicated region
      $region17: #{main_model_forward.15} parent=11 // pred_check
        %p241 = pneg %p82
      $region18: #{main_model_forward.15} parent=11 // pred_check_branch
        %243 = sbr.rel (%p241) target = $region20
      $region19: #{main_model_forward.15} parent=11 // pred_region
        _
      $region20: #{main_model_forward.15} parent=11 // pred_fallthru
        _
      // Predicated region
      $region21: #{main_model_forward.15} parent=11 // pred_check
        %p244 = pneg %p103
      $region22: #{main_model_forward.15} parent=11 // pred_check_branch
        %246 = sbr.rel (%p244) target = $region24
      $region23: #{main_model_forward.15} parent=11 // pred_region
        _
      $region24: #{main_model_forward.15} parent=11 // pred_fallthru
        _
      // Predicated region
      $region25: #{main_model_forward.15} parent=11 // pred_check
        %p247 = pneg %p176
      $region26: #{main_model_forward.15} parent=11 // pred_check_branch
        %249 = sbr.rel (%p247) target = $region28
      $region27: #{main_model_forward.15} parent=11 // pred_region
        _
      $region28: #{main_model_forward.15} parent=11 // pred_fallthru
        _
      // Predicated region
      $region29: #{main_model_forward.15} parent=11 // pred_check
        %p250 = pneg %p197
      $region30: #{main_model_forward.15} parent=11 // pred_check_branch
        %252 = sbr.rel (%p250) target = $region32
      $region31: #{main_model_forward.15} parent=11 // pred_region
        _
      $region32: #{main_model_forward.15} parent=11 // pred_fallthru
        _
    $region12: #{main_model_forward.15} parent=5 // pred_fallthru
      _
    %p253 = scmp.lt.s32.totalorder %s14, 2
    // Predicated region
    $region33: #{main_model_forward.15} parent=5 // pred_check
      %p254 = pneg %p253
    $region34: #{main_model_forward.15} parent=5 // pred_check_branch
      %256 = sbr.rel (%p254) target = $region36
    $region35: #{main_model_forward.15} parent=5 // pred_region
      // Predicated region
      $region37: #{main_model_forward.15} parent=35 // pred_check
        %p257 = pneg %p34
      $region38: #{main_model_forward.15} parent=35 // pred_check_branch
        %259 = sbr.rel (%p257) target = $region40
      $region39: #{main_model_forward.15} parent=35 // pred_region
        %s260 = smul.u32 8, %s14
        %p261 = scmp.lt.s32.totalorder %s260, 15
        %s262 = scalar_select %p261, %s260, 15
        %s263 = smul.addr %s262, 8
        %s264 = scalar_lea.vmem %s0, %s263
        %s265 = smul.u32 8, %s14
      $region40: #{main_model_forward.15} parent=35 // pred_fallthru
        _
      // Predicated region
      $region41: #{main_model_forward.15} parent=35 // pred_check
        %p266 = pneg %p123
      $region42: #{main_model_forward.15} parent=35 // pred_check_branch
        %268 = sbr.rel (%p266) target = $region44
      $region43: #{main_model_forward.15} parent=35 // pred_region
        %s269 = smul.u32 8, %s14
        %p270 = scmp.lt.s32.totalorder %s269, 15
        %s271 = scalar_select %p270, %s269, 15
        %s272 = smul.addr %s271, 4
        %s273 = scalar_lea.vmem %s4, %s272
        %s274 = smul.u32 8, %s14
      $region44: #{main_model_forward.15} parent=35 // pred_fallthru
        _
      // Predicated region
      $region45: #{main_model_forward.15} parent=35 // pred_check
        %p275 = pneg %p149
      $region46: #{main_model_forward.15} parent=35 // pred_check_branch
        %277 = sbr.rel (%p275) target = $region48
      $region47: #{main_model_forward.15} parent=35 // pred_region
        %s278 = smul.u32 8, %s14
        %p279 = scmp.lt.s32.totalorder %s278, 15
        %s280 = scalar_select %p279, %s278, 15
        %s281 = smul.addr %s280, 8
        %s282 = scalar_lea.vmem %s5, %s281
        %s283 = smul.u32 8, %s14
      $region48: #{main_model_forward.15} parent=35 // pred_fallthru
        _
    $region36: #{main_model_forward.15} parent=5 // pred_fallthru
      _
    %p284 = scmp.le.s32.totalorder 1, %s14
    %p285 = scmp.lt.s32.totalorder %s14, 3
    %p286 = pnand %p284, %p285
    %p287 = pneg %p286
    // Predicated region
    $region49: #{main_model_forward.15} parent=5 // pred_check
      _
    $region50: #{main_model_forward.15} parent=5 // pred_check_branch
      %289 = sbr.rel (%p286) target = $region52
    $region51: #{main_model_forward.15} parent=5 // pred_region
      %s290 = ssub.s32 %s14, 1
      %s291 = smul.u32 8, %s19
      %p292 = scmp.lt.s32.totalorder %s291, 15
      %s293 = scalar_select %p292, %s291, 15
      %s294 = smul.addr %s293, 8
      %s295 = scalar_lea.vmem %s0, %s294
      %p296 = pneg %p40
      %p297 = pneg %p37
      %p298 = pneg %p61
      %p299 = pneg %p58
      %p300 = pneg %p82
      %p301 = pneg %p79
      %p302 = pneg %p103
      %p303 = pneg %p100
      %s304 = smul.u32 8, %s19
      %p305 = scmp.lt.s32.totalorder %s304, 15
      %s306 = scalar_select %p305, %s304, 15
      %s307 = smul.addr %s306, 4
      %s308 = scalar_lea.vmem %s4, %s307
      %p309 = pneg %p129
      %p310 = pneg %p126
      %s311 = smul.u32 8, %s19
      %p312 = scmp.lt.s32.totalorder %s311, 15
      %s313 = scalar_select %p312, %s311, 15
      %s314 = smul.addr %s313, 8
      %s315 = scalar_lea.vmem %s5, %s314
      %p316 = pneg %p155
      %p317 = pneg %p152
      %p318 = pneg %p176
      %p319 = pneg %p173
      %p320 = pneg %p197
      %p321 = pneg %p194
      %p322 = pneg %p223
      %p323 = pneg %p220
      %s324 = smul.u32 8, %s19
      %p325 = scmp.lt.s32.totalorder %s324, 15
      %s326 = scalar_select %p325, %s324, 15
      %s327 = smul.addr %s326, 8
      %s328 = scalar_lea.vmem %s8, %s327
      %s329 = smul.u32 8, %s19
      %p330 = scmp.lt.s32.totalorder %s329, 15
      %s331 = scalar_select %p330, %s329, 15
      %s332 = smul.addr %s331, 8
      %s333 = scalar_lea.vmem %s0, %s332
      %s334 = smul.u32 8, %s19
      %s335 = smul.u32 8, %s19
      %p336 = scmp.lt.s32.totalorder %s335, 15
      %s337 = scalar_select %p336, %s335, 15
      %s338 = smul.addr %s337, 4
      %s339 = scalar_lea.vmem %s4, %s338
      %s340 = smul.u32 8, %s19
      %s341 = smul.u32 8, %s19
      %p342 = scmp.lt.s32.totalorder %s341, 15
      %s343 = scalar_select %p342, %s341, 15
      %s344 = smul.addr %s343, 8
      %s345 = scalar_lea.vmem %s5, %s344
      %s346 = smul.u32 8, %s19
      %s347 = smul.u32 8, %s19
      %p348 = scmp.lt.s32.totalorder %s347, 15
      %s349 = scalar_select %p348, %s347, 15
      %s350 = smul.addr %s349, 8
      %s351 = scalar_lea.vmem %s8, %s350
      %s352 = smul.u32 8, %s19
      %v353 = vld [vmem:[%s333] sm:$0xff]
      %v354 = vld [vmem:[%s333 + $0x8] sm:$0xff]
      %v355 = vld [vmem:[%s333 + $0x10] sm:$0xff]
      %v356 = vld [vmem:[%s333 + $0x18] sm:$0xff]
      %v357 = vld [vmem:[%s333 + $0x20] sm:$0xff]
      %v358 = vld [vmem:[%s333 + $0x28] sm:$0xff]
      %v359 = vld [vmem:[%s333 + $0x30] sm:$0xff]
      %v360 = vld [vmem:[%s333 + $0x38] sm:$0xff]
      %v361 = vld [vmem:[%s1] sm:$0xff]
      %v362 = vld [vmem:[%s1 + $0x8] sm:$0xff]
      %v363 = vld [vmem:[%s1 + $0x10] sm:$0xff]
      %v364 = vld [vmem:[%s1 + $0x18] sm:$0xff]
      %v365 = vld [vmem:[%s1 + $0x20] sm:$0xff]
      %v366 = vld [vmem:[%s1 + $0x28] sm:$0xff]
      %v367 = vld [vmem:[%s1 + $0x30] sm:$0xff]
      %v368 = vld [vmem:[%s1 + $0x38] sm:$0xff]
      %v369 = vld [vmem:[%s1 + $0x40] sm:$0xff]
      %v370 = vld [vmem:[%s1 + $0x48] sm:$0xff]
      %v371 = vld [vmem:[%s1 + $0x50] sm:$0xff]
      %v372 = vld [vmem:[%s1 + $0x58] sm:$0xff]
      %v373 = vld [vmem:[%s1 + $0x60] sm:$0xff]
      %v374 = vld [vmem:[%s1 + $0x68] sm:$0xff]
      %v375 = vld [vmem:[%s1 + $0x70] sm:$0xff]
      %v376 = vld [vmem:[%s1 + $0x78] sm:$0xff]
      %v377 = vld [vmem:[%s3] sm:$0xf]
      %vm378 = vcmask 1042434
      %v379 = vsel %vm378, %v377, 0.0
      %380 = vadd.xlane.f32.xlu0 %v379
      %v381 = vpop.xlane.xlu0 %380
      %vm382 = vcmask 1043459
      %v383 = vsel %vm382, %v377, 0.0
      %384 = vadd.xlane.f32.xlu0 %v383
      %v385 = vpop.xlane.xlu0 %384
      %v387 = vrot.slane %v385, 1
      %v389 = vmul.f32 %v381, %v387
      %v390 = vrsqrt.pop %v389
      %v391 = vmul.f32 %v390, %v389
      %v392 = vmul.f32 %v391, %v390
      %v393 = vmul.f32 0.5, %v392
      %v394 = vsub.f32 1.5, %v393
      %v395 = vmul.f32 %v390, %v394
      %vm396 = vweird.f32 %v389
      %vm397 = vweird.f32 %v390
      %vm398 = vmor %vm396, %vm397
      %v399 = vsel %vm398, %v390, %v395
      %v400 = vpack.c.bf16 %v354, %v353
      %v401 = vpack.c.bf16 %v356, %v355
      %v402 = vpack.c.bf16 %v358, %v357
      %v403 = vpack.c.bf16 %v360, %v359
      %v404 = vld [vmem:[%s2] sm:$0xff]
      %v405 = vld [vmem:[%s2 + $0x8] sm:$0xff]
      %v406 = vld [vmem:[%s2 + $0x10] sm:$0xff]
      %v407 = vld [vmem:[%s2 + $0x18] sm:$0xff]
      %v408 = vld [vmem:[%s2 + $0x20] sm:$0xff]
      %v409 = vld [vmem:[%s2 + $0x28] sm:$0xff]
      %v410 = vld [vmem:[%s2 + $0x30] sm:$0xff]
      %v411 = vld [vmem:[%s2 + $0x38] sm:$0xff]
      %v412 = vld [vmem:[%s2 + $0x40] sm:$0xff]
      %v413 = vld [vmem:[%s2 + $0x48] sm:$0xff]
      %v414 = vld [vmem:[%s2 + $0x50] sm:$0xff]
      %v415 = vld [vmem:[%s2 + $0x58] sm:$0xff]
      %v416 = vld [vmem:[%s2 + $0x60] sm:$0xff]
      %v417 = vld [vmem:[%s2 + $0x68] sm:$0xff]
      %v418 = vld [vmem:[%s2 + $0x70] sm:$0xff]
      %v419 = vld [vmem:[%s2 + $0x78] sm:$0xff]
      %v420 = vpack.c.bf16 %v405, %v404
      %v421 = vpack.c.bf16 %v407, %v406
      %v422 = vpack.c.bf16 %v409, %v408
      %v423 = vpack.c.bf16 %v411, %v410
      %v424 = vpack.c.bf16 %v413, %v412
      %v425 = vpack.c.bf16 %v415, %v414
      %v426 = vpack.c.bf16 %v417, %v416
      %v427 = vpack.c.bf16 %v419, %v418
      %428 = vmatpush.bf16.msra.mxu0 %v427
      %429 = vmatpush.bf16.msra.mxu0 %v426
      %430 = vmatpush.bf16.msra.mxu0 %v425
      %431 = vmatpush.bf16.msra.mxu0 %v424
      %432 = vmatpush.bf16.msra.mxu0 %v423
      %433 = vmatpush.bf16.msra.mxu0 %v422
      %434 = vmatpush.bf16.msra.mxu0 %v421
      %435 = vmatpush.bf16.msra.mxu0 %v420
      %436 = vmatmul.bf16.gmra.mxu0 %v400
      %v437 = vpop.f32.mrf.mxu0
      %v438 = vadd.f32 0.0, %v437
      %v439 = vpop.f32.mrf.mxu0
      %v440 = vadd.f32 0.0, %v439
      %441 = vmatmul.bf16.gmra.mxu0 %v401
      %v442 = vpop.f32.mrf.mxu0
      %v443 = vadd.f32 0.0, %v442
      %v444 = vpop.f32.mrf.mxu0
      %v445 = vadd.f32 0.0, %v444
      %446 = vmatmul.bf16.gmra.mxu0 %v402
      %v447 = vpop.f32.mrf.mxu0
      %v448 = vadd.f32 0.0, %v447
      %v449 = vpop.f32.mrf.mxu0
      %v450 = vadd.f32 0.0, %v449
      %451 = vmatmul.bf16.gmra.mxu0 %v403
      %v452 = vpop.f32.mrf.mxu0
      %v453 = vadd.f32 0.0, %v452
      %v454 = vpop.f32.mrf.mxu0
      %v455 = vadd.f32 0.0, %v454
      %456 = vdwg.mxu0
      %v458 = vrot.slane %v399, 2
      %s459 = vtos %v458
      %v460 = vstv %s459
      %v462 = vmul.f32 %v438, %v460
      %v463 = vmul.f32 %v440, %v460
      %v464 = vmul.f32 %v443, %v460
      %v465 = vmul.f32 %v445, %v460
      %v466 = vmul.f32 %v448, %v460
      %v467 = vmul.f32 %v450, %v460
      %v468 = vmul.f32 %v453, %v460
      %v469 = vmul.f32 %v455, %v460
      %v470 = vperm.slane %v377, 1
      %v471 = vadd.f32 %v462, %v470
      %v472 = vadd.f32 %v463, %v470
      %v473 = vadd.f32 %v464, %v470
      %v474 = vadd.f32 %v465, %v470
      %v475 = vadd.f32 %v466, %v470
      %v476 = vadd.f32 %v467, %v470
      %v477 = vadd.f32 %v468, %v470
      %v478 = vadd.f32 %v469, %v470
      %v479 = vperm.slane %v377, 0
      %v480 = vmul.f32 %v353, %v479
      %v481 = vmul.f32 %v354, %v479
      %v482 = vmul.f32 %v355, %v479
      %v483 = vmul.f32 %v356, %v479
      %v484 = vmul.f32 %v357, %v479
      %v485 = vmul.f32 %v358, %v479
      %v486 = vmul.f32 %v359, %v479
      %v487 = vmul.f32 %v360, %v479
      %488 = vadd.xlane.f32.xlu0 %v480
      %v489 = vpop.xlane.xlu0 %488
      %490 = vadd.xlane.f32.xlu0 %v481
      %v491 = vpop.xlane.xlu0 %490
      %492 = vadd.xlane.f32.xlu0 %v482
      %v493 = vpop.xlane.xlu0 %492
      %494 = vadd.xlane.f32.xlu0 %v483
      %v495 = vpop.xlane.xlu0 %494
      %496 = vadd.xlane.f32.xlu0 %v484
      %v497 = vpop.xlane.xlu0 %496
      %498 = vadd.xlane.f32.xlu0 %v485
      %v499 = vpop.xlane.xlu0 %498
      %500 = vadd.xlane.f32.xlu0 %v486
      %v501 = vpop.xlane.xlu0 %500
      %502 = vadd.xlane.f32.xlu0 %v487
      %v503 = vpop.xlane.xlu0 %502
      %v504 = vperm.slane %v399, 2
      %v505 = vmul.f32 %v489, %v504
      %v506 = vmul.f32 %v491, %v504
      %v507 = vmul.f32 %v493, %v504
      %v508 = vmul.f32 %v495, %v504
      %v509 = vmul.f32 %v497, %v504
      %v510 = vmul.f32 %v499, %v504
      %v511 = vmul.f32 %v501, %v504
      %v512 = vmul.f32 %v503, %v504
      %v513 = vadd.f32 %v505, 128.0
      %v514 = vadd.f32 %v506, 128.0
      %v515 = vadd.f32 %v507, 128.0
      %v516 = vadd.f32 %v508, 128.0
      %v517 = vadd.f32 %v509, 128.0
      %v518 = vadd.f32 %v510, 128.0
      %v519 = vadd.f32 %v511, 128.0
      %v520 = vadd.f32 %v512, 128.0
      %v521 = vrcp.pop %v513
      %v522 = vrcp.pop %v514
      %v523 = vrcp.pop %v515
      %v524 = vrcp.pop %v516
      %v525 = vrcp.pop %v517
      %v526 = vrcp.pop %v518
      %v527 = vrcp.pop %v519
      %v528 = vrcp.pop %v520
      %530 = vset.pattern.permute.xlu0 0
      %531 = vperm.xlu0 %530, %v521
      %v532 = vpop.permute.xlu0 %531
      %535 = vset.pattern.permute.xlu0 0
      %536 = vperm.xlu0 %535, %v522
      %v537 = vpop.permute.xlu0 %536
      %540 = vset.pattern.permute.xlu0 0
      %541 = vperm.xlu0 %540, %v523
      %v542 = vpop.permute.xlu0 %541
      %545 = vset.pattern.permute.xlu0 0
      %546 = vperm.xlu0 %545, %v524
      %v547 = vpop.permute.xlu0 %546
      %550 = vset.pattern.permute.xlu0 0
      %551 = vperm.xlu0 %550, %v525
      %v552 = vpop.permute.xlu0 %551
      %555 = vset.pattern.permute.xlu0 0
      %556 = vperm.xlu0 %555, %v526
      %v557 = vpop.permute.xlu0 %556
      %560 = vset.pattern.permute.xlu0 0
      %561 = vperm.xlu0 %560, %v527
      %v562 = vpop.permute.xlu0 %561
      %565 = vset.pattern.permute.xlu0 0
      %566 = vperm.xlu0 %565, %v528
      %v567 = vpop.permute.xlu0 %566
      %v569 = vmul.f32 %v471, %v532
      %v570 = vmul.f32 %v472, %v537
      %v571 = vmul.f32 %v473, %v542
      %v572 = vmul.f32 %v474, %v547
      %v573 = vmul.f32 %v475, %v552
      %v574 = vmul.f32 %v476, %v557
      %v575 = vmul.f32 %v477, %v562
      %v576 = vmul.f32 %v478, %v567
      %v577 = vld [vmem:[%s339] sm:$0xf]
      %v578 = vld [vmem:[%s339 + $0x4] sm:$0xf]
      %v579 = vld [vmem:[%s339 + $0x8] sm:$0xf]
      %v580 = vld [vmem:[%s339 + $0xc] sm:$0xf]
      %v581 = vld [vmem:[%s339 + $0x10] sm:$0xf]
      %v582 = vld [vmem:[%s339 + $0x14] sm:$0xf]
      %v583 = vld [vmem:[%s339 + $0x18] sm:$0xf]
      %v584 = vld [vmem:[%s339 + $0x1c] sm:$0xf]
      %v585 = vpack.c.bf16 %v362, %v361
      %v586 = vpack.c.bf16 %v364, %v363
      %v587 = vpack.c.bf16 %v366, %v365
      %v588 = vpack.c.bf16 %v368, %v367
      %v589 = vpack.c.bf16 %v370, %v369
      %v590 = vpack.c.bf16 %v372, %v371
      %v591 = vpack.c.bf16 %v374, %v373
      %v592 = vpack.c.bf16 %v376, %v375
      %v601 = vunpack.c.l.b16 %v577
      %v602 = vunpack.c.l.b16 %v578
      %v603 = vunpack.c.l.b16 %v579
      %v604 = vunpack.c.l.b16 %v580
      %v605 = vunpack.c.l.b16 %v581
      %v606 = vunpack.c.l.b16 %v582
      %v607 = vunpack.c.l.b16 %v583
      %v608 = vunpack.c.l.b16 %v584
      %v609 = vpack.c.b16 %v602, %v601
      %v610 = vpack.c.b16 %v604, %v603
      %v611 = vpack.c.b16 %v606, %v605
      %v612 = vpack.c.b16 %v608, %v607
      %617 = vmatpush.bf16.msra.mxu0 %v592
      %618 = vmatpush.bf16.msra.mxu0 %v591
      %619 = vmatpush.bf16.msra.mxu0 %v590
      %620 = vmatpush.bf16.msra.mxu0 %v589
      %621 = vmatpush.bf16.msra.mxu0 %v588
      %622 = vmatpush.bf16.msra.mxu0 %v587
      %623 = vmatpush.bf16.msra.mxu0 %v586
      %624 = vmatpush.bf16.msra.mxu0 %v585
      %625 = vmatmul.bf16.gmra.mxu0 %v609
      %v626 = vpop.f32.mrf.mxu0
      %v627 = vadd.f32 0.0, %v626
      %v628 = vpop.f32.mrf.mxu0
      %v629 = vadd.f32 0.0, %v628
      %630 = vmatmul.bf16.gmra.mxu0 %v610
      %v631 = vpop.f32.mrf.mxu0
      %v632 = vadd.f32 0.0, %v631
      %v633 = vpop.f32.mrf.mxu0
      %v634 = vadd.f32 0.0, %v633
      %635 = vmatmul.bf16.gmra.mxu0 %v611
      %v636 = vpop.f32.mrf.mxu0
      %v637 = vadd.f32 0.0, %v636
      %v638 = vpop.f32.mrf.mxu0
      %v639 = vadd.f32 0.0, %v638
      %640 = vmatmul.bf16.gmra.mxu0 %v612
      %v641 = vpop.f32.mrf.mxu0
      %v642 = vadd.f32 0.0, %v641
      %v643 = vpop.f32.mrf.mxu0
      %v644 = vadd.f32 0.0, %v643
      %645 = vdwg.mxu0
      %v646 = vadd.f32 %v569, %v627
      %v647 = vadd.f32 %v570, %v629
      %v648 = vadd.f32 %v571, %v632
      %v649 = vadd.f32 %v572, %v634
      %v650 = vadd.f32 %v573, %v637
      %v651 = vadd.f32 %v574, %v639
      %v652 = vadd.f32 %v575, %v642
      %v653 = vadd.f32 %v576, %v644
      %v654 = vmul.f32 %v646, 0.5
      %v655 = vmul.f32 %v647, 0.5
      %v656 = vmul.f32 %v648, 0.5
      %v657 = vmul.f32 %v649, 0.5
      %v658 = vmul.f32 %v650, 0.5
      %v659 = vmul.f32 %v651, 0.5
      %v660 = vmul.f32 %v652, 0.5
      %v661 = vmul.f32 %v653, 0.5
      %v662 = vld [vmem:[%s345] sm:$0xff]
      %v663 = vld [vmem:[%s345 + $0x8] sm:$0xff]
      %v664 = vld [vmem:[%s345 + $0x10] sm:$0xff]
      %v665 = vld [vmem:[%s345 + $0x18] sm:$0xff]
      %v666 = vld [vmem:[%s345 + $0x20] sm:$0xff]
      %v667 = vld [vmem:[%s345 + $0x28] sm:$0xff]
      %v668 = vld [vmem:[%s345 + $0x30] sm:$0xff]
      %v669 = vld [vmem:[%s345 + $0x38] sm:$0xff]
      %v670 = vmul.f32 %v662, 0.5
      %v671 = vmul.f32 %v663, 0.5
      %v672 = vmul.f32 %v664, 0.5
      %v673 = vmul.f32 %v665, 0.5
      %v674 = vmul.f32 %v666, 0.5
      %v675 = vmul.f32 %v667, 0.5
      %v676 = vmul.f32 %v668, 0.5
      %v677 = vmul.f32 %v669, 0.5
      %v678 = vadd.f32 %v654, %v670
      %v679 = vadd.f32 %v655, %v671
      %v680 = vadd.f32 %v656, %v672
      %v681 = vadd.f32 %v657, %v673
      %v682 = vadd.f32 %v658, %v674
      %v683 = vadd.f32 %v659, %v675
      %v684 = vadd.f32 %v660, %v676
      %v685 = vadd.f32 %v661, %v677
      %686 = vadd.xlane.f32.xlu0 %v678
      %v687 = vpop.xlane.xlu0 %686
      %688 = vadd.xlane.f32.xlu0 %v679
      %v689 = vpop.xlane.xlu0 %688
      %690 = vadd.xlane.f32.xlu0 %v680
      %v691 = vpop.xlane.xlu0 %690
      %692 = vadd.xlane.f32.xlu0 %v681
      %v693 = vpop.xlane.xlu0 %692
      %694 = vadd.xlane.f32.xlu0 %v682
      %v695 = vpop.xlane.xlu0 %694
      %696 = vadd.xlane.f32.xlu0 %v683
      %v697 = vpop.xlane.xlu0 %696
      %698 = vadd.xlane.f32.xlu0 %v684
      %v699 = vpop.xlane.xlu0 %698
      %700 = vadd.xlane.f32.xlu0 %v685
      %v701 = vpop.xlane.xlu0 %700
      %v702 = vrcp.pop 128.0
      %v703 = vmul.f32 128.0, %v702
      %v704 = vsub.f32 1.0, %v703
      %v705 = vmul.f32 %v702, %v704
      %v706 = vadd.f32 %v702, %v705
      %vm707 = vweird.f32 %v702
      %v708 = vsel %vm707, %v702, %v706
      %v709 = vmul.f32 %v687, %v708
      %v710 = vmul.f32 %v689, %v708
      %v711 = vmul.f32 %v691, %v708
      %v712 = vmul.f32 %v693, %v708
      %v713 = vmul.f32 %v695, %v708
      %v714 = vmul.f32 %v697, %v708
      %v715 = vmul.f32 %v699, %v708
      %v716 = vmul.f32 %v701, %v708
      %v717 = vsub.f32 %v678, %v709
      %v718 = vsub.f32 %v679, %v710
      %v719 = vsub.f32 %v680, %v711
      %v720 = vsub.f32 %v681, %v712
      %v721 = vsub.f32 %v682, %v713
      %v722 = vsub.f32 %v683, %v714
      %v723 = vsub.f32 %v684, %v715
      %v724 = vsub.f32 %v685, %v716
      %v725 = vmul.f32 %v717, %v717
      %v726 = vmul.f32 %v718, %v718
      %v727 = vmul.f32 %v719, %v719
      %v728 = vmul.f32 %v720, %v720
      %v729 = vmul.f32 %v721, %v721
      %v730 = vmul.f32 %v722, %v722
      %v731 = vmul.f32 %v723, %v723
      %v732 = vmul.f32 %v724, %v724
      %733 = vadd.xlane.f32.xlu0 %v725
      %v734 = vpop.xlane.xlu0 %733
      %735 = vadd.xlane.f32.xlu0 %v726
      %v736 = vpop.xlane.xlu0 %735
      %737 = vadd.xlane.f32.xlu0 %v727
      %v738 = vpop.xlane.xlu0 %737
      %739 = vadd.xlane.f32.xlu0 %v728
      %v740 = vpop.xlane.xlu0 %739
      %741 = vadd.xlane.f32.xlu0 %v729
      %v742 = vpop.xlane.xlu0 %741
      %743 = vadd.xlane.f32.xlu0 %v730
      %v744 = vpop.xlane.xlu0 %743
      %745 = vadd.xlane.f32.xlu0 %v731
      %v746 = vpop.xlane.xlu0 %745
      %747 = vadd.xlane.f32.xlu0 %v732
      %v748 = vpop.xlane.xlu0 %747
      %v749 = vmul.f32 %v734, %v708
      %v750 = vmul.f32 %v736, %v708
      %v751 = vmul.f32 %v738, %v708
      %v752 = vmul.f32 %v740, %v708
      %v753 = vmul.f32 %v742, %v708
      %v754 = vmul.f32 %v744, %v708
      %v755 = vmul.f32 %v746, %v708
      %v756 = vmul.f32 %v748, %v708
      %v757 = vadd.f32 %v749, 1e-05
      %v758 = vadd.f32 %v750, 1e-05
      %v759 = vadd.f32 %v751, 1e-05
      %v760 = vadd.f32 %v752, 1e-05
      %v761 = vadd.f32 %v753, 1e-05
      %v762 = vadd.f32 %v754, 1e-05
      %v763 = vadd.f32 %v755, 1e-05
      %v764 = vadd.f32 %v756, 1e-05
      %v765 = vrsqrt.pop %v757
      %v766 = vmul.f32 %v765, %v757
      %v767 = vmul.f32 %v766, %v765
      %v768 = vmul.f32 0.5, %v767
      %v769 = vsub.f32 1.5, %v768
      %v770 = vmul.f32 %v765, %v769
      %vm771 = vweird.f32 %v757
      %vm772 = vweird.f32 %v765
      %vm773 = vmor %vm771, %vm772
      %v774 = vsel %vm773, %v765, %v770
      %v775 = vrsqrt.pop %v758
      %v776 = vmul.f32 %v775, %v758
      %v777 = vmul.f32 %v776, %v775
      %v778 = vmul.f32 0.5, %v777
      %v779 = vsub.f32 1.5, %v778
      %v780 = vmul.f32 %v775, %v779
      %vm781 = vweird.f32 %v758
      %vm782 = vweird.f32 %v775
      %vm783 = vmor %vm781, %vm782
      %v784 = vsel %vm783, %v775, %v780
      %v785 = vrsqrt.pop %v759
      %v786 = vmul.f32 %v785, %v759
      %v787 = vmul.f32 %v786, %v785
      %v788 = vmul.f32 0.5, %v787
      %v789 = vsub.f32 1.5, %v788
      %v790 = vmul.f32 %v785, %v789
      %vm791 = vweird.f32 %v759
      %vm792 = vweird.f32 %v785
      %vm793 = vmor %vm791, %vm792
      %v794 = vsel %vm793, %v785, %v790
      %v795 = vrsqrt.pop %v760
      %v796 = vmul.f32 %v795, %v760
      %v797 = vmul.f32 %v796, %v795
      %v798 = vmul.f32 0.5, %v797
      %v799 = vsub.f32 1.5, %v798
      %v800 = vmul.f32 %v795, %v799
      %vm801 = vweird.f32 %v760
      %vm802 = vweird.f32 %v795
      %vm803 = vmor %vm801, %vm802
      %v804 = vsel %vm803, %v795, %v800
      %v805 = vrsqrt.pop %v761
      %v806 = vmul.f32 %v805, %v761
      %v807 = vmul.f32 %v806, %v805
      %v808 = vmul.f32 0.5, %v807
      %v809 = vsub.f32 1.5, %v808
      %v810 = vmul.f32 %v805, %v809
      %vm811 = vweird.f32 %v761
      %vm812 = vweird.f32 %v805
      %vm813 = vmor %vm811, %vm812
      %v814 = vsel %vm813, %v805, %v810
      %v815 = vrsqrt.pop %v762
      %v816 = vmul.f32 %v815, %v762
      %v817 = vmul.f32 %v816, %v815
      %v818 = vmul.f32 0.5, %v817
      %v819 = vsub.f32 1.5, %v818
      %v820 = vmul.f32 %v815, %v819
      %vm821 = vweird.f32 %v762
      %vm822 = vweird.f32 %v815
      %vm823 = vmor %vm821, %vm822
      %v824 = vsel %vm823, %v815, %v820
      %v825 = vrsqrt.pop %v763
      %v826 = vmul.f32 %v825, %v763
      %v827 = vmul.f32 %v826, %v825
      %v828 = vmul.f32 0.5, %v827
      %v829 = vsub.f32 1.5, %v828
      %v830 = vmul.f32 %v825, %v829
      %vm831 = vweird.f32 %v763
      %vm832 = vweird.f32 %v825
      %vm833 = vmor %vm831, %vm832
      %v834 = vsel %vm833, %v825, %v830
      %v835 = vrsqrt.pop %v764
      %v836 = vmul.f32 %v835, %v764
      %v837 = vmul.f32 %v836, %v835
      %v838 = vmul.f32 0.5, %v837
      %v839 = vsub.f32 1.5, %v838
      %v840 = vmul.f32 %v835, %v839
      %vm841 = vweird.f32 %v764
      %vm842 = vweird.f32 %v835
      %vm843 = vmor %vm841, %vm842
      %v844 = vsel %vm843, %v835, %v840
      %v845 = vmul.f32 %v717, %v774
      %v846 = vmul.f32 %v718, %v784
      %v847 = vmul.f32 %v719, %v794
      %v848 = vmul.f32 %v720, %v804
      %v849 = vmul.f32 %v721, %v814
      %v850 = vmul.f32 %v722, %v824
      %v851 = vmul.f32 %v723, %v834
      %v852 = vmul.f32 %v724, %v844
      %v853 = vld [vmem:[%s6] sm:$0x1]
      %v855 = vperm.slane %v853, 0
      %v857 = vmul.f32 %v845, %v855
      %v858 = vmul.f32 %v846, %v855
      %v859 = vmul.f32 %v847, %v855
      %v860 = vmul.f32 %v848, %v855
      %v861 = vmul.f32 %v849, %v855
      %v862 = vmul.f32 %v850, %v855
      %v863 = vmul.f32 %v851, %v855
      %v864 = vmul.f32 %v852, %v855
      %v865 = vld [vmem:[%s7] sm:$0x1]
      %v867 = vperm.slane %v865, 0
      %v869 = vadd.f32 %v857, %v867
      %v870 = vadd.f32 %v858, %v867
      %v871 = vadd.f32 %v859, %v867
      %v872 = vadd.f32 %v860, %v867
      %v873 = vadd.f32 %v861, %v867
      %v874 = vadd.f32 %v862, %v867
      %v875 = vadd.f32 %v863, %v867
      %v876 = vadd.f32 %v864, %v867
      %877 = vst [vmem:[%s351] sm:$0xff] %v869
      %878 = vst [vmem:[%s351 + $0x8] sm:$0xff] %v870
      %879 = vst [vmem:[%s351 + $0x10] sm:$0xff] %v871
      %880 = vst [vmem:[%s351 + $0x18] sm:$0xff] %v872
      %881 = vst [vmem:[%s351 + $0x20] sm:$0xff] %v873
      %882 = vst [vmem:[%s351 + $0x28] sm:$0xff] %v874
      %883 = vst [vmem:[%s351 + $0x30] sm:$0xff] %v875
      %884 = vst [vmem:[%s351 + $0x38] sm:$0xff] %v876
      %s885 = smul.u32 8, %s19
      %p886 = scmp.lt.s32.totalorder %s885, 15
      %s887 = scalar_select %p886, %s885, 15
      %s888 = smul.addr %s887, 8
      %s889 = scalar_lea.vmem %s8, %s888
      // Predicated region
      $region53: #{main_model_forward.15} parent=51 // pred_check
        %p890 = pneg %p220
      $region54: #{main_model_forward.15} parent=51 // pred_check_branch
        %892 = sbr.rel (%p890) target = $region56
      $region55: #{main_model_forward.15} parent=51 // pred_region
        %s893 = smul.u32 8, %s19
      $region56: #{main_model_forward.15} parent=51 // pred_fallthru
        _
    $region52: #{main_model_forward.15} parent=5 // pred_fallthru
      _
    %p894 = scmp.le.s32.totalorder 2, %s14
    // Predicated region
    $region57: #{main_model_forward.15} parent=5 // pred_check
      %p895 = pneg %p894
    $region58: #{main_model_forward.15} parent=5 // pred_check_branch
      %897 = sbr.rel (%p895) target = $region60
    $region59: #{main_model_forward.15} parent=5 // pred_region
      %s898 = ssub.s32 %s14, 2
      // Predicated region
      $region61: #{main_model_forward.15} parent=59 // pred_check
        %p899 = pneg %p226
      $region62: #{main_model_forward.15} parent=59 // pred_check_branch
        %901 = sbr.rel (%p899) target = $region64
      $region63: #{main_model_forward.15} parent=59 // pred_region
        %s902 = smul.u32 8, %s20
        %p903 = scmp.lt.s32.totalorder %s902, 15
        %s904 = scalar_select %p903, %s902, 15
        %s905 = smul.addr %s904, 8
        %s906 = scalar_lea.vmem %s8, %s905
      $region64: #{main_model_forward.15} parent=59 // pred_fallthru
        _
    $region60: #{main_model_forward.15} parent=5 // pred_fallthru
      _
  $region6: #{main_model_forward.15} parent=0 // loop_footer
    %s18 = sadd.s32 1, %s14
  $region7: #{main_model_forward.15} parent=0 // loop_footer_branch
    %13 = sbr.rel target = $region3
  $region8: #{main_model_forward.15} parent=0 // loop_exit
    _

// kernel: main_model_forward.25
$region0: #{main_model_forward.25}
  #allocation0 [shape = 'u32[]', space=smem, size = 0x4, offset = 0x4, fixed_abs, tag = 'smem constant byte address 0x4 - core index']
  #allocation1 [shape = 'u32[72,128]{1,0:T(1,128)}', space=vmem, size = 0x9000, scoped, tag = 'internal scratch']
  %s0 = inlined_call_operand.vmem [shape: f32[2,128], index: 0, kind: input, shape index: {}]
  %s1 = inlined_call_operand.vmem [shape: f32[128,128], index: 1, kind: input, shape index: {}]
  %s2 = inlined_call_operand.vmem [shape: f32[2,1], index: 2, kind: input, shape index: {}]
  %s3 = inlined_call_operand.vmem [shape: bf16[128,8], index: 3, kind: input, shape index: {}]
  %s4 = inlined_call_operand.vmem [shape: f32[1,8], index: 4, kind: input, shape index: {}]
  %s5 = inlined_call_operand.hbm [shape: f32[2,128], index: 5, kind: output, shape index: {0}]
  %s6 = inlined_call_operand.hbm [shape: f32[2,8], index: 6, kind: output, shape index: {1}]
  %7 = xla_tuple %s5, %s6
  %s8 = sld [smem:[#allocation0]]
  $region38: #{main_model_forward.25} parent=0
    _
  %s10 = ssub.s32 1, %s8
  %s11 = scalar_select 0, %s10, %s8
  $region1: #{main_model_forward.25} parent=0
    #allocation2 [shape = 'u8[1024]{0}', space=vmem, size = 0x400, scoped, tag = 'output window, operand 0, single buffered']
    #allocation3 [shape = 's32[1]{0}', space=sflag, size = 0x4, scoped, tag = 'scoped memory for main_model_forward.25']
    #allocation4 [shape = 'u8[1024]{0}', space=vmem, size = 0x400, scoped, tag = 'output window, operand 1, single buffered']
    #allocation5 [shape = 's32[1]{0}', space=sflag, size = 0x4, scoped, tag = 'scoped memory for main_model_forward.25']
    %12 = vsyncpa [#allocation3], 0
    %13 = vsyncpa [#allocation5], 0
    // Predicated region
    $region2: #{main_model_forward.25} parent=1 // pred_check
      _
    $region3: #{main_model_forward.25} parent=1 // pred_check_branch
      %15 = sbr.rel (0) target = $region5
    $region4: #{main_model_forward.25} parent=1 // pred_region
      _
    $region5: #{main_model_forward.25} parent=1 // pred_fallthru
      _
    // Predicated region
    $region6: #{main_model_forward.25} parent=1 // pred_check
      _
    $region7: #{main_model_forward.25} parent=1 // pred_check_branch
      %17 = sbr.rel (0) target = $region9
    $region8: #{main_model_forward.25} parent=1 // pred_region
      _
    $region9: #{main_model_forward.25} parent=1 // pred_fallthru
      _
    // Predicated region
    $region10: #{main_model_forward.25} parent=1 // pred_check
      _
    $region11: #{main_model_forward.25} parent=1 // pred_check_branch
      %19 = sbr.rel (0) target = $region13
    $region12: #{main_model_forward.25} parent=1 // pred_region
      _
    $region13: #{main_model_forward.25} parent=1 // pred_fallthru
      _
    // Predicated region
    $region14: #{main_model_forward.25} parent=1 // pred_check
      _
    $region15: #{main_model_forward.25} parent=1 // pred_check_branch
      %21 = sbr.rel (0) target = $region17
    $region16: #{main_model_forward.25} parent=1 // pred_region
      _
    $region17: #{main_model_forward.25} parent=1 // pred_fallthru
      _
    // Predicated region
    $region18: #{main_model_forward.25} parent=1 // pred_check
      _
    $region19: #{main_model_forward.25} parent=1 // pred_check_branch
      %23 = sbr.rel (0) target = $region21
    $region20: #{main_model_forward.25} parent=1 // pred_region
      _
    $region21: #{main_model_forward.25} parent=1 // pred_fallthru
      _
    %v24 = vld [vmem:[%s0] sm:$0x3]
    %v25 = vld [vmem:[%s1] sm:$0xff]
    %v26 = vld [vmem:[%s1 + $0x8] sm:$0xff]
    %v27 = vld [vmem:[%s1 + $0x10] sm:$0xff]
    %v28 = vld [vmem:[%s1 + $0x18] sm:$0xff]
    %v29 = vld [vmem:[%s1 + $0x20] sm:$0xff]
    %v30 = vld [vmem:[%s1 + $0x28] sm:$0xff]
    %v31 = vld [vmem:[%s1 + $0x30] sm:$0xff]
    %v32 = vld [vmem:[%s1 + $0x38] sm:$0xff]
    %v33 = vld [vmem:[%s1 + $0x40] sm:$0xff]
    %v34 = vld [vmem:[%s1 + $0x48] sm:$0xff]
    %v35 = vld [vmem:[%s1 + $0x50] sm:$0xff]
    %v36 = vld [vmem:[%s1 + $0x58] sm:$0xff]
    %v37 = vld [vmem:[%s1 + $0x60] sm:$0xff]
    %v38 = vld [vmem:[%s1 + $0x68] sm:$0xff]
    %v39 = vld [vmem:[%s1 + $0x70] sm:$0xff]
    %v40 = vld [vmem:[%s1 + $0x78] sm:$0xff]
    %41 = vmatpush.msra.mxu0 %v40
    %42 = vmatpush.msra.mxu0 %v39
    %43 = vmatpush.msra.mxu0 %v38
    %44 = vmatpush.msra.mxu0 %v37
    %45 = vmatpush.msra.mxu0 %v36
    %46 = vmatpush.msra.mxu0 %v35
    %47 = vmatpush.msra.mxu0 %v34
    %48 = vmatpush.msra.mxu0 %v33
    %49 = vmatpush.msra.mxu0 %v32
    %50 = vmatpush.msra.mxu0 %v31
    %51 = vmatpush.msra.mxu0 %v30
    %52 = vmatpush.msra.mxu0 %v29
    %53 = vmatpush.msra.mxu0 %v28
    %54 = vmatpush.msra.mxu0 %v27
    %55 = vmatpush.msra.mxu0 %v26
    %56 = vmatpush.msra.mxu0 %v25
    %57 = vmatmul.f32.gmra.mxu0 %v24
    %v58 = vpop.f32.mrf.mxu0
    %v59 = vadd.f32 0.0, %v58
    %60 = vdwg.mxu0
    %v61 = vld [vmem:[%s2] sm:$0x3]
    %63 = vset.pattern.permute.xlu0 0
    %64 = vperm.xlu0 %63, %v61
    %v65 = vpop.permute.xlu0 %64
    %v67 = vrcp.pop %v65
    %v68 = vmul.f32 %v65, %v67
    %v69 = vsub.f32 1.0, %v68
    %v70 = vmul.f32 %v67, %v69
    %v71 = vadd.f32 %v67, %v70
    %vm72 = vweird.f32 %v65
    %vm73 = vweird.f32 %v67
    %vm74 = vmor %vm72, %vm73
    %v75 = vsel %vm74, %v67, %v71
    %v76 = vand.u32 2147483647, %v65
    %vm77 = vcmp.eq.f32.partialorder %v76, 8.507059e+37
    %v78 = vand.u32 %v65, 2147483648
    %v79 = vor.u32 1.1754944e-38, %v78
    %v80 = vsel %vm77, %v79, %v75
    %v81 = vmul.f32 %v59, %v80
    %82 = vst [vmem:[#allocation2] sm:$0x3] %v81
    %v83 = vpack.c.bf16 %v81, %v81
    %v84 = vld [vmem:[%s3] sm:$0xf]
    %v85 = vld [vmem:[%s3 + $0x4] sm:$0xf]
    %v86 = vld [vmem:[%s3 + $0x8] sm:$0xf]
    %v87 = vld [vmem:[%s3 + $0xc] sm:$0xf]
    %v88 = vld [vmem:[%s3 + $0x10] sm:$0xf]
    %v89 = vld [vmem:[%s3 + $0x14] sm:$0xf]
    %v90 = vld [vmem:[%s3 + $0x18] sm:$0xf]
    %v91 = vld [vmem:[%s3 + $0x1c] sm:$0xf]
    %v92 = vld [vmem:[%s3 + $0x20] sm:$0xf]
    %v93 = vld [vmem:[%s3 + $0x24] sm:$0xf]
    %v94 = vld [vmem:[%s3 + $0x28] sm:$0xf]
    %v95 = vld [vmem:[%s3 + $0x2c] sm:$0xf]
    %v96 = vld [vmem:[%s3 + $0x30] sm:$0xf]
    %v97 = vld [vmem:[%s3 + $0x34] sm:$0xf]
    %v98 = vld [vmem:[%s3 + $0x38] sm:$0xf]
    %v99 = vld [vmem:[%s3 + $0x3c] sm:$0xf]
    %v100 = vld [vmem:[%s4] sm:$0x1]
    %v102 = vperm.slane %v100, 0
    %v120 = vunpack.c.l.b16 %v84
    %v121 = vunpack.c.l.b16 %v85
    %v122 = vunpack.c.l.b16 %v86
    %v123 = vunpack.c.l.b16 %v87
    %v124 = vunpack.c.l.b16 %v88
    %v125 = vunpack.c.l.b16 %v89
    %v126 = vunpack.c.l.b16 %v90
    %v127 = vunpack.c.l.b16 %v91
    %v128 = vunpack.c.l.b16 %v92
    %v129 = vunpack.c.l.b16 %v93
    %v130 = vunpack.c.l.b16 %v94
    %v131 = vunpack.c.l.b16 %v95
    %v132 = vunpack.c.l.b16 %v96
    %v133 = vunpack.c.l.b16 %v97
    %v134 = vunpack.c.l.b16 %v98
    %v135 = vunpack.c.l.b16 %v99
    %v136 = vpack.c.b16 %v121, %v120
    %v137 = vpack.c.b16 %v123, %v122
    %v138 = vpack.c.b16 %v125, %v124
    %v139 = vpack.c.b16 %v127, %v126
    %v140 = vpack.c.b16 %v129, %v128
    %v141 = vpack.c.b16 %v131, %v130
    %v142 = vpack.c.b16 %v133, %v132
    %v143 = vpack.c.b16 %v135, %v134
    %152 = vmatpush.bf16.msra.mxu0 %v143
    %153 = vmatpush.bf16.msra.mxu0 %v142
    %154 = vmatpush.bf16.msra.mxu0 %v141
    %155 = vmatpush.bf16.msra.mxu0 %v140
    %156 = vmatpush.bf16.msra.mxu0 %v139
    %157 = vmatpush.bf16.msra.mxu0 %v138
    %158 = vmatpush.bf16.msra.mxu0 %v137
    %159 = vmatpush.bf16.msra.mxu0 %v136
    %160 = vmatmul.bf16.gmra.mxu0 %v83
    %v161 = vpop.f32.mrf.mxu0
    %v162 = vadd.f32 %v102, %v161
    %v163 = vpop.f32.mrf.mxu0
    %164 = vdwg.mxu0
    %v165 = vand.u32 2147483647, %v162
    %v166 = vsub.f32 0.0, %v165
    %v167 = vmul.f32 %v166, 1.442695
    %v168 = vpow.pop %v167
    %vm169 = vcmp.ge.f32.partialorder %v162, 0.0
    %v170 = vadd.f32 %v168, 1.0
    %v171 = vrcp.pop %v170
    %v172 = vmul.f32 %v170, %v171
    %v173 = vsub.f32 1.0, %v172
    %v174 = vmul.f32 %v171, %v173
    %v175 = vadd.f32 %v171, %v174
    %vm176 = vweird.f32 %v170
    %vm177 = vweird.f32 %v171
    %vm178 = vmor %vm176, %vm177
    %v179 = vsel %vm178, %v171, %v175
    %v180 = vand.u32 2147483647, %v170
    %vm181 = vcmp.eq.f32.partialorder %v180, 8.507059e+37
    %v182 = vand.u32 %v170, 2147483648
    %v183 = vor.u32 1.1754944e-38, %v182
    %v184 = vsel %vm181, %v183, %v179
    %v185 = vmul.f32 1.0, %v184
    %v186 = vmul.f32 %v168, %v184
    %v187 = vsel %vm169, %v185, %v186
    %vm188 = vcmask 58368
    %189 = vst.msk [vmem:[#allocation4] sm:$0x3] %vm188, %v187
    // Predicated region
    $region22: #{main_model_forward.25} parent=1 // pred_check
      _
    $region23: #{main_model_forward.25} parent=1 // pred_check_branch
      %191 = sbr.rel (0) target = $region25
    $region24: #{main_model_forward.25} parent=1 // pred_region
      %193 = vsyncadd [#allocation3], 0
      %s195 = sshll.u32 [#allocation2], 4
      %s196 = int_to_ptr.vmem [resolvable:$true] %s195
      %s197 = sshll.u32 %s5, 4
      %s198 = int_to_ptr.hbm [resolvable:$true] %s197
      %200 = dma.vmem_to_hbm [thread:$0]  %s196, 32, %s198, [#allocation3]
    $region25: #{main_model_forward.25} parent=1 // pred_fallthru
      _
    // Predicated region
    $region26: #{main_model_forward.25} parent=1 // pred_check
      _
    $region27: #{main_model_forward.25} parent=1 // pred_check_branch
      %202 = sbr.rel (0) target = $region29
    $region28: #{main_model_forward.25} parent=1 // pred_region
      %204 = vsyncadd [#allocation5], 0
      %s206 = sshll.u32 [#allocation4], 4
      %s207 = int_to_ptr.vmem [resolvable:$true] %s206
      %s208 = sshll.u32 %s6, 4
      %s209 = int_to_ptr.hbm [resolvable:$true] %s208
      %211 = dma.vmem_to_hbm [thread:$0]  %s207, 32, %s209, [#allocation5]
    $region29: #{main_model_forward.25} parent=1 // pred_fallthru
      _
    // Predicated region
    $region30: #{main_model_forward.25} parent=1 // pred_check
      _
    $region31: #{main_model_forward.25} parent=1 // pred_check_branch
      %213 = sbr.rel (0) target = $region33
    $region32: #{main_model_forward.25} parent=1 // pred_region
      %215 = dma.done [#allocation3], 32
    $region33: #{main_model_forward.25} parent=1 // pred_fallthru
      _
    // Predicated region
    $region34: #{main_model_forward.25} parent=1 // pred_check
      _
    $region35: #{main_model_forward.25} parent=1 // pred_check_branch
      %217 = sbr.rel (0) target = $region37
    $region36: #{main_model_forward.25} parent=1 // pred_region
      %219 = dma.done [#allocation5], 32
    $region37: #{main_model_forward.25} parent=1 // pred_fallthru
      _
    %220 = vsyncpa [#allocation3], 1
    %221 = vsyncpa [#allocation5], 1

// kernel: main_model_forward.24
$region0: #{main_model_forward.24}
  #allocation0 [shape = 'u32[]', space=smem, size = 0x4, offset = 0x4, fixed_abs, tag = 'smem constant byte address 0x4 - core index']
  #allocation1 [shape = 'u32[72,128]{1,0:T(1,128)}', space=vmem, size = 0x9000, scoped, tag = 'internal scratch']
  %s0 = inlined_call_operand.vmem [shape: f32[128,128], index: 0, kind: input, shape index: {}]
  %s1 = inlined_call_operand.vmem [shape: bf16[128,16], index: 1, kind: input, shape index: {}]
  %s2 = inlined_call_operand.vmem [shape: f32[1,16], index: 2, kind: input, shape index: {}]
  %s3 = inlined_call_operand.vmem [shape: f32[128,16], index: 3, kind: output, shape index: {}]
  %s4 = sld [smem:[#allocation0]]
  $region45: #{main_model_forward.24} parent=0
    _
  %s6 = ssub.s32 1, %s4
  %s7 = scalar_select 0, %s6, %s4
  loop: start=0, step=1, limit=4
  $region2: #{main_model_forward.24} parent=0 // loop_pre_header
    _
  $region3: #{main_model_forward.24} parent=0 // loop_header
    %s9 = sphi 0, %s13
    %p10 = scmp.ge.s32.totalorder %s9, 4
    %s19 = sphi 0, %s21
    %s22 = sphi 0, %s19
    %s23 = sphi 0, %s22
    %s39 = sphi 0, %s23
    %s43 = sphi 0, %s43
    %s45 = sphi 0, %s43
    %s46 = sphi 0, %s45
    %s60 = sphi 0, %s46
    %s64 = sphi 0, %s64
    %s66 = sphi 0, %s64
    %s67 = sphi 0, %s66
    %s81 = sphi 0, %s67
    %s87 = sphi 0, %s89
    %s90 = sphi 0, %s87
    %s91 = sphi 0, %s90
    %s107 = sphi 0, %s91
  $region4: #{main_model_forward.24} parent=0 // loop_header_branch
    %12 = sbr.rel (%p10) target = $region8
  $region5: #{main_model_forward.24} parent=0 // loop_body
    %s14 = ssub.s32 %s9, 1
    %s15 = ssub.s32 %s9, 2
    %s16 = sadd.s32 %s9, 1
    %s17 = ssub.s32 %s9, %s16
    %p18 = scmp.eq.s32.totalorder %s17, 0
    %s20 = sadd.s32 %s19, 1
    %s21 = scalar_select %p18, %s19, %s20
    %p24 = pneg %p18
    %p25 = scmp.eq.s32.totalorder %s9, 1
    %p26 = por %p24, %p25
    %p27 = scmp.ne.s32.totalorder %s19, %s22
    %p28 = scmp.eq.s32.totalorder %s9, 0
    %p29 = por %p27, %p28
    %p30 = scmp.ne.s32.totalorder %s19, %s22
    %p31 = scmp.eq.s32.totalorder %s14, 1
    %p32 = por %p30, %p31
    %p33 = scmp.ne.s32.totalorder %s22, %s23
    %p34 = scmp.eq.s32.totalorder %s14, 0
    %p35 = por %p33, %p34
    %p36 = scmp.ne.s32.totalorder %s22, %s23
    %p37 = scmp.eq.s32.totalorder %s15, 1
    %p38 = por %p36, %p37
    %p40 = scmp.ne.s32.totalorder %s23, %s39
    %p41 = scmp.eq.s32.totalorder %s15, 0
    %p42 = por %p40, %p41
    %s44 = sadd.s32 %s43, 1
    %p47 = scmp.eq.s32.totalorder %s9, 1
    %p48 = scmp.ne.s32.totalorder %s43, %s45
    %p49 = scmp.eq.s32.totalorder %s9, 0
    %p50 = por %p48, %p49
    %p51 = scmp.ne.s32.totalorder %s43, %s45
    %p52 = scmp.eq.s32.totalorder %s14, 1
    %p53 = por %p51, %p52
    %p54 = scmp.ne.s32.totalorder %s45, %s46
    %p55 = scmp.eq.s32.totalorder %s14, 0
    %p56 = por %p54, %p55
    %p57 = scmp.ne.s32.totalorder %s45, %s46
    %p58 = scmp.eq.s32.totalorder %s15, 1
    %p59 = por %p57, %p58
    %p61 = scmp.ne.s32.totalorder %s46, %s60
    %p62 = scmp.eq.s32.totalorder %s15, 0
    %p63 = por %p61, %p62
    %s65 = sadd.s32 %s64, 1
    %p68 = scmp.eq.s32.totalorder %s9, 1
    %p69 = scmp.ne.s32.totalorder %s64, %s66
    %p70 = scmp.eq.s32.totalorder %s9, 0
    %p71 = por %p69, %p70
    %p72 = scmp.ne.s32.totalorder %s64, %s66
    %p73 = scmp.eq.s32.totalorder %s14, 1
    %p74 = por %p72, %p73
    %p75 = scmp.ne.s32.totalorder %s66, %s67
    %p76 = scmp.eq.s32.totalorder %s14, 0
    %p77 = por %p75, %p76
    %p78 = scmp.ne.s32.totalorder %s66, %s67
    %p79 = scmp.eq.s32.totalorder %s15, 1
    %p80 = por %p78, %p79
    %p82 = scmp.ne.s32.totalorder %s67, %s81
    %p83 = scmp.eq.s32.totalorder %s15, 0
    %p84 = por %p82, %p83
    %s85 = ssub.s32 %s9, %s16
    %p86 = scmp.eq.s32.totalorder %s85, 0
    %s88 = sadd.s32 %s87, 1
    %s89 = scalar_select %p86, %s87, %s88
    %p92 = pneg %p86
    %p93 = scmp.eq.s32.totalorder %s9, 1
    %p94 = por %p92, %p93
    %p95 = scmp.ne.s32.totalorder %s87, %s90
    %p96 = scmp.eq.s32.totalorder %s9, 0
    %p97 = por %p95, %p96
    %p98 = scmp.ne.s32.totalorder %s87, %s90
    %p99 = scmp.eq.s32.totalorder %s14, 1
    %p100 = por %p98, %p99
    %p101 = scmp.ne.s32.totalorder %s90, %s91
    %p102 = scmp.eq.s32.totalorder %s14, 0
    %p103 = por %p101, %p102
    %p104 = scmp.ne.s32.totalorder %s90, %s91
    %p105 = scmp.eq.s32.totalorder %s15, 1
    %p106 = por %p104, %p105
    %p108 = scmp.ne.s32.totalorder %s91, %s107
    %p109 = scmp.eq.s32.totalorder %s15, 0
    %p110 = por %p108, %p109
    %p111 = scmp.le.s32.totalorder 1, %s9
    %p112 = scmp.lt.s32.totalorder %s9, 3
    %p113 = pnand %p111, %p112
    %p114 = pneg %p113
    // Predicated region
    $region9: #{main_model_forward.24} parent=5 // pred_check
      _
    $region10: #{main_model_forward.24} parent=5 // pred_check_branch
      %116 = sbr.rel (%p113) target = $region12
    $region11: #{main_model_forward.24} parent=5 // pred_region
      %s117 = ssub.s32 %s9, 1
      // Predicated region
      $region13: #{main_model_forward.24} parent=11 // pred_check
        %p118 = pneg %p56
      $region14: #{main_model_forward.24} parent=11 // pred_check_branch
        %120 = sbr.rel (%p118) target = $region16
      $region15: #{main_model_forward.24} parent=11 // pred_region
        _
      $region16: #{main_model_forward.24} parent=11 // pred_fallthru
        _
      // Predicated region
      $region17: #{main_model_forward.24} parent=11 // pred_check
        %p121 = pneg %p77
      $region18: #{main_model_forward.24} parent=11 // pred_check_branch
        %123 = sbr.rel (%p121) target = $region20
      $region19: #{main_model_forward.24} parent=11 // pred_region
        _
      $region20: #{main_model_forward.24} parent=11 // pred_fallthru
        _
    $region12: #{main_model_forward.24} parent=5 // pred_fallthru
      _
    %p124 = scmp.lt.s32.totalorder %s9, 2
    // Predicated region
    $region21: #{main_model_forward.24} parent=5 // pred_check
      %p125 = pneg %p124
    $region22: #{main_model_forward.24} parent=5 // pred_check_branch
      %127 = sbr.rel (%p125) target = $region24
    $region23: #{main_model_forward.24} parent=5 // pred_region
      // Predicated region
      $region25: #{main_model_forward.24} parent=23 // pred_check
        %p128 = pneg %p29
      $region26: #{main_model_forward.24} parent=23 // pred_check_branch
        %130 = sbr.rel (%p128) target = $region28
      $region27: #{main_model_forward.24} parent=23 // pred_region
        %s131 = smul.u32 8, %s9
        %p132 = scmp.lt.s32.totalorder %s131, 15
        %s133 = scalar_select %p132, %s131, 15
        %s134 = smul.addr %s133, 8
        %s135 = scalar_lea.vmem %s0, %s134
        %s136 = smul.u32 8, %s9
      $region28: #{main_model_forward.24} parent=23 // pred_fallthru
        _
    $region24: #{main_model_forward.24} parent=5 // pred_fallthru
      _
    %p137 = scmp.le.s32.totalorder 1, %s9
    %p138 = scmp.lt.s32.totalorder %s9, 3
    %p139 = pnand %p137, %p138
    %p140 = pneg %p139
    // Predicated region
    $region29: #{main_model_forward.24} parent=5 // pred_check
      _
    $region30: #{main_model_forward.24} parent=5 // pred_check_branch
      %142 = sbr.rel (%p139) target = $region32
    $region31: #{main_model_forward.24} parent=5 // pred_region
      %s143 = ssub.s32 %s9, 1
      %s144 = smul.u32 8, %s14
      %p145 = scmp.lt.s32.totalorder %s144, 15
      %s146 = scalar_select %p145, %s144, 15
      %s147 = smul.addr %s146, 8
      %s148 = scalar_lea.vmem %s0, %s147
      %p149 = pneg %p35
      %p150 = pneg %p32
      %p151 = pneg %p56
      %p152 = pneg %p53
      %p153 = pneg %p77
      %p154 = pneg %p74
      %p155 = pneg %p103
      %p156 = pneg %p100
      %s157 = smul.u32 8, %s14
      %p158 = scmp.lt.s32.totalorder %s157, 15
      %s159 = scalar_select %p158, %s157, 15
      %s160 = smul.addr %s159, 8
      %s161 = scalar_lea.vmem %s3, %s160
      %s162 = smul.u32 8, %s14
      %p163 = scmp.lt.s32.totalorder %s162, 15
      %s164 = scalar_select %p163, %s162, 15
      %s165 = smul.addr %s164, 8
      %s166 = scalar_lea.vmem %s0, %s165
      %s167 = smul.u32 8, %s14
      %s168 = smul.u32 8, %s14
      %p169 = scmp.lt.s32.totalorder %s168, 15
      %s170 = scalar_select %p169, %s168, 15
      %s171 = smul.addr %s170, 8
      %s172 = scalar_lea.vmem %s3, %s171
      %s173 = smul.u32 8, %s14
      %v174 = vld [vmem:[%s166] sm:$0xff]
      %v175 = vld [vmem:[%s166 + $0x8] sm:$0xff]
      %v176 = vld [vmem:[%s166 + $0x10] sm:$0xff]
      %v177 = vld [vmem:[%s166 + $0x18] sm:$0xff]
      %v178 = vld [vmem:[%s166 + $0x20] sm:$0xff]
      %v179 = vld [vmem:[%s166 + $0x28] sm:$0xff]
      %v180 = vld [vmem:[%s166 + $0x30] sm:$0xff]
      %v181 = vld [vmem:[%s166 + $0x38] sm:$0xff]
      %v182 = vpack.c.bf16 %v175, %v174
      %v183 = vpack.c.bf16 %v177, %v176
      %v184 = vpack.c.bf16 %v179, %v178
      %v185 = vpack.c.bf16 %v181, %v180
      %v186 = vld [vmem:[%s1] sm:$0xf]
      %v187 = vld [vmem:[%s1 + $0x4] sm:$0xf]
      %v188 = vld [vmem:[%s1 + $0x8] sm:$0xf]
      %v189 = vld [vmem:[%s1 + $0xc] sm:$0xf]
      %v190 = vld [vmem:[%s1 + $0x10] sm:$0xf]
      %v191 = vld [vmem:[%s1 + $0x14] sm:$0xf]
      %v192 = vld [vmem:[%s1 + $0x18] sm:$0xf]
      %v193 = vld [vmem:[%s1 + $0x1c] sm:$0xf]
      %v194 = vld [vmem:[%s1 + $0x20] sm:$0xf]
      %v195 = vld [vmem:[%s1 + $0x24] sm:$0xf]
      %v196 = vld [vmem:[%s1 + $0x28] sm:$0xf]
      %v197 = vld [vmem:[%s1 + $0x2c] sm:$0xf]
      %v198 = vld [vmem:[%s1 + $0x30] sm:$0xf]
      %v199 = vld [vmem:[%s1 + $0x34] sm:$0xf]
      %v200 = vld [vmem:[%s1 + $0x38] sm:$0xf]
      %v201 = vld [vmem:[%s1 + $0x3c] sm:$0xf]
      %v202 = vld [vmem:[%s2] sm:$0x1]
      %v204 = vperm.slane %v202, 0
      %v222 = vunpack.c.l.b16 %v186
      %v223 = vunpack.c.l.b16 %v187
      %v224 = vunpack.c.l.b16 %v188
      %v225 = vunpack.c.l.b16 %v189
      %v226 = vunpack.c.l.b16 %v190
      %v227 = vunpack.c.l.b16 %v191
      %v228 = vunpack.c.l.b16 %v192
      %v229 = vunpack.c.l.b16 %v193
      %v230 = vunpack.c.l.b16 %v194
      %v231 = vunpack.c.l.b16 %v195
      %v232 = vunpack.c.l.b16 %v196
      %v233 = vunpack.c.l.b16 %v197
      %v234 = vunpack.c.l.b16 %v198
      %v235 = vunpack.c.l.b16 %v199
      %v236 = vunpack.c.l.b16 %v200
      %v237 = vunpack.c.l.b16 %v201
      %v238 = vpack.c.b16 %v223, %v222
      %v239 = vpack.c.b16 %v225, %v224
      %v240 = vpack.c.b16 %v227, %v226
      %v241 = vpack.c.b16 %v229, %v228
      %v242 = vpack.c.b16 %v231, %v230
      %v243 = vpack.c.b16 %v233, %v232
      %v244 = vpack.c.b16 %v235, %v234
      %v245 = vpack.c.b16 %v237, %v236
      %254 = vmatpush.bf16.msra.mxu0 %v245
      %255 = vmatpush.bf16.msra.mxu0 %v244
      %256 = vmatpush.bf16.msra.mxu0 %v243
      %257 = vmatpush.bf16.msra.mxu0 %v242
      %258 = vmatpush.bf16.msra.mxu0 %v241
      %259 = vmatpush.bf16.msra.mxu0 %v240
      %260 = vmatpush.bf16.msra.mxu0 %v239
      %261 = vmatpush.bf16.msra.mxu0 %v238
      %262 = vmatmul.bf16.gmra.mxu0 %v182
      %v263 = vpop.f32.mrf.mxu0
      %v264 = vadd.f32 %v204, %v263
      %v265 = vpop.f32.mrf.mxu0
      %v266 = vadd.f32 %v204, %v265
      %267 = vmatmul.bf16.gmra.mxu0 %v183
      %v268 = vpop.f32.mrf.mxu0
      %v269 = vadd.f32 %v204, %v268
      %v270 = vpop.f32.mrf.mxu0
      %v271 = vadd.f32 %v204, %v270
      %272 = vmatmul.bf16.gmra.mxu0 %v184
      %v273 = vpop.f32.mrf.mxu0
      %v274 = vadd.f32 %v204, %v273
      %v275 = vpop.f32.mrf.mxu0
      %v276 = vadd.f32 %v204, %v275
      %277 = vmatmul.bf16.gmra.mxu0 %v185
      %v278 = vpop.f32.mrf.mxu0
      %v279 = vadd.f32 %v204, %v278
      %v280 = vpop.f32.mrf.mxu0
      %v281 = vadd.f32 %v204, %v280
      %282 = vdwg.mxu0
      %vm283 = vcmask 130048
      %284 = vst.msk [vmem:[%s172] sm:$0xff] %vm283, %v264
      %285 = vst.msk [vmem:[%s172 + $0x8] sm:$0xff] %vm283, %v266
      %286 = vst.msk [vmem:[%s172 + $0x10] sm:$0xff] %vm283, %v269
      %287 = vst.msk [vmem:[%s172 + $0x18] sm:$0xff] %vm283, %v271
      %288 = vst.msk [vmem:[%s172 + $0x20] sm:$0xff] %vm283, %v274
      %289 = vst.msk [vmem:[%s172 + $0x28] sm:$0xff] %vm283, %v276
      %290 = vst.msk [vmem:[%s172 + $0x30] sm:$0xff] %vm283, %v279
      %291 = vst.msk [vmem:[%s172 + $0x38] sm:$0xff] %vm283, %v281
      %s292 = smul.u32 8, %s14
      %p293 = scmp.lt.s32.totalorder %s292, 15
      %s294 = scalar_select %p293, %s292, 15
      %s295 = smul.addr %s294, 8
      %s296 = scalar_lea.vmem %s3, %s295
      // Predicated region
      $region33: #{main_model_forward.24} parent=31 // pred_check
        %p297 = pneg %p100
      $region34: #{main_model_forward.24} parent=31 // pred_check_branch
        %299 = sbr.rel (%p297) target = $region36
      $region35: #{main_model_forward.24} parent=31 // pred_region
        %s300 = smul.u32 8, %s14
      $region36: #{main_model_forward.24} parent=31 // pred_fallthru
        _
    $region32: #{main_model_forward.24} parent=5 // pred_fallthru
      _
    %p301 = scmp.le.s32.totalorder 2, %s9
    // Predicated region
    $region37: #{main_model_forward.24} parent=5 // pred_check
      %p302 = pneg %p301
    $region38: #{main_model_forward.24} parent=5 // pred_check_branch
      %304 = sbr.rel (%p302) target = $region40
    $region39: #{main_model_forward.24} parent=5 // pred_region
      %s305 = ssub.s32 %s9, 2
      // Predicated region
      $region41: #{main_model_forward.24} parent=39 // pred_check
        %p306 = pneg %p106
      $region42: #{main_model_forward.24} parent=39 // pred_check_branch
        %308 = sbr.rel (%p306) target = $region44
      $region43: #{main_model_forward.24} parent=39 // pred_region
        %s309 = smul.u32 8, %s15
        %p310 = scmp.lt.s32.totalorder %s309, 15
        %s311 = scalar_select %p310, %s309, 15
        %s312 = smul.addr %s311, 8
        %s313 = scalar_lea.vmem %s3, %s312
      $region44: #{main_model_forward.24} parent=39 // pred_fallthru
        _
    $region40: #{main_model_forward.24} parent=5 // pred_fallthru
      _
  $region6: #{main_model_forward.24} parent=0 // loop_footer
    %s13 = sadd.s32 1, %s9
  $region7: #{main_model_forward.24} parent=0 // loop_footer_branch
    %8 = sbr.rel target = $region3
  $region8: #{main_model_forward.24} parent=0 // loop_exit
    _

// kernel: main_model_forward.19
$region0: #{main_model_forward.19}
  #allocation0 [shape = 'u32[]', space=smem, size = 0x4, offset = 0x4, fixed_abs, tag = 'smem constant byte address 0x4 - core index']
  #allocation1 [shape = 'u32[72,128]{1,0:T(1,128)}', space=vmem, size = 0x9000, scoped, tag = 'internal scratch']
  %s0 = inlined_call_operand.vmem [shape: f32[128,128], index: 0, kind: input, shape index: {}]
  %s1 = inlined_call_operand.vmem [shape: bf16[128,128], index: 1, kind: input, shape index: {}]
  %s2 = inlined_call_operand.vmem [shape: f32[1,128], index: 2, kind: input, shape index: {}]
  %s3 = inlined_call_operand.vmem [shape: f32[1,128], index: 3, kind: input, shape index: {}]
  %s4 = inlined_call_operand.vmem [shape: f32[1,128], index: 4, kind: input, shape index: {}]
  %s5 = inlined_call_operand.vmem [shape: f32[128,128], index: 5, kind: output, shape index: {}]
  %s6 = sld [smem:[#allocation0]]
  $region53: #{main_model_forward.19} parent=0
    _
  %s8 = ssub.s32 1, %s6
  %s9 = scalar_select 0, %s8, %s6
  loop: start=0, step=1, limit=4
  $region2: #{main_model_forward.19} parent=0 // loop_pre_header
    _
  $region3: #{main_model_forward.19} parent=0 // loop_header
    %s11 = sphi 0, %s15
    %p12 = scmp.ge.s32.totalorder %s11, 4
    %s21 = sphi 0, %s23
    %s24 = sphi 0, %s21
    %s25 = sphi 0, %s24
    %s41 = sphi 0, %s25
    %s45 = sphi 0, %s45
    %s47 = sphi 0, %s45
    %s48 = sphi 0, %s47
    %s62 = sphi 0, %s48
    %s66 = sphi 0, %s66
    %s68 = sphi 0, %s66
    %s69 = sphi 0, %s68
    %s83 = sphi 0, %s69
    %s87 = sphi 0, %s87
    %s89 = sphi 0, %s87
    %s90 = sphi 0, %s89
    %s104 = sphi 0, %s90
    %s108 = sphi 0, %s108
    %s110 = sphi 0, %s108
    %s111 = sphi 0, %s110
    %s125 = sphi 0, %s111
    %s131 = sphi 0, %s133
    %s134 = sphi 0, %s131
    %s135 = sphi 0, %s134
    %s151 = sphi 0, %s135
  $region4: #{main_model_forward.19} parent=0 // loop_header_branch
    %14 = sbr.rel (%p12) target = $region8
  $region5: #{main_model_forward.19} parent=0 // loop_body
    %s16 = ssub.s32 %s11, 1
    %s17 = ssub.s32 %s11, 2
    %s18 = sadd.s32 %s11, 1
    %s19 = ssub.s32 %s11, %s18
    %p20 = scmp.eq.s32.totalorder %s19, 0
    %s22 = sadd.s32 %s21, 1
    %s23 = scalar_select %p20, %s21, %s22
    %p26 = pneg %p20
    %p27 = scmp.eq.s32.totalorder %s11, 1
    %p28 = por %p26, %p27
    %p29 = scmp.ne.s32.totalorder %s21, %s24
    %p30 = scmp.eq.s32.totalorder %s11, 0
    %p31 = por %p29, %p30
    %p32 = scmp.ne.s32.totalorder %s21, %s24
    %p33 = scmp.eq.s32.totalorder %s16, 1
    %p34 = por %p32, %p33
    %p35 = scmp.ne.s32.totalorder %s24, %s25
    %p36 = scmp.eq.s32.totalorder %s16, 0
    %p37 = por %p35, %p36
    %p38 = scmp.ne.s32.totalorder %s24, %s25
    %p39 = scmp.eq.s32.totalorder %s17, 1
    %p40 = por %p38, %p39
    %p42 = scmp.ne.s32.totalorder %s25, %s41
    %p43 = scmp.eq.s32.totalorder %s17, 0
    %p44 = por %p42, %p43
    %s46 = sadd.s32 %s45, 1
    %p49 = scmp.eq.s32.totalorder %s11, 1
    %p50 = scmp.ne.s32.totalorder %s45, %s47
    %p51 = scmp.eq.s32.totalorder %s11, 0
    %p52 = por %p50, %p51
    %p53 = scmp.ne.s32.totalorder %s45, %s47
    %p54 = scmp.eq.s32.totalorder %s16, 1
    %p55 = por %p53, %p54
    %p56 = scmp.ne.s32.totalorder %s47, %s48
    %p57 = scmp.eq.s32.totalorder %s16, 0
    %p58 = por %p56, %p57
    %p59 = scmp.ne.s32.totalorder %s47, %s48
    %p60 = scmp.eq.s32.totalorder %s17, 1
    %p61 = por %p59, %p60
    %p63 = scmp.ne.s32.totalorder %s48, %s62
    %p64 = scmp.eq.s32.totalorder %s17, 0
    %p65 = por %p63, %p64
    %s67 = sadd.s32 %s66, 1
    %p70 = scmp.eq.s32.totalorder %s11, 1
    %p71 = scmp.ne.s32.totalorder %s66, %s68
    %p72 = scmp.eq.s32.totalorder %s11, 0
    %p73 = por %p71, %p72
    %p74 = scmp.ne.s32.totalorder %s66, %s68
    %p75 = scmp.eq.s32.totalorder %s16, 1
    %p76 = por %p74, %p75
    %p77 = scmp.ne.s32.totalorder %s68, %s69
    %p78 = scmp.eq.s32.totalorder %s16, 0
    %p79 = por %p77, %p78
    %p80 = scmp.ne.s32.totalorder %s68, %s69
    %p81 = scmp.eq.s32.totalorder %s17, 1
    %p82 = por %p80, %p81
    %p84 = scmp.ne.s32.totalorder %s69, %s83
    %p85 = scmp.eq.s32.totalorder %s17, 0
    %p86 = por %p84, %p85
    %s88 = sadd.s32 %s87, 1
    %p91 = scmp.eq.s32.totalorder %s11, 1
    %p92 = scmp.ne.s32.totalorder %s87, %s89
    %p93 = scmp.eq.s32.totalorder %s11, 0
    %p94 = por %p92, %p93
    %p95 = scmp.ne.s32.totalorder %s87, %s89
    %p96 = scmp.eq.s32.totalorder %s16, 1
    %p97 = por %p95, %p96
    %p98 = scmp.ne.s32.totalorder %s89, %s90
    %p99 = scmp.eq.s32.totalorder %s16, 0
    %p100 = por %p98, %p99
    %p101 = scmp.ne.s32.totalorder %s89, %s90
    %p102 = scmp.eq.s32.totalorder %s17, 1
    %p103 = por %p101, %p102
    %p105 = scmp.ne.s32.totalorder %s90, %s104
    %p106 = scmp.eq.s32.totalorder %s17, 0
    %p107 = por %p105, %p106
    %s109 = sadd.s32 %s108, 1
    %p112 = scmp.eq.s32.totalorder %s11, 1
    %p113 = scmp.ne.s32.totalorder %s108, %s110
    %p114 = scmp.eq.s32.totalorder %s11, 0
    %p115 = por %p113, %p114
    %p116 = scmp.ne.s32.totalorder %s108, %s110
    %p117 = scmp.eq.s32.totalorder %s16, 1
    %p118 = por %p116, %p117
    %p119 = scmp.ne.s32.totalorder %s110, %s111
    %p120 = scmp.eq.s32.totalorder %s16, 0
    %p121 = por %p119, %p120
    %p122 = scmp.ne.s32.totalorder %s110, %s111
    %p123 = scmp.eq.s32.totalorder %s17, 1
    %p124 = por %p122, %p123
    %p126 = scmp.ne.s32.totalorder %s111, %s125
    %p127 = scmp.eq.s32.totalorder %s17, 0
    %p128 = por %p126, %p127
    %s129 = ssub.s32 %s11, %s18
    %p130 = scmp.eq.s32.totalorder %s129, 0
    %s132 = sadd.s32 %s131, 1
    %s133 = scalar_select %p130, %s131, %s132
    %p136 = pneg %p130
    %p137 = scmp.eq.s32.totalorder %s11, 1
    %p138 = por %p136, %p137
    %p139 = scmp.ne.s32.totalorder %s131, %s134
    %p140 = scmp.eq.s32.totalorder %s11, 0
    %p141 = por %p139, %p140
    %p142 = scmp.ne.s32.totalorder %s131, %s134
    %p143 = scmp.eq.s32.totalorder %s16, 1
    %p144 = por %p142, %p143
    %p145 = scmp.ne.s32.totalorder %s134, %s135
    %p146 = scmp.eq.s32.totalorder %s16, 0
    %p147 = por %p145, %p146
    %p148 = scmp.ne.s32.totalorder %s134, %s135
    %p149 = scmp.eq.s32.totalorder %s17, 1
    %p150 = por %p148, %p149
    %p152 = scmp.ne.s32.totalorder %s135, %s151
    %p153 = scmp.eq.s32.totalorder %s17, 0
    %p154 = por %p152, %p153
    %p155 = scmp.le.s32.totalorder 1, %s11
    %p156 = scmp.lt.s32.totalorder %s11, 3
    %p157 = pnand %p155, %p156
    %p158 = pneg %p157
    // Predicated region
    $region9: #{main_model_forward.19} parent=5 // pred_check
      _
    $region10: #{main_model_forward.19} parent=5 // pred_check_branch
      %160 = sbr.rel (%p157) target = $region12
    $region11: #{main_model_forward.19} parent=5 // pred_region
      %s161 = ssub.s32 %s11, 1
      // Predicated region
      $region13: #{main_model_forward.19} parent=11 // pred_check
        %p162 = pneg %p58
      $region14: #{main_model_forward.19} parent=11 // pred_check_branch
        %164 = sbr.rel (%p162) target = $region16
      $region15: #{main_model_forward.19} parent=11 // pred_region
        _
      $region16: #{main_model_forward.19} parent=11 // pred_fallthru
        _
      // Predicated region
      $region17: #{main_model_forward.19} parent=11 // pred_check
        %p165 = pneg %p79
      $region18: #{main_model_forward.19} parent=11 // pred_check_branch
        %167 = sbr.rel (%p165) target = $region20
      $region19: #{main_model_forward.19} parent=11 // pred_region
        _
      $region20: #{main_model_forward.19} parent=11 // pred_fallthru
        _
      // Predicated region
      $region21: #{main_model_forward.19} parent=11 // pred_check
        %p168 = pneg %p100
      $region22: #{main_model_forward.19} parent=11 // pred_check_branch
        %170 = sbr.rel (%p168) target = $region24
      $region23: #{main_model_forward.19} parent=11 // pred_region
        _
      $region24: #{main_model_forward.19} parent=11 // pred_fallthru
        _
      // Predicated region
      $region25: #{main_model_forward.19} parent=11 // pred_check
        %p171 = pneg %p121
      $region26: #{main_model_forward.19} parent=11 // pred_check_branch
        %173 = sbr.rel (%p171) target = $region28
      $region27: #{main_model_forward.19} parent=11 // pred_region
        _
      $region28: #{main_model_forward.19} parent=11 // pred_fallthru
        _
    $region12: #{main_model_forward.19} parent=5 // pred_fallthru
      _
    %p174 = scmp.lt.s32.totalorder %s11, 2
    // Predicated region
    $region29: #{main_model_forward.19} parent=5 // pred_check
      %p175 = pneg %p174
    $region30: #{main_model_forward.19} parent=5 // pred_check_branch
      %177 = sbr.rel (%p175) target = $region32
    $region31: #{main_model_forward.19} parent=5 // pred_region
      // Predicated region
      $region33: #{main_model_forward.19} parent=31 // pred_check
        %p178 = pneg %p31
      $region34: #{main_model_forward.19} parent=31 // pred_check_branch
        %180 = sbr.rel (%p178) target = $region36
      $region35: #{main_model_forward.19} parent=31 // pred_region
        %s181 = smul.u32 8, %s11
        %p182 = scmp.lt.s32.totalorder %s181, 15
        %s183 = scalar_select %p182, %s181, 15
        %s184 = smul.addr %s183, 8
        %s185 = scalar_lea.vmem %s0, %s184
        %s186 = smul.u32 8, %s11
      $region36: #{main_model_forward.19} parent=31 // pred_fallthru
        _
    $region32: #{main_model_forward.19} parent=5 // pred_fallthru
      _
    %p187 = scmp.le.s32.totalorder 1, %s11
    %p188 = scmp.lt.s32.totalorder %s11, 3
    %p189 = pnand %p187, %p188
    %p190 = pneg %p189
    // Predicated region
    $region37: #{main_model_forward.19} parent=5 // pred_check
      _
    $region38: #{main_model_forward.19} parent=5 // pred_check_branch
      %192 = sbr.rel (%p189) target = $region40
    $region39: #{main_model_forward.19} parent=5 // pred_region
      %s193 = ssub.s32 %s11, 1
      %s194 = smul.u32 8, %s16
      %p195 = scmp.lt.s32.totalorder %s194, 15
      %s196 = scalar_select %p195, %s194, 15
      %s197 = smul.addr %s196, 8
      %s198 = scalar_lea.vmem %s0, %s197
      %p199 = pneg %p37
      %p200 = pneg %p34
      %p201 = pneg %p58
      %p202 = pneg %p55
      %p203 = pneg %p79
      %p204 = pneg %p76
      %p205 = pneg %p100
      %p206 = pneg %p97
      %p207 = pneg %p121
      %p208 = pneg %p118
      %p209 = pneg %p147
      %p210 = pneg %p144
      %s211 = smul.u32 8, %s16
      %p212 = scmp.lt.s32.totalorder %s211, 15
      %s213 = scalar_select %p212, %s211, 15
      %s214 = smul.addr %s213, 8
      %s215 = scalar_lea.vmem %s5, %s214
      %s216 = smul.u32 8, %s16
      %p217 = scmp.lt.s32.totalorder %s216, 15
      %s218 = scalar_select %p217, %s216, 15
      %s219 = smul.addr %s218, 8
      %s220 = scalar_lea.vmem %s0, %s219
      %s221 = smul.u32 8, %s16
      %s222 = smul.u32 8, %s16
      %p223 = scmp.lt.s32.totalorder %s222, 15
      %s224 = scalar_select %p223, %s222, 15
      %s225 = smul.addr %s224, 8
      %s226 = scalar_lea.vmem %s5, %s225
      %s227 = smul.u32 8, %s16
      %v228 = vld [vmem:[%s220] sm:$0xff]
      %v229 = vld [vmem:[%s220 + $0x8] sm:$0xff]
      %v230 = vld [vmem:[%s220 + $0x10] sm:$0xff]
      %v231 = vld [vmem:[%s220 + $0x18] sm:$0xff]
      %v232 = vld [vmem:[%s220 + $0x20] sm:$0xff]
      %v233 = vld [vmem:[%s220 + $0x28] sm:$0xff]
      %v234 = vld [vmem:[%s220 + $0x30] sm:$0xff]
      %v235 = vld [vmem:[%s220 + $0x38] sm:$0xff]
      %v236 = vpack.c.bf16 %v229, %v228
      %v237 = vpack.c.bf16 %v231, %v230
      %v238 = vpack.c.bf16 %v233, %v232
      %v239 = vpack.c.bf16 %v235, %v234
      %v240 = vld [vmem:[%s1] sm:$0xf]
      %v241 = vld [vmem:[%s1 + $0x4] sm:$0xf]
      %v242 = vld [vmem:[%s1 + $0x8] sm:$0xf]
      %v243 = vld [vmem:[%s1 + $0xc] sm:$0xf]
      %v244 = vld [vmem:[%s1 + $0x10] sm:$0xf]
      %v245 = vld [vmem:[%s1 + $0x14] sm:$0xf]
      %v246 = vld [vmem:[%s1 + $0x18] sm:$0xf]
      %v247 = vld [vmem:[%s1 + $0x1c] sm:$0xf]
      %v248 = vld [vmem:[%s1 + $0x20] sm:$0xf]
      %v249 = vld [vmem:[%s1 + $0x24] sm:$0xf]
      %v250 = vld [vmem:[%s1 + $0x28] sm:$0xf]
      %v251 = vld [vmem:[%s1 + $0x2c] sm:$0xf]
      %v252 = vld [vmem:[%s1 + $0x30] sm:$0xf]
      %v253 = vld [vmem:[%s1 + $0x34] sm:$0xf]
      %v254 = vld [vmem:[%s1 + $0x38] sm:$0xf]
      %v255 = vld [vmem:[%s1 + $0x3c] sm:$0xf]
      %v256 = vld [vmem:[%s2] sm:$0x1]
      %v258 = vperm.slane %v256, 0
      %v276 = vunpack.c.l.b16 %v240
      %v277 = vunpack.c.l.b16 %v241
      %v278 = vunpack.c.l.b16 %v242
      %v279 = vunpack.c.l.b16 %v243
      %v280 = vunpack.c.l.b16 %v244
      %v281 = vunpack.c.l.b16 %v245
      %v282 = vunpack.c.l.b16 %v246
      %v283 = vunpack.c.l.b16 %v247
      %v284 = vunpack.c.l.b16 %v248
      %v285 = vunpack.c.l.b16 %v249
      %v286 = vunpack.c.l.b16 %v250
      %v287 = vunpack.c.l.b16 %v251
      %v288 = vunpack.c.l.b16 %v252
      %v289 = vunpack.c.l.b16 %v253
      %v290 = vunpack.c.l.b16 %v254
      %v291 = vunpack.c.l.b16 %v255
      %v292 = vpack.c.b16 %v277, %v276
      %v293 = vpack.c.b16 %v279, %v278
      %v294 = vpack.c.b16 %v281, %v280
      %v295 = vpack.c.b16 %v283, %v282
      %v296 = vpack.c.b16 %v285, %v284
      %v297 = vpack.c.b16 %v287, %v286
      %v298 = vpack.c.b16 %v289, %v288
      %v299 = vpack.c.b16 %v291, %v290
      %308 = vmatpush.bf16.msra.mxu0 %v299
      %309 = vmatpush.bf16.msra.mxu0 %v298
      %310 = vmatpush.bf16.msra.mxu0 %v297
      %311 = vmatpush.bf16.msra.mxu0 %v296
      %312 = vmatpush.bf16.msra.mxu0 %v295
      %313 = vmatpush.bf16.msra.mxu0 %v294
      %314 = vmatpush.bf16.msra.mxu0 %v293
      %315 = vmatpush.bf16.msra.mxu0 %v292
      %316 = vmatmul.bf16.gmra.mxu0 %v236
      %v317 = vpop.f32.mrf.mxu0
      %v318 = vadd.f32 %v258, %v317
      %v319 = vpop.f32.mrf.mxu0
      %v320 = vadd.f32 %v258, %v319
      %321 = vmatmul.bf16.gmra.mxu0 %v237
      %v322 = vpop.f32.mrf.mxu0
      %v323 = vadd.f32 %v258, %v322
      %v324 = vpop.f32.mrf.mxu0
      %v325 = vadd.f32 %v258, %v324
      %326 = vmatmul.bf16.gmra.mxu0 %v238
      %v327 = vpop.f32.mrf.mxu0
      %v328 = vadd.f32 %v258, %v327
      %v329 = vpop.f32.mrf.mxu0
      %v330 = vadd.f32 %v258, %v329
      %331 = vmatmul.bf16.gmra.mxu0 %v239
      %v332 = vpop.f32.mrf.mxu0
      %v333 = vadd.f32 %v258, %v332
      %v334 = vpop.f32.mrf.mxu0
      %v335 = vadd.f32 %v258, %v334
      %336 = vdwg.mxu0
      %337 = vadd.xlane.f32.xlu0 %v318
      %v338 = vpop.xlane.xlu0 %337
      %339 = vadd.xlane.f32.xlu0 %v320
      %v340 = vpop.xlane.xlu0 %339
      %341 = vadd.xlane.f32.xlu0 %v323
      %v342 = vpop.xlane.xlu0 %341
      %343 = vadd.xlane.f32.xlu0 %v325
      %v344 = vpop.xlane.xlu0 %343
      %345 = vadd.xlane.f32.xlu0 %v328
      %v346 = vpop.xlane.xlu0 %345
      %347 = vadd.xlane.f32.xlu0 %v330
      %v348 = vpop.xlane.xlu0 %347
      %349 = vadd.xlane.f32.xlu0 %v333
      %v350 = vpop.xlane.xlu0 %349
      %351 = vadd.xlane.f32.xlu0 %v335
      %v352 = vpop.xlane.xlu0 %351
      %v353 = vrcp.pop 128.0
      %v354 = vmul.f32 128.0, %v353
      %v355 = vsub.f32 1.0, %v354
      %v356 = vmul.f32 %v353, %v355
      %v357 = vadd.f32 %v353, %v356
      %vm358 = vweird.f32 %v353
      %v359 = vsel %vm358, %v353, %v357
      %v360 = vmul.f32 %v338, %v359
      %v361 = vmul.f32 %v340, %v359
      %v362 = vmul.f32 %v342, %v359
      %v363 = vmul.f32 %v344, %v359
      %v364 = vmul.f32 %v346, %v359
      %v365 = vmul.f32 %v348, %v359
      %v366 = vmul.f32 %v350, %v359
      %v367 = vmul.f32 %v352, %v359
      %v368 = vsub.f32 %v318, %v360
      %v369 = vsub.f32 %v320, %v361
      %v370 = vsub.f32 %v323, %v362
      %v371 = vsub.f32 %v325, %v363
      %v372 = vsub.f32 %v328, %v364
      %v373 = vsub.f32 %v330, %v365
      %v374 = vsub.f32 %v333, %v366
      %v375 = vsub.f32 %v335, %v367
      %v376 = vmul.f32 %v368, %v368
      %v377 = vmul.f32 %v369, %v369
      %v378 = vmul.f32 %v370, %v370
      %v379 = vmul.f32 %v371, %v371
      %v380 = vmul.f32 %v372, %v372
      %v381 = vmul.f32 %v373, %v373
      %v382 = vmul.f32 %v374, %v374
      %v383 = vmul.f32 %v375, %v375
      %384 = vadd.xlane.f32.xlu0 %v376
      %v385 = vpop.xlane.xlu0 %384
      %386 = vadd.xlane.f32.xlu0 %v377
      %v387 = vpop.xlane.xlu0 %386
      %388 = vadd.xlane.f32.xlu0 %v378
      %v389 = vpop.xlane.xlu0 %388
      %390 = vadd.xlane.f32.xlu0 %v379
      %v391 = vpop.xlane.xlu0 %390
      %392 = vadd.xlane.f32.xlu0 %v380
      %v393 = vpop.xlane.xlu0 %392
      %394 = vadd.xlane.f32.xlu0 %v381
      %v395 = vpop.xlane.xlu0 %394
      %396 = vadd.xlane.f32.xlu0 %v382
      %v397 = vpop.xlane.xlu0 %396
      %398 = vadd.xlane.f32.xlu0 %v383
      %v399 = vpop.xlane.xlu0 %398
      %v400 = vmul.f32 %v385, %v359
      %v401 = vmul.f32 %v387, %v359
      %v402 = vmul.f32 %v389, %v359
      %v403 = vmul.f32 %v391, %v359
      %v404 = vmul.f32 %v393, %v359
      %v405 = vmul.f32 %v395, %v359
      %v406 = vmul.f32 %v397, %v359
      %v407 = vmul.f32 %v399, %v359
      %v408 = vadd.f32 %v400, 1e-05
      %v409 = vadd.f32 %v401, 1e-05
      %v410 = vadd.f32 %v402, 1e-05
      %v411 = vadd.f32 %v403, 1e-05
      %v412 = vadd.f32 %v404, 1e-05
      %v413 = vadd.f32 %v405, 1e-05
      %v414 = vadd.f32 %v406, 1e-05
      %v415 = vadd.f32 %v407, 1e-05
      %v416 = vrsqrt.pop %v408
      %v417 = vmul.f32 %v416, %v408
      %v418 = vmul.f32 %v417, %v416
      %v419 = vmul.f32 0.5, %v418
      %v420 = vsub.f32 1.5, %v419
      %v421 = vmul.f32 %v416, %v420
      %vm422 = vweird.f32 %v408
      %vm423 = vweird.f32 %v416
      %vm424 = vmor %vm422, %vm423
      %v425 = vsel %vm424, %v416, %v421
      %v426 = vrsqrt.pop %v409
      %v427 = vmul.f32 %v426, %v409
      %v428 = vmul.f32 %v427, %v426
      %v429 = vmul.f32 0.5, %v428
      %v430 = vsub.f32 1.5, %v429
      %v431 = vmul.f32 %v426, %v430
      %vm432 = vweird.f32 %v409
      %vm433 = vweird.f32 %v426
      %vm434 = vmor %vm432, %vm433
      %v435 = vsel %vm434, %v426, %v431
      %v436 = vrsqrt.pop %v410
      %v437 = vmul.f32 %v436, %v410
      %v438 = vmul.f32 %v437, %v436
      %v439 = vmul.f32 0.5, %v438
      %v440 = vsub.f32 1.5, %v439
      %v441 = vmul.f32 %v436, %v440
      %vm442 = vweird.f32 %v410
      %vm443 = vweird.f32 %v436
      %vm444 = vmor %vm442, %vm443
      %v445 = vsel %vm444, %v436, %v441
      %v446 = vrsqrt.pop %v411
      %v447 = vmul.f32 %v446, %v411
      %v448 = vmul.f32 %v447, %v446
      %v449 = vmul.f32 0.5, %v448
      %v450 = vsub.f32 1.5, %v449
      %v451 = vmul.f32 %v446, %v450
      %vm452 = vweird.f32 %v411
      %vm453 = vweird.f32 %v446
      %vm454 = vmor %vm452, %vm453
      %v455 = vsel %vm454, %v446, %v451
      %v456 = vrsqrt.pop %v412
      %v457 = vmul.f32 %v456, %v412
      %v458 = vmul.f32 %v457, %v456
      %v459 = vmul.f32 0.5, %v458
      %v460 = vsub.f32 1.5, %v459
      %v461 = vmul.f32 %v456, %v460
      %vm462 = vweird.f32 %v412
      %vm463 = vweird.f32 %v456
      %vm464 = vmor %vm462, %vm463
      %v465 = vsel %vm464, %v456, %v461
      %v466 = vrsqrt.pop %v413
      %v467 = vmul.f32 %v466, %v413
      %v468 = vmul.f32 %v467, %v466
      %v469 = vmul.f32 0.5, %v468
      %v470 = vsub.f32 1.5, %v469
      %v471 = vmul.f32 %v466, %v470
      %vm472 = vweird.f32 %v413
      %vm473 = vweird.f32 %v466
      %vm474 = vmor %vm472, %vm473
      %v475 = vsel %vm474, %v466, %v471
      %v476 = vrsqrt.pop %v414
      %v477 = vmul.f32 %v476, %v414
      %v478 = vmul.f32 %v477, %v476
      %v479 = vmul.f32 0.5, %v478
      %v480 = vsub.f32 1.5, %v479
      %v481 = vmul.f32 %v476, %v480
      %vm482 = vweird.f32 %v414
      %vm483 = vweird.f32 %v476
      %vm484 = vmor %vm482, %vm483
      %v485 = vsel %vm484, %v476, %v481
      %v486 = vrsqrt.pop %v415
      %v487 = vmul.f32 %v486, %v415
      %v488 = vmul.f32 %v487, %v486
      %v489 = vmul.f32 0.5, %v488
      %v490 = vsub.f32 1.5, %v489
      %v491 = vmul.f32 %v486, %v490
      %vm492 = vweird.f32 %v415
      %vm493 = vweird.f32 %v486
      %vm494 = vmor %vm492, %vm493
      %v495 = vsel %vm494, %v486, %v491
      %v496 = vmul.f32 %v368, %v425
      %v497 = vmul.f32 %v369, %v435
      %v498 = vmul.f32 %v370, %v445
      %v499 = vmul.f32 %v371, %v455
      %v500 = vmul.f32 %v372, %v465
      %v501 = vmul.f32 %v373, %v475
      %v502 = vmul.f32 %v374, %v485
      %v503 = vmul.f32 %v375, %v495
      %v504 = vld [vmem:[%s3] sm:$0x1]
      %v506 = vperm.slane %v504, 0
      %v508 = vmul.f32 %v496, %v506
      %v509 = vmul.f32 %v497, %v506
      %v510 = vmul.f32 %v498, %v506
      %v511 = vmul.f32 %v499, %v506
      %v512 = vmul.f32 %v500, %v506
      %v513 = vmul.f32 %v501, %v506
      %v514 = vmul.f32 %v502, %v506
      %v515 = vmul.f32 %v503, %v506
      %v516 = vld [vmem:[%s4] sm:$0x1]
      %v518 = vperm.slane %v516, 0
      %v520 = vadd.f32 %v508, %v518
      %v521 = vadd.f32 %v509, %v518
      %v522 = vadd.f32 %v510, %v518
      %v523 = vadd.f32 %v511, %v518
      %v524 = vadd.f32 %v512, %v518
      %v525 = vadd.f32 %v513, %v518
      %v526 = vadd.f32 %v514, %v518
      %v527 = vadd.f32 %v515, %v518
      %v528 = vmax.f32 %v520, 0.0
      %v529 = vmax.f32 %v521, 0.0
      %v530 = vmax.f32 %v522, 0.0
      %v531 = vmax.f32 %v523, 0.0
      %v532 = vmax.f32 %v524, 0.0
      %v533 = vmax.f32 %v525, 0.0
      %v534 = vmax.f32 %v526, 0.0
      %v535 = vmax.f32 %v527, 0.0
      %536 = vst [vmem:[%s226] sm:$0xff] %v528
      %537 = vst [vmem:[%s226 + $0x8] sm:$0xff] %v529
      %538 = vst [vmem:[%s226 + $0x10] sm:$0xff] %v530
      %539 = vst [vmem:[%s226 + $0x18] sm:$0xff] %v531
      %540 = vst [vmem:[%s226 + $0x20] sm:$0xff] %v532
      %541 = vst [vmem:[%s226 + $0x28] sm:$0xff] %v533
      %542 = vst [vmem:[%s226 + $0x30] sm:$0xff] %v534
      %543 = vst [vmem:[%s226 + $0x38] sm:$0xff] %v535
      %s544 = smul.u32 8, %s16
      %p545 = scmp.lt.s32.totalorder %s544, 15
      %s546 = scalar_select %p545, %s544, 15
      %s547 = smul.addr %s546, 8
      %s548 = scalar_lea.vmem %s5, %s547
      // Predicated region
      $region41: #{main_model_forward.19} parent=39 // pred_check
        %p549 = pneg %p144
      $region42: #{main_model_forward.19} parent=39 // pred_check_branch
        %551 = sbr.rel (%p549) target = $region44
      $region43: #{main_model_forward.19} parent=39 // pred_region
        %s552 = smul.u32 8, %s16
      $region44: #{main_model_forward.19} parent=39 // pred_fallthru
        _
    $region40: #{main_model_forward.19} parent=5 // pred_fallthru
      _
    %p553 = scmp.le.s32.totalorder 2, %s11
    // Predicated region
    $region45: #{main_model_forward.19} parent=5 // pred_check
      %p554 = pneg %p553
    $region46: #{main_model_forward.19} parent=5 // pred_check_branch
      %556 = sbr.rel (%p554) target = $region48
    $region47: #{main_model_forward.19} parent=5 // pred_region
      %s557 = ssub.s32 %s11, 2
      // Predicated region
      $region49: #{main_model_forward.19} parent=47 // pred_check
        %p558 = pneg %p150
      $region50: #{main_model_forward.19} parent=47 // pred_check_branch
        %560 = sbr.rel (%p558) target = $region52
      $region51: #{main_model_forward.19} parent=47 // pred_region
        %s561 = smul.u32 8, %s17
        %p562 = scmp.lt.s32.totalorder %s561, 15
        %s563 = scalar_select %p562, %s561, 15
        %s564 = smul.addr %s563, 8
        %s565 = scalar_lea.vmem %s5, %s564
      $region52: #{main_model_forward.19} parent=47 // pred_fallthru
        _
    $region48: #{main_model_forward.19} parent=5 // pred_fallthru
      _
  $region6: #{main_model_forward.19} parent=0 // loop_footer
    %s15 = sadd.s32 1, %s11
  $region7: #{main_model_forward.19} parent=0 // loop_footer_branch
    %10 = sbr.rel target = $region3
  $region8: #{main_model_forward.19} parent=0 // loop_exit
    _

</llo_original>
